<compile_context>
chip_gen: v5e
topology: v5e:2x2
jax: 0.10.0
libtpu: 0.0.40
codegen_flags: <defaults>
</compile_context>

<pallas_src>
import jax
import jax.numpy as jnp
from jax.experimental import pallas as pl
from jax.experimental.pallas import tpu as pltpu


def _dense_value_head_kernel(xT_ref, wc_ref, w1_ref, w2_ref, o_ref):
    # xT_ref: (9*Cin, Ho*Wo)    im2col patches for one batch element
    #                           (pixels on lanes, tap*Cin on sublanes)
    # wc_ref: (Cc, 9*Cin)       conv weight, tap-major columns
    # w1_ref: (Cc, Ho*Wo, 256)  FC1 weight, per-conv-channel slabs, bf16
    # w2_ref: (1, 256)          FC2 weight (PyTorch layout)
    # o_ref : (1, 1)            tanh(value) for this batch element

    # 3x3 valid conv as ONE matmul over the im2col axis.  Output is already
    # channel-major (Cc, P): no transpose/reshape needed before the FC1.
    convT = jnp.dot(wc_ref[...], xT_ref[...],
                    preferred_element_type=jnp.float32)          # (Cc, P)
    aT = jnp.maximum(convT, 0.0).astype(jnp.bfloat16)            # ReLU

    # Flatten + Linear(->256).  Torch's flatten order is (c, y, x), which is
    # exactly "row c of aT against the per-channel (P, 256) weight slab", so
    # the flatten lives entirely in the w1 layout.  bf16 operands, f32 acc.
    Cc = wc_ref.shape[0]
    h1 = jnp.zeros((1, 256), jnp.float32)
    for c in range(Cc):                                          # unrolled, static
        h1 = h1 + jnp.dot(aT[c:c + 1, :], w1_ref[c],
                          preferred_element_type=jnp.float32)    # (1, 256)

    # ReLU -> Linear(256 -> 1) -> Tanh.  The final 256->1 projection is a lane
    # reduce (VPU mul + XLU reduce) instead of an N=1 matmul.
    h1 = jnp.maximum(h1, 0.0)
    v = jnp.sum(h1 * w2_ref[...], axis=1, keepdims=True)         # (1, 1)
    o_ref[...] = jnp.tanh(v)


def dense_value_head(x_nchw, params):
    """Fused forward pass. x_nchw: (N, Cin, H, W) -> (N, 1)."""
    wc_k, w1_k, w2_k = params
    N, Cin, H, W = x_nchw.shape
    Ho, Wo = H - 2, W - 2
    P = Ho * Wo
    K9 = 9 * Cin
    Cc = wc_k.shape[0]

    # Wrapper-side im2col (layout plumbing only; x is tiny):
    #   xT[n, (dy*3+dx)*Cin + ci, y*Wo + x] = x[n, ci, y+dy, x+dx]
    cols = []
    for dy in range(3):
        for dx in range(3):
            cols.append(
                x_nchw[:, :, dy:dy + Ho, dx:dx + Wo].reshape(N, Cin, P))
    xT = jnp.concatenate(cols, axis=1)                           # (N, 9*Cin, P)

    out = pl.pallas_call(
        _dense_value_head_kernel,
        out_shape=jax.ShapeDtypeStruct((N, 1, 1), jnp.float32),
        grid_spec=pltpu.PrefetchScalarGridSpec(
            num_scalar_prefetch=0,
            grid=(N,),
            in_specs=[
                pl.BlockSpec((None, K9, P), lambda n: (n, 0, 0)),
                pl.BlockSpec((Cc, K9), lambda n: (0, 0)),
                pl.BlockSpec((Cc, P, 256), lambda n: (0, 0, 0)),
                pl.BlockSpec((1, 256), lambda n: (0, 0)),
            ],
            out_specs=pl.BlockSpec((None, 1, 1), lambda n: (n, 0, 0)),
        ),
        compiler_params=pltpu.CompilerParams(
            dimension_semantics=("parallel",),
            vmem_limit_bytes=32 * 1024 * 1024,
        ),
    )(xT, wc_k, w1_k, w2_k)
    return out.reshape(N, 1)


def init_torch_params(key, width, conv_channels, hw):
    """Deterministic synthetic weights in PyTorch layouts."""
    H, W = hw
    flat = conv_channels * (H - 2) * (W - 2)        # LazyLinear in_features
    k1, k2, k3 = jax.random.split(key, 3)
    wc = jax.random.normal(k1, (conv_channels, width, 3, 3),
                           jnp.float32) / jnp.sqrt(9.0 * width)
    w1 = jax.random.normal(k2, (256, flat), jnp.float32) / jnp.sqrt(float(flat))
    w2 = jax.random.normal(k3, (1, 256), jnp.float32) / 16.0
    return wc, w1, w2


def prepare_params(torch_params, hw):
    """Convert PyTorch weight layouts into the kernel's layouts."""
    wc, w1, w2 = torch_params
    Cc, Cin = wc.shape[0], wc.shape[1]
    Ho, Wo = hw[0] - 2, hw[1] - 2
    P = Ho * Wo
    # Conv: (Cc, Cin, 3, 3) -> (Cc, 9*Cin), column index (dy*3+dx)*Cin + ci
    # (matches the wrapper's im2col ordering).
    wc_k = jnp.transpose(wc, (0, 2, 3, 1)).reshape(Cc, 9 * Cin)
    # FC1: (256, Cc*P) with torch flatten order (c, y, x)
    #      -> (Cc, P, 256) per-channel slabs, bf16 for the MXU / half VMEM.
    w1_k = jnp.transpose(w1.reshape(256, Cc, P), (1, 2, 0)).astype(jnp.bfloat16)
    # FC2: keep PyTorch layout (1, 256).
    w2_k = w2
    return wc_k, w1_k, w2_k


def reference_forward(x_nchw, torch_params):
    """Pure-JAX f32 reference mirroring the PyTorch forward (hex=False)."""
    wc, w1, w2 = torch_params
    y = jax.lax.conv_general_dilated(
        x_nchw, wc, window_strides=(1, 1), padding="VALID",
        dimension_numbers=("NCHW", "OIHW", "NCHW"))
    a = jnp.maximum(y.reshape(x_nchw.shape[0], -1), 0.0)
    h1 = jnp.maximum(a @ w1.T, 0.0)
    return jnp.tanh(h1 @ w2.T)


if __name__ == "__main__":
    key = jax.random.PRNGKey(0)
    kx, kp = jax.random.split(key)

    N, width, H, W = 2, 4, 16, 16
    conv_channels = 32

    x = jax.random.normal(kx, (N, width, H, W), dtype=jnp.float32)
    torch_params = init_torch_params(kp, width, conv_channels, (H, W))
    params = prepare_params(torch_params, (H, W))

    out = jax.jit(dense_value_head)(x, params)
    out = jax.block_until_ready(out)
    assert out.shape == (N, 1), out.shape
    assert bool(jnp.all(jnp.isfinite(out)))

    ref = reference_forward(x, torch_params)
    err = float(jnp.max(jnp.abs(out - ref)))
    assert err < 2e-2, (err, out, ref)
    print("KERNEL_OK")
</pallas_src>

<mosaic_0001>
module attributes {stable_mosaic.version = 11 : i64} {
  func.func @_dense_value_head_kernel(%arg0: i32, %arg1: memref<1x36x196xf32, #tpu.memory_space<vmem>>, %arg2: memref<32x36xf32, #tpu.memory_space<vmem>>, %arg3: memref<32x196x256xbf16, #tpu.memory_space<vmem>>, %arg4: memref<1x256xf32, #tpu.memory_space<vmem>>, %arg5: memref<1x1x1xf32, #tpu.memory_space<vmem>>) attributes {dimension_semantics = [#tpu.dimension_semantics<parallel>], iteration_bounds = array<i64: 2>, scalar_prefetch = 0 : i64, scratch_operands = 0 : i64, tpu.core_type = #tpu.core_type<tc>, window_params = [{transform_indices = @transform_0, window_bounds = array<i64: 1, 36, 196>}, {pipeline_mode = #tpu.pipeline_mode<synchronous>, transform_indices = @transform_1, window_bounds = array<i64: 32, 36>}, {pipeline_mode = #tpu.pipeline_mode<synchronous>, transform_indices = @transform_2, window_bounds = array<i64: 32, 196, 256>}, {pipeline_mode = #tpu.pipeline_mode<synchronous>, transform_indices = @transform_3, window_bounds = array<i64: 1, 256>}, {transform_indices = @transform_4, window_bounds = array<i64: 1, 1, 1>}]} {
    %c0 = arith.constant 0 : index
    %c0_0 = arith.constant 0 : index
    %0 = vector.load %arg2[%c0, %c0_0] : memref<32x36xf32, #tpu.memory_space<vmem>>, vector<32x36xf32>
    %c0_1 = arith.constant 0 : index
    %c0_2 = arith.constant 0 : index
    %c0_3 = arith.constant 0 : index
    %1 = vector.load %arg1[%c0_1, %c0_2, %c0_3] : memref<1x36x196xf32, #tpu.memory_space<vmem>>, vector<1x36x196xf32>
    %2 = vector.shape_cast %1 : vector<1x36x196xf32> to vector<36x196xf32>
    %cst = arith.constant dense<0.000000e+00> : vector<32x196xf32>
    %3 = tpu.matmul %0, %2, %cst {dimension_numbers = #tpu.dot_dimension_numbers<[1], [0], [0], [1], [0, 0, 1, 1], [], []>} : vector<32x36xf32>, vector<36x196xf32>, vector<32x196xf32> -> vector<32x196xf32>
    %cst_4 = arith.constant 0.000000e+00 : f32
    %4 = vector.broadcast %cst_4 : f32 to vector<32x196xf32>
    %5 = arith.maximumf %3, %4 : vector<32x196xf32>
    %6 = arith.truncf %5 : vector<32x196xf32> to vector<32x196xbf16>
    %cst_5 = arith.constant 0.000000e+00 : f32
    %7 = vector.broadcast %cst_5 : f32 to vector<1x256xf32>
    %8 = vector.extract_strided_slice %6 {offsets = [0, 0], sizes = [1, 196], strides = [1, 1]} : vector<32x196xbf16> to vector<1x196xbf16>
    %c0_6 = arith.constant 0 : index
    %c0_7 = arith.constant 0 : index
    %c0_8 = arith.constant 0 : index
    %9 = vector.load %arg3[%c0_6, %c0_7, %c0_8] : memref<32x196x256xbf16, #tpu.memory_space<vmem>>, vector<1x196x256xbf16>
    %10 = vector.shape_cast %9 : vector<1x196x256xbf16> to vector<196x256xbf16>
    %cst_9 = arith.constant dense<0.000000e+00> : vector<1x256xf32>
    %11 = tpu.matmul %8, %10, %cst_9 {dimension_numbers = #tpu.dot_dimension_numbers<[1], [0], [0], [1], [0, 0, 1, 1], [], []>} : vector<1x196xbf16>, vector<196x256xbf16>, vector<1x256xf32> -> vector<1x256xf32>
    %12 = arith.addf %7, %11 : vector<1x256xf32>
    %13 = vector.extract_strided_slice %6 {offsets = [1, 0], sizes = [1, 196], strides = [1, 1]} : vector<32x196xbf16> to vector<1x196xbf16>
    %c1 = arith.constant 1 : index
    %c0_10 = arith.constant 0 : index
    %c0_11 = arith.constant 0 : index
    %14 = vector.load %arg3[%c1, %c0_10, %c0_11] : memref<32x196x256xbf16, #tpu.memory_space<vmem>>, vector<1x196x256xbf16>
    %15 = vector.shape_cast %14 : vector<1x196x256xbf16> to vector<196x256xbf16>
    %cst_12 = arith.constant dense<0.000000e+00> : vector<1x256xf32>
    %16 = tpu.matmul %13, %15, %cst_12 {dimension_numbers = #tpu.dot_dimension_numbers<[1], [0], [0], [1], [0, 0, 1, 1], [], []>} : vector<1x196xbf16>, vector<196x256xbf16>, vector<1x256xf32> -> vector<1x256xf32>
    %17 = arith.addf %12, %16 : vector<1x256xf32>
    %18 = vector.extract_strided_slice %6 {offsets = [2, 0], sizes = [1, 196], strides = [1, 1]} : vector<32x196xbf16> to vector<1x196xbf16>
    %c2 = arith.constant 2 : index
    %c0_13 = arith.constant 0 : index
    %c0_14 = arith.constant 0 : index
    %19 = vector.load %arg3[%c2, %c0_13, %c0_14] : memref<32x196x256xbf16, #tpu.memory_space<vmem>>, vector<1x196x256xbf16>
    %20 = vector.shape_cast %19 : vector<1x196x256xbf16> to vector<196x256xbf16>
    %cst_15 = arith.constant dense<0.000000e+00> : vector<1x256xf32>
    %21 = tpu.matmul %18, %20, %cst_15 {dimension_numbers = #tpu.dot_dimension_numbers<[1], [0], [0], [1], [0, 0, 1, 1], [], []>} : vector<1x196xbf16>, vector<196x256xbf16>, vector<1x256xf32> -> vector<1x256xf32>
    %22 = arith.addf %17, %21 : vector<1x256xf32>
    %23 = vector.extract_strided_slice %6 {offsets = [3, 0], sizes = [1, 196], strides = [1, 1]} : vector<32x196xbf16> to vector<1x196xbf16>
    %c3 = arith.constant 3 : index
    %c0_16 = arith.constant 0 : index
    %c0_17 = arith.constant 0 : index
    %24 = vector.load %arg3[%c3, %c0_16, %c0_17] : memref<32x196x256xbf16, #tpu.memory_space<vmem>>, vector<1x196x256xbf16>
    %25 = vector.shape_cast %24 : vector<1x196x256xbf16> to vector<196x256xbf16>
    %cst_18 = arith.constant dense<0.000000e+00> : vector<1x256xf32>
    %26 = tpu.matmul %23, %25, %cst_18 {dimension_numbers = #tpu.dot_dimension_numbers<[1], [0], [0], [1], [0, 0, 1, 1], [], []>} : vector<1x196xbf16>, vector<196x256xbf16>, vector<1x256xf32> -> vector<1x256xf32>
    %27 = arith.addf %22, %26 : vector<1x256xf32>
    %28 = vector.extract_strided_slice %6 {offsets = [4, 0], sizes = [1, 196], strides = [1, 1]} : vector<32x196xbf16> to vector<1x196xbf16>
    %c4 = arith.constant 4 : index
    %c0_19 = arith.constant 0 : index
    %c0_20 = arith.constant 0 : index
    %29 = vector.load %arg3[%c4, %c0_19, %c0_20] : memref<32x196x256xbf16, #tpu.memory_space<vmem>>, vector<1x196x256xbf16>
    %30 = vector.shape_cast %29 : vector<1x196x256xbf16> to vector<196x256xbf16>
    %cst_21 = arith.constant dense<0.000000e+00> : vector<1x256xf32>
    %31 = tpu.matmul %28, %30, %cst_21 {dimension_numbers = #tpu.dot_dimension_numbers<[1], [0], [0], [1], [0, 0, 1, 1], [], []>} : vector<1x196xbf16>, vector<196x256xbf16>, vector<1x256xf32> -> vector<1x256xf32>
    %32 = arith.addf %27, %31 : vector<1x256xf32>
    %33 = vector.extract_strided_slice %6 {offsets = [5, 0], sizes = [1, 196], strides = [1, 1]} : vector<32x196xbf16> to vector<1x196xbf16>
    %c5 = arith.constant 5 : index
    %c0_22 = arith.constant 0 : index
    %c0_23 = arith.constant 0 : index
    %34 = vector.load %arg3[%c5, %c0_22, %c0_23] : memref<32x196x256xbf16, #tpu.memory_space<vmem>>, vector<1x196x256xbf16>
    %35 = vector.shape_cast %34 : vector<1x196x256xbf16> to vector<196x256xbf16>
    %cst_24 = arith.constant dense<0.000000e+00> : vector<1x256xf32>
    %36 = tpu.matmul %33, %35, %cst_24 {dimension_numbers = #tpu.dot_dimension_numbers<[1], [0], [0], [1], [0, 0, 1, 1], [], []>} : vector<1x196xbf16>, vector<196x256xbf16>, vector<1x256xf32> -> vector<1x256xf32>
    %37 = arith.addf %32, %36 : vector<1x256xf32>
    %38 = vector.extract_strided_slice %6 {offsets = [6, 0], sizes = [1, 196], strides = [1, 1]} : vector<32x196xbf16> to vector<1x196xbf16>
    %c6 = arith.constant 6 : index
    %c0_25 = arith.constant 0 : index
    %c0_26 = arith.constant 0 : index
    %39 = vector.load %arg3[%c6, %c0_25, %c0_26] : memref<32x196x256xbf16, #tpu.memory_space<vmem>>, vector<1x196x256xbf16>
    %40 = vector.shape_cast %39 : vector<1x196x256xbf16> to vector<196x256xbf16>
    %cst_27 = arith.constant dense<0.000000e+00> : vector<1x256xf32>
    %41 = tpu.matmul %38, %40, %cst_27 {dimension_numbers = #tpu.dot_dimension_numbers<[1], [0], [0], [1], [0, 0, 1, 1], [], []>} : vector<1x196xbf16>, vector<196x256xbf16>, vector<1x256xf32> -> vector<1x256xf32>
    %42 = arith.addf %37, %41 : vector<1x256xf32>
    %43 = vector.extract_strided_slice %6 {offsets = [7, 0], sizes = [1, 196], strides = [1, 1]} : vector<32x196xbf16> to vector<1x196xbf16>
    %c7 = arith.constant 7 : index
    %c0_28 = arith.constant 0 : index
    %c0_29 = arith.constant 0 : index
    %44 = vector.load %arg3[%c7, %c0_28, %c0_29] : memref<32x196x256xbf16, #tpu.memory_space<vmem>>, vector<1x196x256xbf16>
    %45 = vector.shape_cast %44 : vector<1x196x256xbf16> to vector<196x256xbf16>
    %cst_30 = arith.constant dense<0.000000e+00> : vector<1x256xf32>
    %46 = tpu.matmul %43, %45, %cst_30 {dimension_numbers = #tpu.dot_dimension_numbers<[1], [0], [0], [1], [0, 0, 1, 1], [], []>} : vector<1x196xbf16>, vector<196x256xbf16>, vector<1x256xf32> -> vector<1x256xf32>
    %47 = arith.addf %42, %46 : vector<1x256xf32>
    %48 = vector.extract_strided_slice %6 {offsets = [8, 0], sizes = [1, 196], strides = [1, 1]} : vector<32x196xbf16> to vector<1x196xbf16>
    %c8 = arith.constant 8 : index
    %c0_31 = arith.constant 0 : index
    %c0_32 = arith.constant 0 : index
    %49 = vector.load %arg3[%c8, %c0_31, %c0_32] : memref<32x196x256xbf16, #tpu.memory_space<vmem>>, vector<1x196x256xbf16>
    %50 = vector.shape_cast %49 : vector<1x196x256xbf16> to vector<196x256xbf16>
    %cst_33 = arith.constant dense<0.000000e+00> : vector<1x256xf32>
    %51 = tpu.matmul %48, %50, %cst_33 {dimension_numbers = #tpu.dot_dimension_numbers<[1], [0], [0], [1], [0, 0, 1, 1], [], []>} : vector<1x196xbf16>, vector<196x256xbf16>, vector<1x256xf32> -> vector<1x256xf32>
    %52 = arith.addf %47, %51 : vector<1x256xf32>
    %53 = vector.extract_strided_slice %6 {offsets = [9, 0], sizes = [1, 196], strides = [1, 1]} : vector<32x196xbf16> to vector<1x196xbf16>
    %c9 = arith.constant 9 : index
    %c0_34 = arith.constant 0 : index
    %c0_35 = arith.constant 0 : index
    %54 = vector.load %arg3[%c9, %c0_34, %c0_35] : memref<32x196x256xbf16, #tpu.memory_space<vmem>>, vector<1x196x256xbf16>
    %55 = vector.shape_cast %54 : vector<1x196x256xbf16> to vector<196x256xbf16>
    %cst_36 = arith.constant dense<0.000000e+00> : vector<1x256xf32>
    %56 = tpu.matmul %53, %55, %cst_36 {dimension_numbers = #tpu.dot_dimension_numbers<[1], [0], [0], [1], [0, 0, 1, 1], [], []>} : vector<1x196xbf16>, vector<196x256xbf16>, vector<1x256xf32> -> vector<1x256xf32>
    %57 = arith.addf %52, %56 : vector<1x256xf32>
    %58 = vector.extract_strided_slice %6 {offsets = [10, 0], sizes = [1, 196], strides = [1, 1]} : vector<32x196xbf16> to vector<1x196xbf16>
    %c10 = arith.constant 10 : index
    %c0_37 = arith.constant 0 : index
    %c0_38 = arith.constant 0 : index
    %59 = vector.load %arg3[%c10, %c0_37, %c0_38] : memref<32x196x256xbf16, #tpu.memory_space<vmem>>, vector<1x196x256xbf16>
    %60 = vector.shape_cast %59 : vector<1x196x256xbf16> to vector<196x256xbf16>
    %cst_39 = arith.constant dense<0.000000e+00> : vector<1x256xf32>
    %61 = tpu.matmul %58, %60, %cst_39 {dimension_numbers = #tpu.dot_dimension_numbers<[1], [0], [0], [1], [0, 0, 1, 1], [], []>} : vector<1x196xbf16>, vector<196x256xbf16>, vector<1x256xf32> -> vector<1x256xf32>
    %62 = arith.addf %57, %61 : vector<1x256xf32>
    %63 = vector.extract_strided_slice %6 {offsets = [11, 0], sizes = [1, 196], strides = [1, 1]} : vector<32x196xbf16> to vector<1x196xbf16>
    %c11 = arith.constant 11 : index
    %c0_40 = arith.constant 0 : index
    %c0_41 = arith.constant 0 : index
    %64 = vector.load %arg3[%c11, %c0_40, %c0_41] : memref<32x196x256xbf16, #tpu.memory_space<vmem>>, vector<1x196x256xbf16>
    %65 = vector.shape_cast %64 : vector<1x196x256xbf16> to vector<196x256xbf16>
    %cst_42 = arith.constant dense<0.000000e+00> : vector<1x256xf32>
    %66 = tpu.matmul %63, %65, %cst_42 {dimension_numbers = #tpu.dot_dimension_numbers<[1], [0], [0], [1], [0, 0, 1, 1], [], []>} : vector<1x196xbf16>, vector<196x256xbf16>, vector<1x256xf32> -> vector<1x256xf32>
    %67 = arith.addf %62, %66 : vector<1x256xf32>
    %68 = vector.extract_strided_slice %6 {offsets = [12, 0], sizes = [1, 196], strides = [1, 1]} : vector<32x196xbf16> to vector<1x196xbf16>
    %c12 = arith.constant 12 : index
    %c0_43 = arith.constant 0 : index
    %c0_44 = arith.constant 0 : index
    %69 = vector.load %arg3[%c12, %c0_43, %c0_44] : memref<32x196x256xbf16, #tpu.memory_space<vmem>>, vector<1x196x256xbf16>
    %70 = vector.shape_cast %69 : vector<1x196x256xbf16> to vector<196x256xbf16>
    %cst_45 = arith.constant dense<0.000000e+00> : vector<1x256xf32>
    %71 = tpu.matmul %68, %70, %cst_45 {dimension_numbers = #tpu.dot_dimension_numbers<[1], [0], [0], [1], [0, 0, 1, 1], [], []>} : vector<1x196xbf16>, vector<196x256xbf16>, vector<1x256xf32> -> vector<1x256xf32>
    %72 = arith.addf %67, %71 : vector<1x256xf32>
    %73 = vector.extract_strided_slice %6 {offsets = [13, 0], sizes = [1, 196], strides = [1, 1]} : vector<32x196xbf16> to vector<1x196xbf16>
    %c13 = arith.constant 13 : index
    %c0_46 = arith.constant 0 : index
    %c0_47 = arith.constant 0 : index
    %74 = vector.load %arg3[%c13, %c0_46, %c0_47] : memref<32x196x256xbf16, #tpu.memory_space<vmem>>, vector<1x196x256xbf16>
    %75 = vector.shape_cast %74 : vector<1x196x256xbf16> to vector<196x256xbf16>
    %cst_48 = arith.constant dense<0.000000e+00> : vector<1x256xf32>
    %76 = tpu.matmul %73, %75, %cst_48 {dimension_numbers = #tpu.dot_dimension_numbers<[1], [0], [0], [1], [0, 0, 1, 1], [], []>} : vector<1x196xbf16>, vector<196x256xbf16>, vector<1x256xf32> -> vector<1x256xf32>
    %77 = arith.addf %72, %76 : vector<1x256xf32>
    %78 = vector.extract_strided_slice %6 {offsets = [14, 0], sizes = [1, 196], strides = [1, 1]} : vector<32x196xbf16> to vector<1x196xbf16>
    %c14 = arith.constant 14 : index
    %c0_49 = arith.constant 0 : index
    %c0_50 = arith.constant 0 : index
    %79 = vector.load %arg3[%c14, %c0_49, %c0_50] : memref<32x196x256xbf16, #tpu.memory_space<vmem>>, vector<1x196x256xbf16>
    %80 = vector.shape_cast %79 : vector<1x196x256xbf16> to vector<196x256xbf16>
    %cst_51 = arith.constant dense<0.000000e+00> : vector<1x256xf32>
    %81 = tpu.matmul %78, %80, %cst_51 {dimension_numbers = #tpu.dot_dimension_numbers<[1], [0], [0], [1], [0, 0, 1, 1], [], []>} : vector<1x196xbf16>, vector<196x256xbf16>, vector<1x256xf32> -> vector<1x256xf32>
    %82 = arith.addf %77, %81 : vector<1x256xf32>
    %83 = vector.extract_strided_slice %6 {offsets = [15, 0], sizes = [1, 196], strides = [1, 1]} : vector<32x196xbf16> to vector<1x196xbf16>
    %c15 = arith.constant 15 : index
    %c0_52 = arith.constant 0 : index
    %c0_53 = arith.constant 0 : index
    %84 = vector.load %arg3[%c15, %c0_52, %c0_53] : memref<32x196x256xbf16, #tpu.memory_space<vmem>>, vector<1x196x256xbf16>
    %85 = vector.shape_cast %84 : vector<1x196x256xbf16> to vector<196x256xbf16>
    %cst_54 = arith.constant dense<0.000000e+00> : vector<1x256xf32>
    %86 = tpu.matmul %83, %85, %cst_54 {dimension_numbers = #tpu.dot_dimension_numbers<[1], [0], [0], [1], [0, 0, 1, 1], [], []>} : vector<1x196xbf16>, vector<196x256xbf16>, vector<1x256xf32> -> vector<1x256xf32>
    %87 = arith.addf %82, %86 : vector<1x256xf32>
    %88 = vector.extract_strided_slice %6 {offsets = [16, 0], sizes = [1, 196], strides = [1, 1]} : vector<32x196xbf16> to vector<1x196xbf16>
    %c16 = arith.constant 16 : index
    %c0_55 = arith.constant 0 : index
    %c0_56 = arith.constant 0 : index
    %89 = vector.load %arg3[%c16, %c0_55, %c0_56] : memref<32x196x256xbf16, #tpu.memory_space<vmem>>, vector<1x196x256xbf16>
    %90 = vector.shape_cast %89 : vector<1x196x256xbf16> to vector<196x256xbf16>
    %cst_57 = arith.constant dense<0.000000e+00> : vector<1x256xf32>
    %91 = tpu.matmul %88, %90, %cst_57 {dimension_numbers = #tpu.dot_dimension_numbers<[1], [0], [0], [1], [0, 0, 1, 1], [], []>} : vector<1x196xbf16>, vector<196x256xbf16>, vector<1x256xf32> -> vector<1x256xf32>
    %92 = arith.addf %87, %91 : vector<1x256xf32>
    %93 = vector.extract_strided_slice %6 {offsets = [17, 0], sizes = [1, 196], strides = [1, 1]} : vector<32x196xbf16> to vector<1x196xbf16>
    %c17 = arith.constant 17 : index
    %c0_58 = arith.constant 0 : index
    %c0_59 = arith.constant 0 : index
    %94 = vector.load %arg3[%c17, %c0_58, %c0_59] : memref<32x196x256xbf16, #tpu.memory_space<vmem>>, vector<1x196x256xbf16>
    %95 = vector.shape_cast %94 : vector<1x196x256xbf16> to vector<196x256xbf16>
    %cst_60 = arith.constant dense<0.000000e+00> : vector<1x256xf32>
    %96 = tpu.matmul %93, %95, %cst_60 {dimension_numbers = #tpu.dot_dimension_numbers<[1], [0], [0], [1], [0, 0, 1, 1], [], []>} : vector<1x196xbf16>, vector<196x256xbf16>, vector<1x256xf32> -> vector<1x256xf32>
    %97 = arith.addf %92, %96 : vector<1x256xf32>
    %98 = vector.extract_strided_slice %6 {offsets = [18, 0], sizes = [1, 196], strides = [1, 1]} : vector<32x196xbf16> to vector<1x196xbf16>
    %c18 = arith.constant 18 : index
    %c0_61 = arith.constant 0 : index
    %c0_62 = arith.constant 0 : index
    %99 = vector.load %arg3[%c18, %c0_61, %c0_62] : memref<32x196x256xbf16, #tpu.memory_space<vmem>>, vector<1x196x256xbf16>
    %100 = vector.shape_cast %99 : vector<1x196x256xbf16> to vector<196x256xbf16>
    %cst_63 = arith.constant dense<0.000000e+00> : vector<1x256xf32>
    %101 = tpu.matmul %98, %100, %cst_63 {dimension_numbers = #tpu.dot_dimension_numbers<[1], [0], [0], [1], [0, 0, 1, 1], [], []>} : vector<1x196xbf16>, vector<196x256xbf16>, vector<1x256xf32> -> vector<1x256xf32>
    %102 = arith.addf %97, %101 : vector<1x256xf32>
    %103 = vector.extract_strided_slice %6 {offsets = [19, 0], sizes = [1, 196], strides = [1, 1]} : vector<32x196xbf16> to vector<1x196xbf16>
    %c19 = arith.constant 19 : index
    %c0_64 = arith.constant 0 : index
    %c0_65 = arith.constant 0 : index
    %104 = vector.load %arg3[%c19, %c0_64, %c0_65] : memref<32x196x256xbf16, #tpu.memory_space<vmem>>, vector<1x196x256xbf16>
    %105 = vector.shape_cast %104 : vector<1x196x256xbf16> to vector<196x256xbf16>
    %cst_66 = arith.constant dense<0.000000e+00> : vector<1x256xf32>
    %106 = tpu.matmul %103, %105, %cst_66 {dimension_numbers = #tpu.dot_dimension_numbers<[1], [0], [0], [1], [0, 0, 1, 1], [], []>} : vector<1x196xbf16>, vector<196x256xbf16>, vector<1x256xf32> -> vector<1x256xf32>
    %107 = arith.addf %102, %106 : vector<1x256xf32>
    %108 = vector.extract_strided_slice %6 {offsets = [20, 0], sizes = [1, 196], strides = [1, 1]} : vector<32x196xbf16> to vector<1x196xbf16>
    %c20 = arith.constant 20 : index
    %c0_67 = arith.constant 0 : index
    %c0_68 = arith.constant 0 : index
    %109 = vector.load %arg3[%c20, %c0_67, %c0_68] : memref<32x196x256xbf16, #tpu.memory_space<vmem>>, vector<1x196x256xbf16>
    %110 = vector.shape_cast %109 : vector<1x196x256xbf16> to vector<196x256xbf16>
    %cst_69 = arith.constant dense<0.000000e+00> : vector<1x256xf32>
    %111 = tpu.matmul %108, %110, %cst_69 {dimension_numbers = #tpu.dot_dimension_numbers<[1], [0], [0], [1], [0, 0, 1, 1], [], []>} : vector<1x196xbf16>, vector<196x256xbf16>, vector<1x256xf32> -> vector<1x256xf32>
    %112 = arith.addf %107, %111 : vector<1x256xf32>
    %113 = vector.extract_strided_slice %6 {offsets = [21, 0], sizes = [1, 196], strides = [1, 1]} : vector<32x196xbf16> to vector<1x196xbf16>
    %c21 = arith.constant 21 : index
    %c0_70 = arith.constant 0 : index
    %c0_71 = arith.constant 0 : index
    %114 = vector.load %arg3[%c21, %c0_70, %c0_71] : memref<32x196x256xbf16, #tpu.memory_space<vmem>>, vector<1x196x256xbf16>
    %115 = vector.shape_cast %114 : vector<1x196x256xbf16> to vector<196x256xbf16>
    %cst_72 = arith.constant dense<0.000000e+00> : vector<1x256xf32>
    %116 = tpu.matmul %113, %115, %cst_72 {dimension_numbers = #tpu.dot_dimension_numbers<[1], [0], [0], [1], [0, 0, 1, 1], [], []>} : vector<1x196xbf16>, vector<196x256xbf16>, vector<1x256xf32> -> vector<1x256xf32>
    %117 = arith.addf %112, %116 : vector<1x256xf32>
    %118 = vector.extract_strided_slice %6 {offsets = [22, 0], sizes = [1, 196], strides = [1, 1]} : vector<32x196xbf16> to vector<1x196xbf16>
    %c22 = arith.constant 22 : index
    %c0_73 = arith.constant 0 : index
    %c0_74 = arith.constant 0 : index
    %119 = vector.load %arg3[%c22, %c0_73, %c0_74] : memref<32x196x256xbf16, #tpu.memory_space<vmem>>, vector<1x196x256xbf16>
    %120 = vector.shape_cast %119 : vector<1x196x256xbf16> to vector<196x256xbf16>
    %cst_75 = arith.constant dense<0.000000e+00> : vector<1x256xf32>
    %121 = tpu.matmul %118, %120, %cst_75 {dimension_numbers = #tpu.dot_dimension_numbers<[1], [0], [0], [1], [0, 0, 1, 1], [], []>} : vector<1x196xbf16>, vector<196x256xbf16>, vector<1x256xf32> -> vector<1x256xf32>
    %122 = arith.addf %117, %121 : vector<1x256xf32>
    %123 = vector.extract_strided_slice %6 {offsets = [23, 0], sizes = [1, 196], strides = [1, 1]} : vector<32x196xbf16> to vector<1x196xbf16>
    %c23 = arith.constant 23 : index
    %c0_76 = arith.constant 0 : index
    %c0_77 = arith.constant 0 : index
    %124 = vector.load %arg3[%c23, %c0_76, %c0_77] : memref<32x196x256xbf16, #tpu.memory_space<vmem>>, vector<1x196x256xbf16>
    %125 = vector.shape_cast %124 : vector<1x196x256xbf16> to vector<196x256xbf16>
    %cst_78 = arith.constant dense<0.000000e+00> : vector<1x256xf32>
    %126 = tpu.matmul %123, %125, %cst_78 {dimension_numbers = #tpu.dot_dimension_numbers<[1], [0], [0], [1], [0, 0, 1, 1], [], []>} : vector<1x196xbf16>, vector<196x256xbf16>, vector<1x256xf32> -> vector<1x256xf32>
    %127 = arith.addf %122, %126 : vector<1x256xf32>
    %128 = vector.extract_strided_slice %6 {offsets = [24, 0], sizes = [1, 196], strides = [1, 1]} : vector<32x196xbf16> to vector<1x196xbf16>
    %c24 = arith.constant 24 : index
    %c0_79 = arith.constant 0 : index
    %c0_80 = arith.constant 0 : index
    %129 = vector.load %arg3[%c24, %c0_79, %c0_80] : memref<32x196x256xbf16, #tpu.memory_space<vmem>>, vector<1x196x256xbf16>
    %130 = vector.shape_cast %129 : vector<1x196x256xbf16> to vector<196x256xbf16>
    %cst_81 = arith.constant dense<0.000000e+00> : vector<1x256xf32>
    %131 = tpu.matmul %128, %130, %cst_81 {dimension_numbers = #tpu.dot_dimension_numbers<[1], [0], [0], [1], [0, 0, 1, 1], [], []>} : vector<1x196xbf16>, vector<196x256xbf16>, vector<1x256xf32> -> vector<1x256xf32>
    %132 = arith.addf %127, %131 : vector<1x256xf32>
    %133 = vector.extract_strided_slice %6 {offsets = [25, 0], sizes = [1, 196], strides = [1, 1]} : vector<32x196xbf16> to vector<1x196xbf16>
    %c25 = arith.constant 25 : index
    %c0_82 = arith.constant 0 : index
    %c0_83 = arith.constant 0 : index
    %134 = vector.load %arg3[%c25, %c0_82, %c0_83] : memref<32x196x256xbf16, #tpu.memory_space<vmem>>, vector<1x196x256xbf16>
    %135 = vector.shape_cast %134 : vector<1x196x256xbf16> to vector<196x256xbf16>
    %cst_84 = arith.constant dense<0.000000e+00> : vector<1x256xf32>
    %136 = tpu.matmul %133, %135, %cst_84 {dimension_numbers = #tpu.dot_dimension_numbers<[1], [0], [0], [1], [0, 0, 1, 1], [], []>} : vector<1x196xbf16>, vector<196x256xbf16>, vector<1x256xf32> -> vector<1x256xf32>
    %137 = arith.addf %132, %136 : vector<1x256xf32>
    %138 = vector.extract_strided_slice %6 {offsets = [26, 0], sizes = [1, 196], strides = [1, 1]} : vector<32x196xbf16> to vector<1x196xbf16>
    %c26 = arith.constant 26 : index
    %c0_85 = arith.constant 0 : index
    %c0_86 = arith.constant 0 : index
    %139 = vector.load %arg3[%c26, %c0_85, %c0_86] : memref<32x196x256xbf16, #tpu.memory_space<vmem>>, vector<1x196x256xbf16>
    %140 = vector.shape_cast %139 : vector<1x196x256xbf16> to vector<196x256xbf16>
    %cst_87 = arith.constant dense<0.000000e+00> : vector<1x256xf32>
    %141 = tpu.matmul %138, %140, %cst_87 {dimension_numbers = #tpu.dot_dimension_numbers<[1], [0], [0], [1], [0, 0, 1, 1], [], []>} : vector<1x196xbf16>, vector<196x256xbf16>, vector<1x256xf32> -> vector<1x256xf32>
    %142 = arith.addf %137, %141 : vector<1x256xf32>
    %143 = vector.extract_strided_slice %6 {offsets = [27, 0], sizes = [1, 196], strides = [1, 1]} : vector<32x196xbf16> to vector<1x196xbf16>
    %c27 = arith.constant 27 : index
    %c0_88 = arith.constant 0 : index
    %c0_89 = arith.constant 0 : index
    %144 = vector.load %arg3[%c27, %c0_88, %c0_89] : memref<32x196x256xbf16, #tpu.memory_space<vmem>>, vector<1x196x256xbf16>
    %145 = vector.shape_cast %144 : vector<1x196x256xbf16> to vector<196x256xbf16>
    %cst_90 = arith.constant dense<0.000000e+00> : vector<1x256xf32>
    %146 = tpu.matmul %143, %145, %cst_90 {dimension_numbers = #tpu.dot_dimension_numbers<[1], [0], [0], [1], [0, 0, 1, 1], [], []>} : vector<1x196xbf16>, vector<196x256xbf16>, vector<1x256xf32> -> vector<1x256xf32>
    %147 = arith.addf %142, %146 : vector<1x256xf32>
    %148 = vector.extract_strided_slice %6 {offsets = [28, 0], sizes = [1, 196], strides = [1, 1]} : vector<32x196xbf16> to vector<1x196xbf16>
    %c28 = arith.constant 28 : index
    %c0_91 = arith.constant 0 : index
    %c0_92 = arith.constant 0 : index
    %149 = vector.load %arg3[%c28, %c0_91, %c0_92] : memref<32x196x256xbf16, #tpu.memory_space<vmem>>, vector<1x196x256xbf16>
    %150 = vector.shape_cast %149 : vector<1x196x256xbf16> to vector<196x256xbf16>
    %cst_93 = arith.constant dense<0.000000e+00> : vector<1x256xf32>
    %151 = tpu.matmul %148, %150, %cst_93 {dimension_numbers = #tpu.dot_dimension_numbers<[1], [0], [0], [1], [0, 0, 1, 1], [], []>} : vector<1x196xbf16>, vector<196x256xbf16>, vector<1x256xf32> -> vector<1x256xf32>
    %152 = arith.addf %147, %151 : vector<1x256xf32>
    %153 = vector.extract_strided_slice %6 {offsets = [29, 0], sizes = [1, 196], strides = [1, 1]} : vector<32x196xbf16> to vector<1x196xbf16>
    %c29 = arith.constant 29 : index
    %c0_94 = arith.constant 0 : index
    %c0_95 = arith.constant 0 : index
    %154 = vector.load %arg3[%c29, %c0_94, %c0_95] : memref<32x196x256xbf16, #tpu.memory_space<vmem>>, vector<1x196x256xbf16>
    %155 = vector.shape_cast %154 : vector<1x196x256xbf16> to vector<196x256xbf16>
    %cst_96 = arith.constant dense<0.000000e+00> : vector<1x256xf32>
    %156 = tpu.matmul %153, %155, %cst_96 {dimension_numbers = #tpu.dot_dimension_numbers<[1], [0], [0], [1], [0, 0, 1, 1], [], []>} : vector<1x196xbf16>, vector<196x256xbf16>, vector<1x256xf32> -> vector<1x256xf32>
    %157 = arith.addf %152, %156 : vector<1x256xf32>
    %158 = vector.extract_strided_slice %6 {offsets = [30, 0], sizes = [1, 196], strides = [1, 1]} : vector<32x196xbf16> to vector<1x196xbf16>
    %c30 = arith.constant 30 : index
    %c0_97 = arith.constant 0 : index
    %c0_98 = arith.constant 0 : index
    %159 = vector.load %arg3[%c30, %c0_97, %c0_98] : memref<32x196x256xbf16, #tpu.memory_space<vmem>>, vector<1x196x256xbf16>
    %160 = vector.shape_cast %159 : vector<1x196x256xbf16> to vector<196x256xbf16>
    %cst_99 = arith.constant dense<0.000000e+00> : vector<1x256xf32>
    %161 = tpu.matmul %158, %160, %cst_99 {dimension_numbers = #tpu.dot_dimension_numbers<[1], [0], [0], [1], [0, 0, 1, 1], [], []>} : vector<1x196xbf16>, vector<196x256xbf16>, vector<1x256xf32> -> vector<1x256xf32>
    %162 = arith.addf %157, %161 : vector<1x256xf32>
    %163 = vector.extract_strided_slice %6 {offsets = [31, 0], sizes = [1, 196], strides = [1, 1]} : vector<32x196xbf16> to vector<1x196xbf16>
    %c31 = arith.constant 31 : index
    %c0_100 = arith.constant 0 : index
    %c0_101 = arith.constant 0 : index
    %164 = vector.load %arg3[%c31, %c0_100, %c0_101] : memref<32x196x256xbf16, #tpu.memory_space<vmem>>, vector<1x196x256xbf16>
    %165 = vector.shape_cast %164 : vector<1x196x256xbf16> to vector<196x256xbf16>
    %cst_102 = arith.constant dense<0.000000e+00> : vector<1x256xf32>
    %166 = tpu.matmul %163, %165, %cst_102 {dimension_numbers = #tpu.dot_dimension_numbers<[1], [0], [0], [1], [0, 0, 1, 1], [], []>} : vector<1x196xbf16>, vector<196x256xbf16>, vector<1x256xf32> -> vector<1x256xf32>
    %167 = arith.addf %162, %166 : vector<1x256xf32>
    %cst_103 = arith.constant 0.000000e+00 : f32
    %168 = vector.broadcast %cst_103 : f32 to vector<1x256xf32>
    %169 = arith.maximumf %167, %168 : vector<1x256xf32>
    %c0_104 = arith.constant 0 : index
    %c0_105 = arith.constant 0 : index
    %170 = vector.load %arg4[%c0_104, %c0_105] : memref<1x256xf32, #tpu.memory_space<vmem>>, vector<1x256xf32>
    %171 = arith.mulf %169, %170 : vector<1x256xf32>
    %cst_106 = arith.constant dense<0.000000e+00> : vector<1xf32>
    %172 = vector.multi_reduction <add>, %171, %cst_106 [1] : vector<1x256xf32> to vector<1xf32>
    %173 = vector.shape_cast %172 : vector<1xf32> to vector<1x1xf32>
    %174 = math.tanh %173 : vector<1x1xf32>
    %c0_107 = arith.constant 0 : index
    %c0_108 = arith.constant 0 : index
    %c0_109 = arith.constant 0 : index
    %175 = vector.load %arg5[%c0_107, %c0_108, %c0_109] : memref<1x1x1xf32, #tpu.memory_space<vmem>>, vector<1x1x1xf32>
    %176 = vector.shape_cast %175 : vector<1x1x1xf32> to vector<1x1xf32>
    %177 = vector.shape_cast %174 : vector<1x1xf32> to vector<1x1x1xf32>
    tpu.vector_store %arg5[%c0_107, %c0_108, %c0_109], %177 {strides = array<i32>} : memref<1x1x1xf32, #tpu.memory_space<vmem>>, vector<1x1x1xf32>,
    return
  }
  func.func @transform_0(%arg0: i32) -> (i32, i32, i32) {
    %c0_i32 = arith.constant 0 : i32
    %c0_i32_0 = arith.constant 0 : i32
    %c0_i32_1 = arith.constant 0 : i32
    return %arg0, %c0_i32, %c0_i32_0 : i32, i32, i32
  }
  func.func @transform_1(%arg0: i32) -> (i32, i32) {
    %c0_i32 = arith.constant 0 : i32
    %c0_i32_0 = arith.constant 0 : i32
    %c0_i32_1 = arith.constant 0 : i32
    return %c0_i32, %c0_i32_0 : i32, i32
  }
  func.func @transform_2(%arg0: i32) -> (i32, i32, i32) {
    %c0_i32 = arith.constant 0 : i32
    %c0_i32_0 = arith.constant 0 : i32
    %c0_i32_1 = arith.constant 0 : i32
    %c0_i32_2 = arith.constant 0 : i32
    return %c0_i32, %c0_i32_0, %c0_i32_1 : i32, i32, i32
  }
  func.func @transform_3(%arg0: i32) -> (i32, i32) {
    %c0_i32 = arith.constant 0 : i32
    %c0_i32_0 = arith.constant 0 : i32
    %c0_i32_1 = arith.constant 0 : i32
    return %c0_i32, %c0_i32_0 : i32, i32
  }
  func.func @transform_4(%arg0: i32) -> (i32, i32, i32) {
    %c0_i32 = arith.constant 0 : i32
    %c0_i32_0 = arith.constant 0 : i32
    %c0_i32_1 = arith.constant 0 : i32
    return %arg0, %c0_i32, %c0_i32_0 : i32, i32, i32
  }
}

</mosaic_0001>

<llo_original>
// kernel: dense_value_head.1
$region0: #{dense_value_head.1}
  #allocation0 [shape = 'u32[]', space=smem, size = 0x4, offset = 0x4, fixed_abs, tag = 'smem constant byte address 0x4 - core index']
  #allocation1 [shape = 'u32[72,128]{1,0:T(1,128)}', space=vmem, size = 0x9000, scoped, tag = 'internal scratch']
  %s0 = inlined_call_operand.vmem [shape: f32[2,36,196], index: 0, kind: input, shape index: {}]
  %s1 = inlined_call_operand.vmem [shape: f32[32,36], index: 1, kind: input, shape index: {}]
  %s2 = inlined_call_operand.vmem [shape: bf16[32,196,256], index: 2, kind: input, shape index: {}]
  %s3 = inlined_call_operand.vmem [shape: f32[1,256], index: 3, kind: input, shape index: {}]
  %s4 = inlined_call_operand.vmem [shape: f32[2,1,1], index: 4, kind: output, shape index: {}]
  %s5 = sld [smem:[#allocation0]]
  $region49: #{dense_value_head.1} parent=0
    _
  %s7 = ssub.s32 1, %s5
  %s8 = scalar_select 0, %s7, %s5
  loop: start=0, step=1, limit=4
  $region2: #{dense_value_head.1} parent=0 // loop_pre_header
    _
  $region3: #{dense_value_head.1} parent=0 // loop_header
    %s10 = sphi 0, %s14
    %p11 = scmp.ge.s32.totalorder %s10, 4
    %s20 = sphi 0, %s22
    %s23 = sphi 0, %s20
    %s24 = sphi 0, %s23
    %s40 = sphi 0, %s24
    %s44 = sphi 0, %s44
    %s46 = sphi 0, %s44
    %s47 = sphi 0, %s46
    %s61 = sphi 0, %s47
    %s65 = sphi 0, %s65
    %s67 = sphi 0, %s65
    %s68 = sphi 0, %s67
    %s82 = sphi 0, %s68
    %s86 = sphi 0, %s86
    %s88 = sphi 0, %s86
    %s89 = sphi 0, %s88
    %s103 = sphi 0, %s89
    %s109 = sphi 0, %s111
    %s112 = sphi 0, %s109
    %s113 = sphi 0, %s112
    %s129 = sphi 0, %s113
  $region4: #{dense_value_head.1} parent=0 // loop_header_branch
    %13 = sbr.rel (%p11) target = $region8
  $region5: #{dense_value_head.1} parent=0 // loop_body
    %s15 = ssub.s32 %s10, 1
    %s16 = ssub.s32 %s10, 2
    %s17 = sadd.s32 %s10, 1
    %s18 = ssub.s32 %s10, %s17
    %p19 = scmp.eq.s32.totalorder %s18, 0
    %s21 = sadd.s32 %s20, 1
    %s22 = scalar_select %p19, %s20, %s21
    %p25 = pneg %p19
    %p26 = scmp.eq.s32.totalorder %s10, 1
    %p27 = por %p25, %p26
    %p28 = scmp.ne.s32.totalorder %s20, %s23
    %p29 = scmp.eq.s32.totalorder %s10, 0
    %p30 = por %p28, %p29
    %p31 = scmp.ne.s32.totalorder %s20, %s23
    %p32 = scmp.eq.s32.totalorder %s15, 1
    %p33 = por %p31, %p32
    %p34 = scmp.ne.s32.totalorder %s23, %s24
    %p35 = scmp.eq.s32.totalorder %s15, 0
    %p36 = por %p34, %p35
    %p37 = scmp.ne.s32.totalorder %s23, %s24
    %p38 = scmp.eq.s32.totalorder %s16, 1
    %p39 = por %p37, %p38
    %p41 = scmp.ne.s32.totalorder %s24, %s40
    %p42 = scmp.eq.s32.totalorder %s16, 0
    %p43 = por %p41, %p42
    %s45 = sadd.s32 %s44, 1
    %p48 = scmp.eq.s32.totalorder %s10, 1
    %p49 = scmp.ne.s32.totalorder %s44, %s46
    %p50 = scmp.eq.s32.totalorder %s10, 0
    %p51 = por %p49, %p50
    %p52 = scmp.ne.s32.totalorder %s44, %s46
    %p53 = scmp.eq.s32.totalorder %s15, 1
    %p54 = por %p52, %p53
    %p55 = scmp.ne.s32.totalorder %s46, %s47
    %p56 = scmp.eq.s32.totalorder %s15, 0
    %p57 = por %p55, %p56
    %p58 = scmp.ne.s32.totalorder %s46, %s47
    %p59 = scmp.eq.s32.totalorder %s16, 1
    %p60 = por %p58, %p59
    %p62 = scmp.ne.s32.totalorder %s47, %s61
    %p63 = scmp.eq.s32.totalorder %s16, 0
    %p64 = por %p62, %p63
    %s66 = sadd.s32 %s65, 1
    %p69 = scmp.eq.s32.totalorder %s10, 1
    %p70 = scmp.ne.s32.totalorder %s65, %s67
    %p71 = scmp.eq.s32.totalorder %s10, 0
    %p72 = por %p70, %p71
    %p73 = scmp.ne.s32.totalorder %s65, %s67
    %p74 = scmp.eq.s32.totalorder %s15, 1
    %p75 = por %p73, %p74
    %p76 = scmp.ne.s32.totalorder %s67, %s68
    %p77 = scmp.eq.s32.totalorder %s15, 0
    %p78 = por %p76, %p77
    %p79 = scmp.ne.s32.totalorder %s67, %s68
    %p80 = scmp.eq.s32.totalorder %s16, 1
    %p81 = por %p79, %p80
    %p83 = scmp.ne.s32.totalorder %s68, %s82
    %p84 = scmp.eq.s32.totalorder %s16, 0
    %p85 = por %p83, %p84
    %s87 = sadd.s32 %s86, 1
    %p90 = scmp.eq.s32.totalorder %s10, 1
    %p91 = scmp.ne.s32.totalorder %s86, %s88
    %p92 = scmp.eq.s32.totalorder %s10, 0
    %p93 = por %p91, %p92
    %p94 = scmp.ne.s32.totalorder %s86, %s88
    %p95 = scmp.eq.s32.totalorder %s15, 1
    %p96 = por %p94, %p95
    %p97 = scmp.ne.s32.totalorder %s88, %s89
    %p98 = scmp.eq.s32.totalorder %s15, 0
    %p99 = por %p97, %p98
    %p100 = scmp.ne.s32.totalorder %s88, %s89
    %p101 = scmp.eq.s32.totalorder %s16, 1
    %p102 = por %p100, %p101
    %p104 = scmp.ne.s32.totalorder %s89, %s103
    %p105 = scmp.eq.s32.totalorder %s16, 0
    %p106 = por %p104, %p105
    %s107 = ssub.s32 %s10, %s17
    %p108 = scmp.eq.s32.totalorder %s107, 0
    %s110 = sadd.s32 %s109, 1
    %s111 = scalar_select %p108, %s109, %s110
    %p114 = pneg %p108
    %p115 = scmp.eq.s32.totalorder %s10, 1
    %p116 = por %p114, %p115
    %p117 = scmp.ne.s32.totalorder %s109, %s112
    %p118 = scmp.eq.s32.totalorder %s10, 0
    %p119 = por %p117, %p118
    %p120 = scmp.ne.s32.totalorder %s109, %s112
    %p121 = scmp.eq.s32.totalorder %s15, 1
    %p122 = por %p120, %p121
    %p123 = scmp.ne.s32.totalorder %s112, %s113
    %p124 = scmp.eq.s32.totalorder %s15, 0
    %p125 = por %p123, %p124
    %p126 = scmp.ne.s32.totalorder %s112, %s113
    %p127 = scmp.eq.s32.totalorder %s16, 1
    %p128 = por %p126, %p127
    %p130 = scmp.ne.s32.totalorder %s113, %s129
    %p131 = scmp.eq.s32.totalorder %s16, 0
    %p132 = por %p130, %p131
    %p133 = scmp.le.s32.totalorder 1, %s10
    %p134 = scmp.lt.s32.totalorder %s10, 3
    %p135 = pnand %p133, %p134
    %p136 = pneg %p135
    // Predicated region
    $region9: #{dense_value_head.1} parent=5 // pred_check
      _
    $region10: #{dense_value_head.1} parent=5 // pred_check_branch
      %138 = sbr.rel (%p135) target = $region12
    $region11: #{dense_value_head.1} parent=5 // pred_region
      %s139 = ssub.s32 %s10, 1
      // Predicated region
      $region13: #{dense_value_head.1} parent=11 // pred_check
        %p140 = pneg %p57
      $region14: #{dense_value_head.1} parent=11 // pred_check_branch
        %142 = sbr.rel (%p140) target = $region16
      $region15: #{dense_value_head.1} parent=11 // pred_region
        _
      $region16: #{dense_value_head.1} parent=11 // pred_fallthru
        _
      // Predicated region
      $region17: #{dense_value_head.1} parent=11 // pred_check
        %p143 = pneg %p78
      $region18: #{dense_value_head.1} parent=11 // pred_check_branch
        %145 = sbr.rel (%p143) target = $region20
      $region19: #{dense_value_head.1} parent=11 // pred_region
        _
      $region20: #{dense_value_head.1} parent=11 // pred_fallthru
        _
      // Predicated region
      $region21: #{dense_value_head.1} parent=11 // pred_check
        %p146 = pneg %p99
      $region22: #{dense_value_head.1} parent=11 // pred_check_branch
        %148 = sbr.rel (%p146) target = $region24
      $region23: #{dense_value_head.1} parent=11 // pred_region
        _
      $region24: #{dense_value_head.1} parent=11 // pred_fallthru
        _
    $region12: #{dense_value_head.1} parent=5 // pred_fallthru
      _
    %p149 = scmp.lt.s32.totalorder %s10, 2
    // Predicated region
    $region25: #{dense_value_head.1} parent=5 // pred_check
      %p150 = pneg %p149
    $region26: #{dense_value_head.1} parent=5 // pred_check_branch
      %152 = sbr.rel (%p150) target = $region28
    $region27: #{dense_value_head.1} parent=5 // pred_region
      // Predicated region
      $region29: #{dense_value_head.1} parent=27 // pred_check
        %p153 = pneg %p30
      $region30: #{dense_value_head.1} parent=27 // pred_check_branch
        %155 = sbr.rel (%p153) target = $region32
      $region31: #{dense_value_head.1} parent=27 // pred_region
        %p156 = scmp.lt.s32.totalorder %s10, 1
        %s157 = scalar_select %p156, %s10, 1
        %s158 = smul.addr %s157, 10
        %s159 = smul.addr %s158, 8
        %s160 = scalar_lea.vmem %s0, %s159
      $region32: #{dense_value_head.1} parent=27 // pred_fallthru
        _
    $region28: #{dense_value_head.1} parent=5 // pred_fallthru
      _
    %p161 = scmp.le.s32.totalorder 1, %s10
    %p162 = scmp.lt.s32.totalorder %s10, 3
    %p163 = pnand %p161, %p162
    %p164 = pneg %p163
    // Predicated region
    $region33: #{dense_value_head.1} parent=5 // pred_check
      _
    $region34: #{dense_value_head.1} parent=5 // pred_check_branch
      %166 = sbr.rel (%p163) target = $region36
    $region35: #{dense_value_head.1} parent=5 // pred_region
      %s167 = ssub.s32 %s10, 1
      %p168 = scmp.lt.s32.totalorder %s15, 1
      %s169 = scalar_select %p168, %s15, 1
      %s170 = smul.addr %s169, 10
      %s171 = smul.addr %s170, 8
      %s172 = scalar_lea.vmem %s0, %s171
      %p173 = pneg %p36
      %p174 = pneg %p33
      %p175 = pneg %p57
      %p176 = pneg %p54
      %p177 = pneg %p78
      %p178 = pneg %p75
      %p179 = pneg %p99
      %p180 = pneg %p96
      %p181 = pneg %p125
      %p182 = pneg %p122
      %p183 = scmp.lt.s32.totalorder %s15, 1
      %s184 = scalar_select %p183, %s15, 1
      %s185 = scalar_lea.vmem %s4, %s184
      %p186 = scmp.lt.s32.totalorder %s15, 1
      %s187 = scalar_select %p186, %s15, 1
      %s188 = smul.addr %s187, 10
      %s189 = smul.addr %s188, 8
      %s190 = scalar_lea.vmem %s0, %s189
      %p191 = scmp.lt.s32.totalorder %s15, 1
      %s192 = scalar_select %p191, %s15, 1
      %s193 = scalar_lea.vmem %s4, %s192
      %v195 = vld [vmem:[%s1] sm:$0xff]
      %v196 = vld [vmem:[%s1 + $0x8] sm:$0xff]
      %v197 = vld [vmem:[%s1 + $0x10] sm:$0xff]
      %v198 = vld [vmem:[%s1 + $0x18] sm:$0xff]
      %v199 = vld [vmem:[%s190] sm:$0xff]
      %v200 = vld [vmem:[%s190 + $0x8] sm:$0xff]
      %v201 = vld [vmem:[%s190 + $0x10] sm:$0xff]
      %v202 = vld [vmem:[%s190 + $0x18] sm:$0xff]
      %v203 = vld [vmem:[%s190 + $0x20] sm:$0xff]
      %v204 = vld [vmem:[%s190 + $0x28] sm:$0xff]
      %v205 = vld [vmem:[%s190 + $0x30] sm:$0xff]
      %v206 = vld [vmem:[%s190 + $0x38] sm:$0xff]
      %v207 = vld [vmem:[%s190 + $0x40] sm:$0xf]
      %v208 = vld [vmem:[%s190 + $0x48] sm:$0xf]
      %vm209 = vcmask 293888
      %v211 = vsel %vm209, %v195, 0
      %v214 = vsel %vm209, %v196, 0
      %v217 = vsel %vm209, %v197, 0
      %v220 = vsel %vm209, %v198, 0
      %vm222 = vcmask 1043456
      %v224 = vsel %vm222, %v207, 0
      %v227 = vsel %vm222, %v208, 0
      %229 = vmatpush.msra.mxu0 0.0
      %230 = vmatpush.msra.mxu0 0.0
      %231 = vmatpush.msra.mxu0 0.0
      %232 = vmatpush.msra.mxu0 0.0
      %233 = vmatpush.msra.mxu0 0.0
      %234 = vmatpush.msra.mxu0 0.0
      %235 = vmatpush.msra.mxu0 0.0
      %236 = vmatpush.msra.mxu0 0.0
      %237 = vmatpush.msra.mxu0 0.0
      %238 = vmatpush.msra.mxu0 0.0
      %239 = vmatpush.msra.mxu0 0.0
      %240 = vmatpush.msra.mxu0 %v224
      %241 = vmatpush.msra.mxu0 %v205
      %242 = vmatpush.msra.mxu0 %v203
      %243 = vmatpush.msra.mxu0 %v201
      %244 = vmatpush.msra.mxu0 %v199
      %245 = vmatmul.f32.gmra.mxu0 %v211
      %v246 = vpop.f32.mrf.mxu0
      %v247 = vadd.f32 0.0, %v246
      %248 = vmatmul.f32.gmra.mxu0 %v214
      %v249 = vpop.f32.mrf.mxu0
      %v250 = vadd.f32 0.0, %v249
      %251 = vmatmul.f32.gmra.mxu0 %v217
      %v252 = vpop.f32.mrf.mxu0
      %v253 = vadd.f32 0.0, %v252
      %254 = vmatmul.f32.gmra.mxu0 %v220
      %v255 = vpop.f32.mrf.mxu0
      %v256 = vadd.f32 0.0, %v255
      %257 = vdwg.mxu0
      %258 = vmatpush.msra.mxu0 0.0
      %259 = vmatpush.msra.mxu0 0.0
      %260 = vmatpush.msra.mxu0 0.0
      %261 = vmatpush.msra.mxu0 0.0
      %262 = vmatpush.msra.mxu0 0.0
      %263 = vmatpush.msra.mxu0 0.0
      %264 = vmatpush.msra.mxu0 0.0
      %265 = vmatpush.msra.mxu0 0.0
      %266 = vmatpush.msra.mxu0 0.0
      %267 = vmatpush.msra.mxu0 0.0
      %268 = vmatpush.msra.mxu0 0.0
      %269 = vmatpush.msra.mxu0 %v227
      %270 = vmatpush.msra.mxu0 %v206
      %271 = vmatpush.msra.mxu0 %v204
      %272 = vmatpush.msra.mxu0 %v202
      %273 = vmatpush.msra.mxu0 %v200
      %274 = vmatmul.f32.gmra.mxu0 %v211
      %v275 = vpop.f32.mrf.mxu0
      %v276 = vadd.f32 0.0, %v275
      %277 = vmatmul.f32.gmra.mxu0 %v214
      %v278 = vpop.f32.mrf.mxu0
      %v279 = vadd.f32 0.0, %v278
      %280 = vmatmul.f32.gmra.mxu0 %v217
      %v281 = vpop.f32.mrf.mxu0
      %v282 = vadd.f32 0.0, %v281
      %283 = vmatmul.f32.gmra.mxu0 %v220
      %v284 = vpop.f32.mrf.mxu0
      %v285 = vadd.f32 0.0, %v284
      %286 = vdwg.mxu0
      %v287 = vmax.f32 %v247, 0.0
      %v288 = vmax.f32 %v276, 0.0
      %v289 = vmax.f32 %v250, 0.0
      %v290 = vmax.f32 %v279, 0.0
      %v291 = vmax.f32 %v253, 0.0
      %v292 = vmax.f32 %v282, 0.0
      %v293 = vmax.f32 %v256, 0.0
      %v294 = vmax.f32 %v285, 0.0
      %v295 = vpack.c.bf16 %v288, %v287
      %v296 = vpack.c.bf16 %v290, %v289
      %v297 = vpack.c.bf16 %v292, %v291
      %v298 = vpack.c.bf16 %v294, %v293
      %v299 = vld [vmem:[%s2] sm:$0xff]
      %v300 = vld [vmem:[%s2 + $0x8] sm:$0xff]
      %v301 = vld [vmem:[%s2 + $0x10] sm:$0xff]
      %v302 = vld [vmem:[%s2 + $0x18] sm:$0xff]
      %v303 = vld [vmem:[%s2 + $0x20] sm:$0xff]
      %v304 = vld [vmem:[%s2 + $0x28] sm:$0xff]
      %v305 = vld [vmem:[%s2 + $0x30] sm:$0xff]
      %v306 = vld [vmem:[%s2 + $0x38] sm:$0xff]
      %v307 = vld [vmem:[%s2 + $0x40] sm:$0xff]
      %v308 = vld [vmem:[%s2 + $0x48] sm:$0xff]
      %v309 = vld [vmem:[%s2 + $0x50] sm:$0xff]
      %v310 = vld [vmem:[%s2 + $0x58] sm:$0xff]
      %v311 = vld [vmem:[%s2 + $0x60] sm:$0xff]
      %v312 = vld [vmem:[%s2 + $0x68] sm:$0xff]
      %v313 = vld [vmem:[%s2 + $0x70] sm:$0xff]
      %v314 = vld [vmem:[%s2 + $0x78] sm:$0xff]
      %v315 = vld [vmem:[%s2 + $0x80] sm:$0xff]
      %v316 = vld [vmem:[%s2 + $0x88] sm:$0xff]
      %v317 = vld [vmem:[%s2 + $0x90] sm:$0xff]
      %v318 = vld [vmem:[%s2 + $0x98] sm:$0xff]
      %v319 = vld [vmem:[%s2 + $0xa0] sm:$0xff]
      %v320 = vld [vmem:[%s2 + $0xa8] sm:$0xff]
      %v321 = vld [vmem:[%s2 + $0xb0] sm:$0xff]
      %v322 = vld [vmem:[%s2 + $0xb8] sm:$0xff]
      %v323 = vld [vmem:[%s2 + $0xc0] sm:$0x33]
      %s324 = scalar_lea.vmem %s2, 200
      %v325 = vld [vmem:[%s324] sm:$0xff]
      %v326 = vld [vmem:[%s324 + $0x8] sm:$0xff]
      %v327 = vld [vmem:[%s324 + $0x10] sm:$0xff]
      %v328 = vld [vmem:[%s324 + $0x18] sm:$0xff]
      %v329 = vld [vmem:[%s324 + $0x20] sm:$0xff]
      %v330 = vld [vmem:[%s324 + $0x28] sm:$0xff]
      %v331 = vld [vmem:[%s324 + $0x30] sm:$0xff]
      %v332 = vld [vmem:[%s324 + $0x38] sm:$0xff]
      %v333 = vld [vmem:[%s324 + $0x40] sm:$0xff]
      %v334 = vld [vmem:[%s324 + $0x48] sm:$0xff]
      %v335 = vld [vmem:[%s324 + $0x50] sm:$0xff]
      %v336 = vld [vmem:[%s324 + $0x58] sm:$0xff]
      %v337 = vld [vmem:[%s324 + $0x60] sm:$0xff]
      %v338 = vld [vmem:[%s324 + $0x68] sm:$0xff]
      %v339 = vld [vmem:[%s324 + $0x70] sm:$0xff]
      %v340 = vld [vmem:[%s324 + $0x78] sm:$0xff]
      %v341 = vld [vmem:[%s324 + $0x80] sm:$0xff]
      %v342 = vld [vmem:[%s324 + $0x88] sm:$0xff]
      %v343 = vld [vmem:[%s324 + $0x90] sm:$0xff]
      %v344 = vld [vmem:[%s324 + $0x98] sm:$0xff]
      %v345 = vld [vmem:[%s324 + $0xa0] sm:$0xff]
      %v346 = vld [vmem:[%s324 + $0xa8] sm:$0xff]
      %v347 = vld [vmem:[%s324 + $0xb0] sm:$0xff]
      %v348 = vld [vmem:[%s324 + $0xb8] sm:$0xff]
      %v349 = vld [vmem:[%s324 + $0xc0] sm:$0x33]
      %v351 = vunpack.c.l.b16 %v295
      %v352 = vunpack.c.h.b16 %v295
      %v353 = vpack.c.b16 %v351, %v351
      %v354 = vpack.c.b16 %v352, %v352
      %v356 = vshrl.u32 %v353, 16
      %v359 = vshrl.u32 %v354, 16
      %v387 = vunpack.c.l.b16 %v325
      %v388 = vunpack.c.h.b16 %v325
      %v389 = vunpack.c.l.b16 %v326
      %v390 = vunpack.c.h.b16 %v326
      %v391 = vunpack.c.l.b16 %v327
      %v392 = vunpack.c.h.b16 %v327
      %v393 = vunpack.c.l.b16 %v328
      %v394 = vunpack.c.h.b16 %v328
      %v395 = vunpack.c.l.b16 %v329
      %v396 = vunpack.c.h.b16 %v329
      %v397 = vunpack.c.l.b16 %v330
      %v398 = vunpack.c.h.b16 %v330
      %v399 = vunpack.c.l.b16 %v331
      %v400 = vunpack.c.h.b16 %v331
      %v401 = vunpack.c.l.b16 %v332
      %v402 = vunpack.c.h.b16 %v332
      %v403 = vunpack.c.l.b16 %v333
      %v404 = vunpack.c.h.b16 %v333
      %v405 = vunpack.c.l.b16 %v334
      %v406 = vunpack.c.h.b16 %v334
      %v407 = vunpack.c.l.b16 %v335
      %v408 = vunpack.c.h.b16 %v335
      %v409 = vunpack.c.l.b16 %v336
      %v410 = vunpack.c.h.b16 %v336
      %v411 = vunpack.c.l.b16 %v337
      %v412 = vunpack.c.h.b16 %v337
      %v413 = vunpack.c.l.b16 %v338
      %v414 = vunpack.c.h.b16 %v338
      %v415 = vunpack.c.l.b16 %v339
      %v416 = vunpack.c.h.b16 %v339
      %v417 = vunpack.c.l.b16 %v340
      %v418 = vunpack.c.h.b16 %v340
      %v419 = vunpack.c.l.b16 %v341
      %v420 = vunpack.c.h.b16 %v341
      %v421 = vunpack.c.l.b16 %v342
      %v422 = vunpack.c.h.b16 %v342
      %v423 = vunpack.c.l.b16 %v343
      %v424 = vunpack.c.h.b16 %v343
      %v425 = vunpack.c.l.b16 %v344
      %v426 = vunpack.c.h.b16 %v344
      %v427 = vunpack.c.l.b16 %v345
      %v428 = vunpack.c.h.b16 %v345
      %v429 = vunpack.c.l.b16 %v346
      %v430 = vunpack.c.h.b16 %v346
      %v431 = vunpack.c.l.b16 %v347
      %v432 = vunpack.c.h.b16 %v347
      %v433 = vunpack.c.l.b16 %v348
      %v434 = vunpack.c.h.b16 %v348
      %v435 = vunpack.c.l.b16 %v349
      %v436 = vunpack.c.h.b16 %v349
      %v437 = vpack.c.b16 %v389, %v387
      %v438 = vpack.c.b16 %v390, %v388
      %v439 = vpack.c.b16 %v393, %v391
      %v440 = vpack.c.b16 %v394, %v392
      %v441 = vpack.c.b16 %v397, %v395
      %v442 = vpack.c.b16 %v398, %v396
      %v443 = vpack.c.b16 %v401, %v399
      %v444 = vpack.c.b16 %v402, %v400
      %v445 = vpack.c.b16 %v405, %v403
      %v446 = vpack.c.b16 %v406, %v404
      %v447 = vpack.c.b16 %v409, %v407
      %v448 = vpack.c.b16 %v410, %v408
      %v449 = vpack.c.b16 %v413, %v411
      %v450 = vpack.c.b16 %v414, %v412
      %v451 = vpack.c.b16 %v417, %v415
      %v452 = vpack.c.b16 %v418, %v416
      %v453 = vpack.c.b16 %v421, %v419
      %v454 = vpack.c.b16 %v422, %v420
      %v455 = vpack.c.b16 %v425, %v423
      %v456 = vpack.c.b16 %v426, %v424
      %v457 = vpack.c.b16 %v429, %v427
      %v458 = vpack.c.b16 %v430, %v428
      %v459 = vpack.c.b16 %v433, %v431
      %v460 = vpack.c.b16 %v434, %v432
      %v461 = vpack.c.b16 %v435, %v435
      %v462 = vpack.c.b16 %v436, %v436
      %vm487 = vcmask 556032
      %v489 = vsel %vm487, %v359, 0
      %vm491 = vcmask 1041408
      %v493 = vsel %vm491, %v461, 0
      %v496 = vsel %vm491, %v462, 0
      %498 = vmatpush.bf16.msra.mxu0 %v451
      %499 = vmatpush.bf16.msra.mxu0 %v449
      %500 = vmatpush.bf16.msra.mxu0 %v447
      %501 = vmatpush.bf16.msra.mxu0 %v445
      %502 = vmatpush.bf16.msra.mxu0 %v443
      %503 = vmatpush.bf16.msra.mxu0 %v441
      %504 = vmatpush.bf16.msra.mxu0 %v439
      %505 = vmatpush.bf16.msra.mxu0 %v437
      %506 = vmatmul.bf16.gmra.mxu0 %v356
      %v507 = vpop.f32.mrf.mxu0
      %v508 = vadd.f32 0.0, %v507
      %v509 = vpop.f32.mrf.mxu0
      %510 = vdwg.mxu0
      %511 = vmatpush.bf16.msra.mxu0 0
      %512 = vmatpush.bf16.msra.mxu0 0
      %513 = vmatpush.bf16.msra.mxu0 0
      %514 = vmatpush.bf16.msra.mxu0 %v493
      %515 = vmatpush.bf16.msra.mxu0 %v459
      %516 = vmatpush.bf16.msra.mxu0 %v457
      %517 = vmatpush.bf16.msra.mxu0 %v455
      %518 = vmatpush.bf16.msra.mxu0 %v453
      %519 = vmatmul.bf16.gmra.mxu0 %v489
      %v520 = vpop.f32.mrf.mxu0
      %v521 = vadd.f32 %v508, %v520
      %v522 = vpop.f32.mrf.mxu0
      %523 = vdwg.mxu0
      %524 = vmatpush.bf16.msra.mxu0 %v452
      %525 = vmatpush.bf16.msra.mxu0 %v450
      %526 = vmatpush.bf16.msra.mxu0 %v448
      %527 = vmatpush.bf16.msra.mxu0 %v446
      %528 = vmatpush.bf16.msra.mxu0 %v444
      %529 = vmatpush.bf16.msra.mxu0 %v442
      %530 = vmatpush.bf16.msra.mxu0 %v440
      %531 = vmatpush.bf16.msra.mxu0 %v438
      %532 = vmatmul.bf16.gmra.mxu0 %v356
      %v533 = vpop.f32.mrf.mxu0
      %v534 = vadd.f32 0.0, %v533
      %v535 = vpop.f32.mrf.mxu0
      %536 = vdwg.mxu0
      %537 = vmatpush.bf16.msra.mxu0 0
      %538 = vmatpush.bf16.msra.mxu0 0
      %539 = vmatpush.bf16.msra.mxu0 0
      %540 = vmatpush.bf16.msra.mxu0 %v496
      %541 = vmatpush.bf16.msra.mxu0 %v460
      %542 = vmatpush.bf16.msra.mxu0 %v458
      %543 = vmatpush.bf16.msra.mxu0 %v456
      %544 = vmatpush.bf16.msra.mxu0 %v454
      %545 = vmatmul.bf16.gmra.mxu0 %v489
      %v546 = vpop.f32.mrf.mxu0
      %v547 = vadd.f32 %v534, %v546
      %v548 = vpop.f32.mrf.mxu0
      %549 = vdwg.mxu0
      %v576 = vunpack.c.l.b16 %v299
      %v577 = vunpack.c.h.b16 %v299
      %v578 = vunpack.c.l.b16 %v300
      %v579 = vunpack.c.h.b16 %v300
      %v580 = vunpack.c.l.b16 %v301
      %v581 = vunpack.c.h.b16 %v301
      %v582 = vunpack.c.l.b16 %v302
      %v583 = vunpack.c.h.b16 %v302
      %v584 = vunpack.c.l.b16 %v303
      %v585 = vunpack.c.h.b16 %v303
      %v586 = vunpack.c.l.b16 %v304
      %v587 = vunpack.c.h.b16 %v304
      %v588 = vunpack.c.l.b16 %v305
      %v589 = vunpack.c.h.b16 %v305
      %v590 = vunpack.c.l.b16 %v306
      %v591 = vunpack.c.h.b16 %v306
      %v592 = vunpack.c.l.b16 %v307
      %v593 = vunpack.c.h.b16 %v307
      %v594 = vunpack.c.l.b16 %v308
      %v595 = vunpack.c.h.b16 %v308
      %v596 = vunpack.c.l.b16 %v309
      %v597 = vunpack.c.h.b16 %v309
      %v598 = vunpack.c.l.b16 %v310
      %v599 = vunpack.c.h.b16 %v310
      %v600 = vunpack.c.l.b16 %v311
      %v601 = vunpack.c.h.b16 %v311
      %v602 = vunpack.c.l.b16 %v312
      %v603 = vunpack.c.h.b16 %v312
      %v604 = vunpack.c.l.b16 %v313
      %v605 = vunpack.c.h.b16 %v313
      %v606 = vunpack.c.l.b16 %v314
      %v607 = vunpack.c.h.b16 %v314
      %v608 = vunpack.c.l.b16 %v315
      %v609 = vunpack.c.h.b16 %v315
      %v610 = vunpack.c.l.b16 %v316
      %v611 = vunpack.c.h.b16 %v316
      %v612 = vunpack.c.l.b16 %v317
      %v613 = vunpack.c.h.b16 %v317
      %v614 = vunpack.c.l.b16 %v318
      %v615 = vunpack.c.h.b16 %v318
      %v616 = vunpack.c.l.b16 %v319
      %v617 = vunpack.c.h.b16 %v319
      %v618 = vunpack.c.l.b16 %v320
      %v619 = vunpack.c.h.b16 %v320
      %v620 = vunpack.c.l.b16 %v321
      %v621 = vunpack.c.h.b16 %v321
      %v622 = vunpack.c.l.b16 %v322
      %v623 = vunpack.c.h.b16 %v322
      %v624 = vunpack.c.l.b16 %v323
      %v625 = vunpack.c.h.b16 %v323
      %v626 = vpack.c.b16 %v578, %v576
      %v627 = vpack.c.b16 %v579, %v577
      %v628 = vpack.c.b16 %v582, %v580
      %v629 = vpack.c.b16 %v583, %v581
      %v630 = vpack.c.b16 %v586, %v584
      %v631 = vpack.c.b16 %v587, %v585
      %v632 = vpack.c.b16 %v590, %v588
      %v633 = vpack.c.b16 %v591, %v589
      %v634 = vpack.c.b16 %v594, %v592
      %v635 = vpack.c.b16 %v595, %v593
      %v636 = vpack.c.b16 %v598, %v596
      %v637 = vpack.c.b16 %v599, %v597
      %v638 = vpack.c.b16 %v602, %v600
      %v639 = vpack.c.b16 %v603, %v601
      %v640 = vpack.c.b16 %v606, %v604
      %v641 = vpack.c.b16 %v607, %v605
      %v642 = vpack.c.b16 %v610, %v608
      %v643 = vpack.c.b16 %v611, %v609
      %v644 = vpack.c.b16 %v614, %v612
      %v645 = vpack.c.b16 %v615, %v613
      %v646 = vpack.c.b16 %v618, %v616
      %v647 = vpack.c.b16 %v619, %v617
      %v648 = vpack.c.b16 %v622, %v620
      %v649 = vpack.c.b16 %v623, %v621
      %v650 = vpack.c.b16 %v624, %v624
      %v651 = vpack.c.b16 %v625, %v625
      %v676 = vsel %vm487, %v354, 0
      %v679 = vsel %vm491, %v650, 0
      %v682 = vsel %vm491, %v651, 0
      %684 = vmatpush.bf16.msra.mxu0 %v640
      %685 = vmatpush.bf16.msra.mxu0 %v638
      %686 = vmatpush.bf16.msra.mxu0 %v636
      %687 = vmatpush.bf16.msra.mxu0 %v634
      %688 = vmatpush.bf16.msra.mxu0 %v632
      %689 = vmatpush.bf16.msra.mxu0 %v630
      %690 = vmatpush.bf16.msra.mxu0 %v628
      %691 = vmatpush.bf16.msra.mxu0 %v626
      %692 = vmatmul.bf16.gmra.mxu0 %v353
      %v693 = vpop.f32.mrf.mxu0
      %v694 = vadd.f32 %v521, %v693
      %v695 = vpop.f32.mrf.mxu0
      %696 = vdwg.mxu0
      %697 = vmatpush.bf16.msra.mxu0 0
      %698 = vmatpush.bf16.msra.mxu0 0
      %699 = vmatpush.bf16.msra.mxu0 0
      %700 = vmatpush.bf16.msra.mxu0 %v679
      %701 = vmatpush.bf16.msra.mxu0 %v648
      %702 = vmatpush.bf16.msra.mxu0 %v646
      %703 = vmatpush.bf16.msra.mxu0 %v644
      %704 = vmatpush.bf16.msra.mxu0 %v642
      %705 = vmatmul.bf16.gmra.mxu0 %v676
      %v706 = vpop.f32.mrf.mxu0
      %v707 = vadd.f32 %v694, %v706
      %v708 = vpop.f32.mrf.mxu0
      %709 = vdwg.mxu0
      %710 = vmatpush.bf16.msra.mxu0 %v641
      %711 = vmatpush.bf16.msra.mxu0 %v639
      %712 = vmatpush.bf16.msra.mxu0 %v637
      %713 = vmatpush.bf16.msra.mxu0 %v635
      %714 = vmatpush.bf16.msra.mxu0 %v633
      %715 = vmatpush.bf16.msra.mxu0 %v631
      %716 = vmatpush.bf16.msra.mxu0 %v629
      %717 = vmatpush.bf16.msra.mxu0 %v627
      %718 = vmatmul.bf16.gmra.mxu0 %v353
      %v719 = vpop.f32.mrf.mxu0
      %v720 = vadd.f32 %v547, %v719
      %v721 = vpop.f32.mrf.mxu0
      %722 = vdwg.mxu0
      %723 = vmatpush.bf16.msra.mxu0 0
      %724 = vmatpush.bf16.msra.mxu0 0
      %725 = vmatpush.bf16.msra.mxu0 0
      %726 = vmatpush.bf16.msra.mxu0 %v682
      %727 = vmatpush.bf16.msra.mxu0 %v649
      %728 = vmatpush.bf16.msra.mxu0 %v647
      %729 = vmatpush.bf16.msra.mxu0 %v645
      %730 = vmatpush.bf16.msra.mxu0 %v643
      %731 = vmatmul.bf16.gmra.mxu0 %v676
      %v732 = vpop.f32.mrf.mxu0
      %v733 = vadd.f32 %v720, %v732
      %v734 = vpop.f32.mrf.mxu0
      %735 = vdwg.mxu0
      %s736 = scalar_lea.vmem %s2, 400
      %v737 = vld [vmem:[%s736] sm:$0xff]
      %v738 = vld [vmem:[%s736 + $0x8] sm:$0xff]
      %v739 = vld [vmem:[%s736 + $0x10] sm:$0xff]
      %v740 = vld [vmem:[%s736 + $0x18] sm:$0xff]
      %v741 = vld [vmem:[%s736 + $0x20] sm:$0xff]
      %v742 = vld [vmem:[%s736 + $0x28] sm:$0xff]
      %v743 = vld [vmem:[%s736 + $0x30] sm:$0xff]
      %v744 = vld [vmem:[%s736 + $0x38] sm:$0xff]
      %v745 = vld [vmem:[%s736 + $0x40] sm:$0xff]
      %v746 = vld [vmem:[%s736 + $0x48] sm:$0xff]
      %v747 = vld [vmem:[%s736 + $0x50] sm:$0xff]
      %v748 = vld [vmem:[%s736 + $0x58] sm:$0xff]
      %v749 = vld [vmem:[%s736 + $0x60] sm:$0xff]
      %v750 = vld [vmem:[%s736 + $0x68] sm:$0xff]
      %v751 = vld [vmem:[%s736 + $0x70] sm:$0xff]
      %v752 = vld [vmem:[%s736 + $0x78] sm:$0xff]
      %v753 = vld [vmem:[%s736 + $0x80] sm:$0xff]
      %v754 = vld [vmem:[%s736 + $0x88] sm:$0xff]
      %v755 = vld [vmem:[%s736 + $0x90] sm:$0xff]
      %v756 = vld [vmem:[%s736 + $0x98] sm:$0xff]
      %v757 = vld [vmem:[%s736 + $0xa0] sm:$0xff]
      %v758 = vld [vmem:[%s736 + $0xa8] sm:$0xff]
      %v759 = vld [vmem:[%s736 + $0xb0] sm:$0xff]
      %v760 = vld [vmem:[%s736 + $0xb8] sm:$0xff]
      %v761 = vld [vmem:[%s736 + $0xc0] sm:$0x33]
      %v762 = vrot.slane %v353, 1
      %v763 = vrot.slane %v354, 1
      %v790 = vunpack.c.l.b16 %v737
      %v791 = vunpack.c.h.b16 %v737
      %v792 = vunpack.c.l.b16 %v738
      %v793 = vunpack.c.h.b16 %v738
      %v794 = vunpack.c.l.b16 %v739
      %v795 = vunpack.c.h.b16 %v739
      %v796 = vunpack.c.l.b16 %v740
      %v797 = vunpack.c.h.b16 %v740
      %v798 = vunpack.c.l.b16 %v741
      %v799 = vunpack.c.h.b16 %v741
      %v800 = vunpack.c.l.b16 %v742
      %v801 = vunpack.c.h.b16 %v742
      %v802 = vunpack.c.l.b16 %v743
      %v803 = vunpack.c.h.b16 %v743
      %v804 = vunpack.c.l.b16 %v744
      %v805 = vunpack.c.h.b16 %v744
      %v806 = vunpack.c.l.b16 %v745
      %v807 = vunpack.c.h.b16 %v745
      %v808 = vunpack.c.l.b16 %v746
      %v809 = vunpack.c.h.b16 %v746
      %v810 = vunpack.c.l.b16 %v747
      %v811 = vunpack.c.h.b16 %v747
      %v812 = vunpack.c.l.b16 %v748
      %v813 = vunpack.c.h.b16 %v748
      %v814 = vunpack.c.l.b16 %v749
      %v815 = vunpack.c.h.b16 %v749
      %v816 = vunpack.c.l.b16 %v750
      %v817 = vunpack.c.h.b16 %v750
      %v818 = vunpack.c.l.b16 %v751
      %v819 = vunpack.c.h.b16 %v751
      %v820 = vunpack.c.l.b16 %v752
      %v821 = vunpack.c.h.b16 %v752
      %v822 = vunpack.c.l.b16 %v753
      %v823 = vunpack.c.h.b16 %v753
      %v824 = vunpack.c.l.b16 %v754
      %v825 = vunpack.c.h.b16 %v754
      %v826 = vunpack.c.l.b16 %v755
      %v827 = vunpack.c.h.b16 %v755
      %v828 = vunpack.c.l.b16 %v756
      %v829 = vunpack.c.h.b16 %v756
      %v830 = vunpack.c.l.b16 %v757
      %v831 = vunpack.c.h.b16 %v757
      %v832 = vunpack.c.l.b16 %v758
      %v833 = vunpack.c.h.b16 %v758
      %v834 = vunpack.c.l.b16 %v759
      %v835 = vunpack.c.h.b16 %v759
      %v836 = vunpack.c.l.b16 %v760
      %v837 = vunpack.c.h.b16 %v760
      %v838 = vunpack.c.l.b16 %v761
      %v839 = vunpack.c.h.b16 %v761
      %v840 = vpack.c.b16 %v792, %v790
      %v841 = vpack.c.b16 %v793, %v791
      %v842 = vpack.c.b16 %v796, %v794
      %v843 = vpack.c.b16 %v797, %v795
      %v844 = vpack.c.b16 %v800, %v798
      %v845 = vpack.c.b16 %v801, %v799
      %v846 = vpack.c.b16 %v804, %v802
      %v847 = vpack.c.b16 %v805, %v803
      %v848 = vpack.c.b16 %v808, %v806
      %v849 = vpack.c.b16 %v809, %v807
      %v850 = vpack.c.b16 %v812, %v810
      %v851 = vpack.c.b16 %v813, %v811
      %v852 = vpack.c.b16 %v816, %v814
      %v853 = vpack.c.b16 %v817, %v815
      %v854 = vpack.c.b16 %v820, %v818
      %v855 = vpack.c.b16 %v821, %v819
      %v856 = vpack.c.b16 %v824, %v822
      %v857 = vpack.c.b16 %v825, %v823
      %v858 = vpack.c.b16 %v828, %v826
      %v859 = vpack.c.b16 %v829, %v827
      %v860 = vpack.c.b16 %v832, %v830
      %v861 = vpack.c.b16 %v833, %v831
      %v862 = vpack.c.b16 %v836, %v834
      %v863 = vpack.c.b16 %v837, %v835
      %v864 = vpack.c.b16 %v838, %v838
      %v865 = vpack.c.b16 %v839, %v839
      %v891 = vsel %vm487, %v763, 0
      %v894 = vsel %vm491, %v864, 0
      %v897 = vsel %vm491, %v865, 0
      %899 = vmatpush.bf16.msra.mxu0 %v854
      %900 = vmatpush.bf16.msra.mxu0 %v852
      %901 = vmatpush.bf16.msra.mxu0 %v850
      %902 = vmatpush.bf16.msra.mxu0 %v848
      %903 = vmatpush.bf16.msra.mxu0 %v846
      %904 = vmatpush.bf16.msra.mxu0 %v844
      %905 = vmatpush.bf16.msra.mxu0 %v842
      %906 = vmatpush.bf16.msra.mxu0 %v840
      %907 = vmatmul.bf16.gmra.mxu0 %v762
      %v908 = vpop.f32.mrf.mxu0
      %v909 = vadd.f32 0.0, %v908
      %v910 = vpop.f32.mrf.mxu0
      %911 = vdwg.mxu0
      %912 = vmatpush.bf16.msra.mxu0 0
      %913 = vmatpush.bf16.msra.mxu0 0
      %914 = vmatpush.bf16.msra.mxu0 0
      %915 = vmatpush.bf16.msra.mxu0 %v894
      %916 = vmatpush.bf16.msra.mxu0 %v862
      %917 = vmatpush.bf16.msra.mxu0 %v860
      %918 = vmatpush.bf16.msra.mxu0 %v858
      %919 = vmatpush.bf16.msra.mxu0 %v856
      %920 = vmatmul.bf16.gmra.mxu0 %v891
      %v921 = vpop.f32.mrf.mxu0
      %v922 = vadd.f32 %v909, %v921
      %v923 = vpop.f32.mrf.mxu0
      %924 = vdwg.mxu0
      %925 = vmatpush.bf16.msra.mxu0 %v855
      %926 = vmatpush.bf16.msra.mxu0 %v853
      %927 = vmatpush.bf16.msra.mxu0 %v851
      %928 = vmatpush.bf16.msra.mxu0 %v849
      %929 = vmatpush.bf16.msra.mxu0 %v847
      %930 = vmatpush.bf16.msra.mxu0 %v845
      %931 = vmatpush.bf16.msra.mxu0 %v843
      %932 = vmatpush.bf16.msra.mxu0 %v841
      %933 = vmatmul.bf16.gmra.mxu0 %v762
      %v934 = vpop.f32.mrf.mxu0
      %v935 = vadd.f32 0.0, %v934
      %v936 = vpop.f32.mrf.mxu0
      %937 = vdwg.mxu0
      %938 = vmatpush.bf16.msra.mxu0 0
      %939 = vmatpush.bf16.msra.mxu0 0
      %940 = vmatpush.bf16.msra.mxu0 0
      %941 = vmatpush.bf16.msra.mxu0 %v897
      %942 = vmatpush.bf16.msra.mxu0 %v863
      %943 = vmatpush.bf16.msra.mxu0 %v861
      %944 = vmatpush.bf16.msra.mxu0 %v859
      %945 = vmatpush.bf16.msra.mxu0 %v857
      %946 = vmatmul.bf16.gmra.mxu0 %v891
      %v947 = vpop.f32.mrf.mxu0
      %v948 = vadd.f32 %v935, %v947
      %v949 = vpop.f32.mrf.mxu0
      %950 = vdwg.mxu0
      %v951 = vadd.f32 %v707, %v922
      %v952 = vadd.f32 %v733, %v948
      %s953 = scalar_lea.vmem %s2, 600
      %v954 = vld [vmem:[%s953] sm:$0xff]
      %v955 = vld [vmem:[%s953 + $0x8] sm:$0xff]
      %v956 = vld [vmem:[%s953 + $0x10] sm:$0xff]
      %v957 = vld [vmem:[%s953 + $0x18] sm:$0xff]
      %v958 = vld [vmem:[%s953 + $0x20] sm:$0xff]
      %v959 = vld [vmem:[%s953 + $0x28] sm:$0xff]
      %v960 = vld [vmem:[%s953 + $0x30] sm:$0xff]
      %v961 = vld [vmem:[%s953 + $0x38] sm:$0xff]
      %v962 = vld [vmem:[%s953 + $0x40] sm:$0xff]
      %v963 = vld [vmem:[%s953 + $0x48] sm:$0xff]
      %v964 = vld [vmem:[%s953 + $0x50] sm:$0xff]
      %v965 = vld [vmem:[%s953 + $0x58] sm:$0xff]
      %v966 = vld [vmem:[%s953 + $0x60] sm:$0xff]
      %v967 = vld [vmem:[%s953 + $0x68] sm:$0xff]
      %v968 = vld [vmem:[%s953 + $0x70] sm:$0xff]
      %v969 = vld [vmem:[%s953 + $0x78] sm:$0xff]
      %v970 = vld [vmem:[%s953 + $0x80] sm:$0xff]
      %v971 = vld [vmem:[%s953 + $0x88] sm:$0xff]
      %v972 = vld [vmem:[%s953 + $0x90] sm:$0xff]
      %v973 = vld [vmem:[%s953 + $0x98] sm:$0xff]
      %v974 = vld [vmem:[%s953 + $0xa0] sm:$0xff]
      %v975 = vld [vmem:[%s953 + $0xa8] sm:$0xff]
      %v976 = vld [vmem:[%s953 + $0xb0] sm:$0xff]
      %v977 = vld [vmem:[%s953 + $0xb8] sm:$0xff]
      %v978 = vld [vmem:[%s953 + $0xc0] sm:$0x33]
      %v979 = vrot.slane %v356, 1
      %v980 = vrot.slane %v359, 1
      %v1007 = vunpack.c.l.b16 %v954
      %v1008 = vunpack.c.h.b16 %v954
      %v1009 = vunpack.c.l.b16 %v955
      %v1010 = vunpack.c.h.b16 %v955
      %v1011 = vunpack.c.l.b16 %v956
      %v1012 = vunpack.c.h.b16 %v956
      %v1013 = vunpack.c.l.b16 %v957
      %v1014 = vunpack.c.h.b16 %v957
      %v1015 = vunpack.c.l.b16 %v958
      %v1016 = vunpack.c.h.b16 %v958
      %v1017 = vunpack.c.l.b16 %v959
      %v1018 = vunpack.c.h.b16 %v959
      %v1019 = vunpack.c.l.b16 %v960
      %v1020 = vunpack.c.h.b16 %v960
      %v1021 = vunpack.c.l.b16 %v961
      %v1022 = vunpack.c.h.b16 %v961
      %v1023 = vunpack.c.l.b16 %v962
      %v1024 = vunpack.c.h.b16 %v962
      %v1025 = vunpack.c.l.b16 %v963
      %v1026 = vunpack.c.h.b16 %v963
      %v1027 = vunpack.c.l.b16 %v964
      %v1028 = vunpack.c.h.b16 %v964
      %v1029 = vunpack.c.l.b16 %v965
      %v1030 = vunpack.c.h.b16 %v965
      %v1031 = vunpack.c.l.b16 %v966
      %v1032 = vunpack.c.h.b16 %v966
      %v1033 = vunpack.c.l.b16 %v967
      %v1034 = vunpack.c.h.b16 %v967
      %v1035 = vunpack.c.l.b16 %v968
      %v1036 = vunpack.c.h.b16 %v968
      %v1037 = vunpack.c.l.b16 %v969
      %v1038 = vunpack.c.h.b16 %v969
      %v1039 = vunpack.c.l.b16 %v970
      %v1040 = vunpack.c.h.b16 %v970
      %v1041 = vunpack.c.l.b16 %v971
      %v1042 = vunpack.c.h.b16 %v971
      %v1043 = vunpack.c.l.b16 %v972
      %v1044 = vunpack.c.h.b16 %v972
      %v1045 = vunpack.c.l.b16 %v973
      %v1046 = vunpack.c.h.b16 %v973
      %v1047 = vunpack.c.l.b16 %v974
      %v1048 = vunpack.c.h.b16 %v974
      %v1049 = vunpack.c.l.b16 %v975
      %v1050 = vunpack.c.h.b16 %v975
      %v1051 = vunpack.c.l.b16 %v976
      %v1052 = vunpack.c.h.b16 %v976
      %v1053 = vunpack.c.l.b16 %v977
      %v1054 = vunpack.c.h.b16 %v977
      %v1055 = vunpack.c.l.b16 %v978
      %v1056 = vunpack.c.h.b16 %v978
      %v1057 = vpack.c.b16 %v1009, %v1007
      %v1058 = vpack.c.b16 %v1010, %v1008
      %v1059 = vpack.c.b16 %v1013, %v1011
      %v1060 = vpack.c.b16 %v1014, %v1012
      %v1061 = vpack.c.b16 %v1017, %v1015
      %v1062 = vpack.c.b16 %v1018, %v1016
      %v1063 = vpack.c.b16 %v1021, %v1019
      %v1064 = vpack.c.b16 %v1022, %v1020
      %v1065 = vpack.c.b16 %v1025, %v1023
      %v1066 = vpack.c.b16 %v1026, %v1024
      %v1067 = vpack.c.b16 %v1029, %v1027
      %v1068 = vpack.c.b16 %v1030, %v1028
      %v1069 = vpack.c.b16 %v1033, %v1031
      %v1070 = vpack.c.b16 %v1034, %v1032
      %v1071 = vpack.c.b16 %v1037, %v1035
      %v1072 = vpack.c.b16 %v1038, %v1036
      %v1073 = vpack.c.b16 %v1041, %v1039
      %v1074 = vpack.c.b16 %v1042, %v1040
      %v1075 = vpack.c.b16 %v1045, %v1043
      %v1076 = vpack.c.b16 %v1046, %v1044
      %v1077 = vpack.c.b16 %v1049, %v1047
      %v1078 = vpack.c.b16 %v1050, %v1048
      %v1079 = vpack.c.b16 %v1053, %v1051
      %v1080 = vpack.c.b16 %v1054, %v1052
      %v1081 = vpack.c.b16 %v1055, %v1055
      %v1082 = vpack.c.b16 %v1056, %v1056
      %v1108 = vsel %vm487, %v980, 0
      %v1111 = vsel %vm491, %v1081, 0
      %v1114 = vsel %vm491, %v1082, 0
      %1116 = vmatpush.bf16.msra.mxu0 %v1071
      %1117 = vmatpush.bf16.msra.mxu0 %v1069
      %1118 = vmatpush.bf16.msra.mxu0 %v1067
      %1119 = vmatpush.bf16.msra.mxu0 %v1065
      %1120 = vmatpush.bf16.msra.mxu0 %v1063
      %1121 = vmatpush.bf16.msra.mxu0 %v1061
      %1122 = vmatpush.bf16.msra.mxu0 %v1059
      %1123 = vmatpush.bf16.msra.mxu0 %v1057
      %1124 = vmatmul.bf16.gmra.mxu0 %v979
      %v1125 = vpop.f32.mrf.mxu0
      %v1126 = vadd.f32 0.0, %v1125
      %v1127 = vpop.f32.mrf.mxu0
      %1128 = vdwg.mxu0
      %1129 = vmatpush.bf16.msra.mxu0 0
      %1130 = vmatpush.bf16.msra.mxu0 0
      %1131 = vmatpush.bf16.msra.mxu0 0
      %1132 = vmatpush.bf16.msra.mxu0 %v1111
      %1133 = vmatpush.bf16.msra.mxu0 %v1079
      %1134 = vmatpush.bf16.msra.mxu0 %v1077
      %1135 = vmatpush.bf16.msra.mxu0 %v1075
      %1136 = vmatpush.bf16.msra.mxu0 %v1073
      %1137 = vmatmul.bf16.gmra.mxu0 %v1108
      %v1138 = vpop.f32.mrf.mxu0
      %v1139 = vadd.f32 %v1126, %v1138
      %v1140 = vpop.f32.mrf.mxu0
      %1141 = vdwg.mxu0
      %1142 = vmatpush.bf16.msra.mxu0 %v1072
      %1143 = vmatpush.bf16.msra.mxu0 %v1070
      %1144 = vmatpush.bf16.msra.mxu0 %v1068
      %1145 = vmatpush.bf16.msra.mxu0 %v1066
      %1146 = vmatpush.bf16.msra.mxu0 %v1064
      %1147 = vmatpush.bf16.msra.mxu0 %v1062
      %1148 = vmatpush.bf16.msra.mxu0 %v1060
      %1149 = vmatpush.bf16.msra.mxu0 %v1058
      %1150 = vmatmul.bf16.gmra.mxu0 %v979
      %v1151 = vpop.f32.mrf.mxu0
      %v1152 = vadd.f32 0.0, %v1151
      %v1153 = vpop.f32.mrf.mxu0
      %1154 = vdwg.mxu0
      %1155 = vmatpush.bf16.msra.mxu0 0
      %1156 = vmatpush.bf16.msra.mxu0 0
      %1157 = vmatpush.bf16.msra.mxu0 0
      %1158 = vmatpush.bf16.msra.mxu0 %v1114
      %1159 = vmatpush.bf16.msra.mxu0 %v1080
      %1160 = vmatpush.bf16.msra.mxu0 %v1078
      %1161 = vmatpush.bf16.msra.mxu0 %v1076
      %1162 = vmatpush.bf16.msra.mxu0 %v1074
      %1163 = vmatmul.bf16.gmra.mxu0 %v1108
      %v1164 = vpop.f32.mrf.mxu0
      %v1165 = vadd.f32 %v1152, %v1164
      %v1166 = vpop.f32.mrf.mxu0
      %1167 = vdwg.mxu0
      %v1168 = vadd.f32 %v951, %v1139
      %v1169 = vadd.f32 %v952, %v1165
      %s1170 = scalar_lea.vmem %s2, 800
      %v1171 = vld [vmem:[%s1170] sm:$0xff]
      %v1172 = vld [vmem:[%s1170 + $0x8] sm:$0xff]
      %v1173 = vld [vmem:[%s1170 + $0x10] sm:$0xff]
      %v1174 = vld [vmem:[%s1170 + $0x18] sm:$0xff]
      %v1175 = vld [vmem:[%s1170 + $0x20] sm:$0xff]
      %v1176 = vld [vmem:[%s1170 + $0x28] sm:$0xff]
      %v1177 = vld [vmem:[%s1170 + $0x30] sm:$0xff]
      %v1178 = vld [vmem:[%s1170 + $0x38] sm:$0xff]
      %v1179 = vld [vmem:[%s1170 + $0x40] sm:$0xff]
      %v1180 = vld [vmem:[%s1170 + $0x48] sm:$0xff]
      %v1181 = vld [vmem:[%s1170 + $0x50] sm:$0xff]
      %v1182 = vld [vmem:[%s1170 + $0x58] sm:$0xff]
      %v1183 = vld [vmem:[%s1170 + $0x60] sm:$0xff]
      %v1184 = vld [vmem:[%s1170 + $0x68] sm:$0xff]
      %v1185 = vld [vmem:[%s1170 + $0x70] sm:$0xff]
      %v1186 = vld [vmem:[%s1170 + $0x78] sm:$0xff]
      %v1187 = vld [vmem:[%s1170 + $0x80] sm:$0xff]
      %v1188 = vld [vmem:[%s1170 + $0x88] sm:$0xff]
      %v1189 = vld [vmem:[%s1170 + $0x90] sm:$0xff]
      %v1190 = vld [vmem:[%s1170 + $0x98] sm:$0xff]
      %v1191 = vld [vmem:[%s1170 + $0xa0] sm:$0xff]
      %v1192 = vld [vmem:[%s1170 + $0xa8] sm:$0xff]
      %v1193 = vld [vmem:[%s1170 + $0xb0] sm:$0xff]
      %v1194 = vld [vmem:[%s1170 + $0xb8] sm:$0xff]
      %v1195 = vld [vmem:[%s1170 + $0xc0] sm:$0x33]
      %v1196 = vrot.slane %v353, 2
      %v1197 = vrot.slane %v354, 2
      %v1224 = vunpack.c.l.b16 %v1171
      %v1225 = vunpack.c.h.b16 %v1171
      %v1226 = vunpack.c.l.b16 %v1172
      %v1227 = vunpack.c.h.b16 %v1172
      %v1228 = vunpack.c.l.b16 %v1173
      %v1229 = vunpack.c.h.b16 %v1173
      %v1230 = vunpack.c.l.b16 %v1174
      %v1231 = vunpack.c.h.b16 %v1174
      %v1232 = vunpack.c.l.b16 %v1175
      %v1233 = vunpack.c.h.b16 %v1175
      %v1234 = vunpack.c.l.b16 %v1176
      %v1235 = vunpack.c.h.b16 %v1176
      %v1236 = vunpack.c.l.b16 %v1177
      %v1237 = vunpack.c.h.b16 %v1177
      %v1238 = vunpack.c.l.b16 %v1178
      %v1239 = vunpack.c.h.b16 %v1178
      %v1240 = vunpack.c.l.b16 %v1179
      %v1241 = vunpack.c.h.b16 %v1179
      %v1242 = vunpack.c.l.b16 %v1180
      %v1243 = vunpack.c.h.b16 %v1180
      %v1244 = vunpack.c.l.b16 %v1181
      %v1245 = vunpack.c.h.b16 %v1181
      %v1246 = vunpack.c.l.b16 %v1182
      %v1247 = vunpack.c.h.b16 %v1182
      %v1248 = vunpack.c.l.b16 %v1183
      %v1249 = vunpack.c.h.b16 %v1183
      %v1250 = vunpack.c.l.b16 %v1184
      %v1251 = vunpack.c.h.b16 %v1184
      %v1252 = vunpack.c.l.b16 %v1185
      %v1253 = vunpack.c.h.b16 %v1185
      %v1254 = vunpack.c.l.b16 %v1186
      %v1255 = vunpack.c.h.b16 %v1186
      %v1256 = vunpack.c.l.b16 %v1187
      %v1257 = vunpack.c.h.b16 %v1187
      %v1258 = vunpack.c.l.b16 %v1188
      %v1259 = vunpack.c.h.b16 %v1188
      %v1260 = vunpack.c.l.b16 %v1189
      %v1261 = vunpack.c.h.b16 %v1189
      %v1262 = vunpack.c.l.b16 %v1190
      %v1263 = vunpack.c.h.b16 %v1190
      %v1264 = vunpack.c.l.b16 %v1191
      %v1265 = vunpack.c.h.b16 %v1191
      %v1266 = vunpack.c.l.b16 %v1192
      %v1267 = vunpack.c.h.b16 %v1192
      %v1268 = vunpack.c.l.b16 %v1193
      %v1269 = vunpack.c.h.b16 %v1193
      %v1270 = vunpack.c.l.b16 %v1194
      %v1271 = vunpack.c.h.b16 %v1194
      %v1272 = vunpack.c.l.b16 %v1195
      %v1273 = vunpack.c.h.b16 %v1195
      %v1274 = vpack.c.b16 %v1226, %v1224
      %v1275 = vpack.c.b16 %v1227, %v1225
      %v1276 = vpack.c.b16 %v1230, %v1228
      %v1277 = vpack.c.b16 %v1231, %v1229
      %v1278 = vpack.c.b16 %v1234, %v1232
      %v1279 = vpack.c.b16 %v1235, %v1233
      %v1280 = vpack.c.b16 %v1238, %v1236
      %v1281 = vpack.c.b16 %v1239, %v1237
      %v1282 = vpack.c.b16 %v1242, %v1240
      %v1283 = vpack.c.b16 %v1243, %v1241
      %v1284 = vpack.c.b16 %v1246, %v1244
      %v1285 = vpack.c.b16 %v1247, %v1245
      %v1286 = vpack.c.b16 %v1250, %v1248
      %v1287 = vpack.c.b16 %v1251, %v1249
      %v1288 = vpack.c.b16 %v1254, %v1252
      %v1289 = vpack.c.b16 %v1255, %v1253
      %v1290 = vpack.c.b16 %v1258, %v1256
      %v1291 = vpack.c.b16 %v1259, %v1257
      %v1292 = vpack.c.b16 %v1262, %v1260
      %v1293 = vpack.c.b16 %v1263, %v1261
      %v1294 = vpack.c.b16 %v1266, %v1264
      %v1295 = vpack.c.b16 %v1267, %v1265
      %v1296 = vpack.c.b16 %v1270, %v1268
      %v1297 = vpack.c.b16 %v1271, %v1269
      %v1298 = vpack.c.b16 %v1272, %v1272
      %v1299 = vpack.c.b16 %v1273, %v1273
      %v1325 = vsel %vm487, %v1197, 0
      %v1328 = vsel %vm491, %v1298, 0
      %v1331 = vsel %vm491, %v1299, 0
      %1333 = vmatpush.bf16.msra.mxu0 %v1288
      %1334 = vmatpush.bf16.msra.mxu0 %v1286
      %1335 = vmatpush.bf16.msra.mxu0 %v1284
      %1336 = vmatpush.bf16.msra.mxu0 %v1282
      %1337 = vmatpush.bf16.msra.mxu0 %v1280
      %1338 = vmatpush.bf16.msra.mxu0 %v1278
      %1339 = vmatpush.bf16.msra.mxu0 %v1276
      %1340 = vmatpush.bf16.msra.mxu0 %v1274
      %1341 = vmatmul.bf16.gmra.mxu0 %v1196
      %v1342 = vpop.f32.mrf.mxu0
      %v1343 = vadd.f32 0.0, %v1342
      %v1344 = vpop.f32.mrf.mxu0
      %1345 = vdwg.mxu0
      %1346 = vmatpush.bf16.msra.mxu0 0
      %1347 = vmatpush.bf16.msra.mxu0 0
      %1348 = vmatpush.bf16.msra.mxu0 0
      %1349 = vmatpush.bf16.msra.mxu0 %v1328
      %1350 = vmatpush.bf16.msra.mxu0 %v1296
      %1351 = vmatpush.bf16.msra.mxu0 %v1294
      %1352 = vmatpush.bf16.msra.mxu0 %v1292
      %1353 = vmatpush.bf16.msra.mxu0 %v1290
      %1354 = vmatmul.bf16.gmra.mxu0 %v1325
      %v1355 = vpop.f32.mrf.mxu0
      %v1356 = vadd.f32 %v1343, %v1355
      %v1357 = vpop.f32.mrf.mxu0
      %1358 = vdwg.mxu0
      %1359 = vmatpush.bf16.msra.mxu0 %v1289
      %1360 = vmatpush.bf16.msra.mxu0 %v1287
      %1361 = vmatpush.bf16.msra.mxu0 %v1285
      %1362 = vmatpush.bf16.msra.mxu0 %v1283
      %1363 = vmatpush.bf16.msra.mxu0 %v1281
      %1364 = vmatpush.bf16.msra.mxu0 %v1279
      %1365 = vmatpush.bf16.msra.mxu0 %v1277
      %1366 = vmatpush.bf16.msra.mxu0 %v1275
      %1367 = vmatmul.bf16.gmra.mxu0 %v1196
      %v1368 = vpop.f32.mrf.mxu0
      %v1369 = vadd.f32 0.0, %v1368
      %v1370 = vpop.f32.mrf.mxu0
      %1371 = vdwg.mxu0
      %1372 = vmatpush.bf16.msra.mxu0 0
      %1373 = vmatpush.bf16.msra.mxu0 0
      %1374 = vmatpush.bf16.msra.mxu0 0
      %1375 = vmatpush.bf16.msra.mxu0 %v1331
      %1376 = vmatpush.bf16.msra.mxu0 %v1297
      %1377 = vmatpush.bf16.msra.mxu0 %v1295
      %1378 = vmatpush.bf16.msra.mxu0 %v1293
      %1379 = vmatpush.bf16.msra.mxu0 %v1291
      %1380 = vmatmul.bf16.gmra.mxu0 %v1325
      %v1381 = vpop.f32.mrf.mxu0
      %v1382 = vadd.f32 %v1369, %v1381
      %v1383 = vpop.f32.mrf.mxu0
      %1384 = vdwg.mxu0
      %v1385 = vadd.f32 %v1168, %v1356
      %v1386 = vadd.f32 %v1169, %v1382
      %s1387 = scalar_lea.vmem %s2, 1000
      %v1388 = vld [vmem:[%s1387] sm:$0xff]
      %v1389 = vld [vmem:[%s1387 + $0x8] sm:$0xff]
      %v1390 = vld [vmem:[%s1387 + $0x10] sm:$0xff]
      %v1391 = vld [vmem:[%s1387 + $0x18] sm:$0xff]
      %v1392 = vld [vmem:[%s1387 + $0x20] sm:$0xff]
      %v1393 = vld [vmem:[%s1387 + $0x28] sm:$0xff]
      %v1394 = vld [vmem:[%s1387 + $0x30] sm:$0xff]
      %v1395 = vld [vmem:[%s1387 + $0x38] sm:$0xff]
      %v1396 = vld [vmem:[%s1387 + $0x40] sm:$0xff]
      %v1397 = vld [vmem:[%s1387 + $0x48] sm:$0xff]
      %v1398 = vld [vmem:[%s1387 + $0x50] sm:$0xff]
      %v1399 = vld [vmem:[%s1387 + $0x58] sm:$0xff]
      %v1400 = vld [vmem:[%s1387 + $0x60] sm:$0xff]
      %v1401 = vld [vmem:[%s1387 + $0x68] sm:$0xff]
      %v1402 = vld [vmem:[%s1387 + $0x70] sm:$0xff]
      %v1403 = vld [vmem:[%s1387 + $0x78] sm:$0xff]
      %v1404 = vld [vmem:[%s1387 + $0x80] sm:$0xff]
      %v1405 = vld [vmem:[%s1387 + $0x88] sm:$0xff]
      %v1406 = vld [vmem:[%s1387 + $0x90] sm:$0xff]
      %v1407 = vld [vmem:[%s1387 + $0x98] sm:$0xff]
      %v1408 = vld [vmem:[%s1387 + $0xa0] sm:$0xff]
      %v1409 = vld [vmem:[%s1387 + $0xa8] sm:$0xff]
      %v1410 = vld [vmem:[%s1387 + $0xb0] sm:$0xff]
      %v1411 = vld [vmem:[%s1387 + $0xb8] sm:$0xff]
      %v1412 = vld [vmem:[%s1387 + $0xc0] sm:$0x33]
      %v1413 = vrot.slane %v356, 2
      %v1414 = vrot.slane %v359, 2
      %v1441 = vunpack.c.l.b16 %v1388
      %v1442 = vunpack.c.h.b16 %v1388
      %v1443 = vunpack.c.l.b16 %v1389
      %v1444 = vunpack.c.h.b16 %v1389
      %v1445 = vunpack.c.l.b16 %v1390
      %v1446 = vunpack.c.h.b16 %v1390
      %v1447 = vunpack.c.l.b16 %v1391
      %v1448 = vunpack.c.h.b16 %v1391
      %v1449 = vunpack.c.l.b16 %v1392
      %v1450 = vunpack.c.h.b16 %v1392
      %v1451 = vunpack.c.l.b16 %v1393
      %v1452 = vunpack.c.h.b16 %v1393
      %v1453 = vunpack.c.l.b16 %v1394
      %v1454 = vunpack.c.h.b16 %v1394
      %v1455 = vunpack.c.l.b16 %v1395
      %v1456 = vunpack.c.h.b16 %v1395
      %v1457 = vunpack.c.l.b16 %v1396
      %v1458 = vunpack.c.h.b16 %v1396
      %v1459 = vunpack.c.l.b16 %v1397
      %v1460 = vunpack.c.h.b16 %v1397
      %v1461 = vunpack.c.l.b16 %v1398
      %v1462 = vunpack.c.h.b16 %v1398
      %v1463 = vunpack.c.l.b16 %v1399
      %v1464 = vunpack.c.h.b16 %v1399
      %v1465 = vunpack.c.l.b16 %v1400
      %v1466 = vunpack.c.h.b16 %v1400
      %v1467 = vunpack.c.l.b16 %v1401
      %v1468 = vunpack.c.h.b16 %v1401
      %v1469 = vunpack.c.l.b16 %v1402
      %v1470 = vunpack.c.h.b16 %v1402
      %v1471 = vunpack.c.l.b16 %v1403
      %v1472 = vunpack.c.h.b16 %v1403
      %v1473 = vunpack.c.l.b16 %v1404
      %v1474 = vunpack.c.h.b16 %v1404
      %v1475 = vunpack.c.l.b16 %v1405
      %v1476 = vunpack.c.h.b16 %v1405
      %v1477 = vunpack.c.l.b16 %v1406
      %v1478 = vunpack.c.h.b16 %v1406
      %v1479 = vunpack.c.l.b16 %v1407
      %v1480 = vunpack.c.h.b16 %v1407
      %v1481 = vunpack.c.l.b16 %v1408
      %v1482 = vunpack.c.h.b16 %v1408
      %v1483 = vunpack.c.l.b16 %v1409
      %v1484 = vunpack.c.h.b16 %v1409
      %v1485 = vunpack.c.l.b16 %v1410
      %v1486 = vunpack.c.h.b16 %v1410
      %v1487 = vunpack.c.l.b16 %v1411
      %v1488 = vunpack.c.h.b16 %v1411
      %v1489 = vunpack.c.l.b16 %v1412
      %v1490 = vunpack.c.h.b16 %v1412
      %v1491 = vpack.c.b16 %v1443, %v1441
      %v1492 = vpack.c.b16 %v1444, %v1442
      %v1493 = vpack.c.b16 %v1447, %v1445
      %v1494 = vpack.c.b16 %v1448, %v1446
      %v1495 = vpack.c.b16 %v1451, %v1449
      %v1496 = vpack.c.b16 %v1452, %v1450
      %v1497 = vpack.c.b16 %v1455, %v1453
      %v1498 = vpack.c.b16 %v1456, %v1454
      %v1499 = vpack.c.b16 %v1459, %v1457
      %v1500 = vpack.c.b16 %v1460, %v1458
      %v1501 = vpack.c.b16 %v1463, %v1461
      %v1502 = vpack.c.b16 %v1464, %v1462
      %v1503 = vpack.c.b16 %v1467, %v1465
      %v1504 = vpack.c.b16 %v1468, %v1466
      %v1505 = vpack.c.b16 %v1471, %v1469
      %v1506 = vpack.c.b16 %v1472, %v1470
      %v1507 = vpack.c.b16 %v1475, %v1473
      %v1508 = vpack.c.b16 %v1476, %v1474
      %v1509 = vpack.c.b16 %v1479, %v1477
      %v1510 = vpack.c.b16 %v1480, %v1478
      %v1511 = vpack.c.b16 %v1483, %v1481
      %v1512 = vpack.c.b16 %v1484, %v1482
      %v1513 = vpack.c.b16 %v1487, %v1485
      %v1514 = vpack.c.b16 %v1488, %v1486
      %v1515 = vpack.c.b16 %v1489, %v1489
      %v1516 = vpack.c.b16 %v1490, %v1490
      %v1542 = vsel %vm487, %v1414, 0
      %v1545 = vsel %vm491, %v1515, 0
      %v1548 = vsel %vm491, %v1516, 0
      %1550 = vmatpush.bf16.msra.mxu0 %v1505
      %1551 = vmatpush.bf16.msra.mxu0 %v1503
      %1552 = vmatpush.bf16.msra.mxu0 %v1501
      %1553 = vmatpush.bf16.msra.mxu0 %v1499
      %1554 = vmatpush.bf16.msra.mxu0 %v1497
      %1555 = vmatpush.bf16.msra.mxu0 %v1495
      %1556 = vmatpush.bf16.msra.mxu0 %v1493
      %1557 = vmatpush.bf16.msra.mxu0 %v1491
      %1558 = vmatmul.bf16.gmra.mxu0 %v1413
      %v1559 = vpop.f32.mrf.mxu0
      %v1560 = vadd.f32 0.0, %v1559
      %v1561 = vpop.f32.mrf.mxu0
      %1562 = vdwg.mxu0
      %1563 = vmatpush.bf16.msra.mxu0 0
      %1564 = vmatpush.bf16.msra.mxu0 0
      %1565 = vmatpush.bf16.msra.mxu0 0
      %1566 = vmatpush.bf16.msra.mxu0 %v1545
      %1567 = vmatpush.bf16.msra.mxu0 %v1513
      %1568 = vmatpush.bf16.msra.mxu0 %v1511
      %1569 = vmatpush.bf16.msra.mxu0 %v1509
      %1570 = vmatpush.bf16.msra.mxu0 %v1507
      %1571 = vmatmul.bf16.gmra.mxu0 %v1542
      %v1572 = vpop.f32.mrf.mxu0
      %v1573 = vadd.f32 %v1560, %v1572
      %v1574 = vpop.f32.mrf.mxu0
      %1575 = vdwg.mxu0
      %1576 = vmatpush.bf16.msra.mxu0 %v1506
      %1577 = vmatpush.bf16.msra.mxu0 %v1504
      %1578 = vmatpush.bf16.msra.mxu0 %v1502
      %1579 = vmatpush.bf16.msra.mxu0 %v1500
      %1580 = vmatpush.bf16.msra.mxu0 %v1498
      %1581 = vmatpush.bf16.msra.mxu0 %v1496
      %1582 = vmatpush.bf16.msra.mxu0 %v1494
      %1583 = vmatpush.bf16.msra.mxu0 %v1492
      %1584 = vmatmul.bf16.gmra.mxu0 %v1413
      %v1585 = vpop.f32.mrf.mxu0
      %v1586 = vadd.f32 0.0, %v1585
      %v1587 = vpop.f32.mrf.mxu0
      %1588 = vdwg.mxu0
      %1589 = vmatpush.bf16.msra.mxu0 0
      %1590 = vmatpush.bf16.msra.mxu0 0
      %1591 = vmatpush.bf16.msra.mxu0 0
      %1592 = vmatpush.bf16.msra.mxu0 %v1548
      %1593 = vmatpush.bf16.msra.mxu0 %v1514
      %1594 = vmatpush.bf16.msra.mxu0 %v1512
      %1595 = vmatpush.bf16.msra.mxu0 %v1510
      %1596 = vmatpush.bf16.msra.mxu0 %v1508
      %1597 = vmatmul.bf16.gmra.mxu0 %v1542
      %v1598 = vpop.f32.mrf.mxu0
      %v1599 = vadd.f32 %v1586, %v1598
      %v1600 = vpop.f32.mrf.mxu0
      %1601 = vdwg.mxu0
      %v1602 = vadd.f32 %v1385, %v1573
      %v1603 = vadd.f32 %v1386, %v1599
      %s1604 = scalar_lea.vmem %s2, 1200
      %v1605 = vld [vmem:[%s1604] sm:$0xff]
      %v1606 = vld [vmem:[%s1604 + $0x8] sm:$0xff]
      %v1607 = vld [vmem:[%s1604 + $0x10] sm:$0xff]
      %v1608 = vld [vmem:[%s1604 + $0x18] sm:$0xff]
      %v1609 = vld [vmem:[%s1604 + $0x20] sm:$0xff]
      %v1610 = vld [vmem:[%s1604 + $0x28] sm:$0xff]
      %v1611 = vld [vmem:[%s1604 + $0x30] sm:$0xff]
      %v1612 = vld [vmem:[%s1604 + $0x38] sm:$0xff]
      %v1613 = vld [vmem:[%s1604 + $0x40] sm:$0xff]
      %v1614 = vld [vmem:[%s1604 + $0x48] sm:$0xff]
      %v1615 = vld [vmem:[%s1604 + $0x50] sm:$0xff]
      %v1616 = vld [vmem:[%s1604 + $0x58] sm:$0xff]
      %v1617 = vld [vmem:[%s1604 + $0x60] sm:$0xff]
      %v1618 = vld [vmem:[%s1604 + $0x68] sm:$0xff]
      %v1619 = vld [vmem:[%s1604 + $0x70] sm:$0xff]
      %v1620 = vld [vmem:[%s1604 + $0x78] sm:$0xff]
      %v1621 = vld [vmem:[%s1604 + $0x80] sm:$0xff]
      %v1622 = vld [vmem:[%s1604 + $0x88] sm:$0xff]
      %v1623 = vld [vmem:[%s1604 + $0x90] sm:$0xff]
      %v1624 = vld [vmem:[%s1604 + $0x98] sm:$0xff]
      %v1625 = vld [vmem:[%s1604 + $0xa0] sm:$0xff]
      %v1626 = vld [vmem:[%s1604 + $0xa8] sm:$0xff]
      %v1627 = vld [vmem:[%s1604 + $0xb0] sm:$0xff]
      %v1628 = vld [vmem:[%s1604 + $0xb8] sm:$0xff]
      %v1629 = vld [vmem:[%s1604 + $0xc0] sm:$0x33]
      %v1630 = vrot.slane %v353, 3
      %v1631 = vrot.slane %v354, 3
      %v1658 = vunpack.c.l.b16 %v1605
      %v1659 = vunpack.c.h.b16 %v1605
      %v1660 = vunpack.c.l.b16 %v1606
      %v1661 = vunpack.c.h.b16 %v1606
      %v1662 = vunpack.c.l.b16 %v1607
      %v1663 = vunpack.c.h.b16 %v1607
      %v1664 = vunpack.c.l.b16 %v1608
      %v1665 = vunpack.c.h.b16 %v1608
      %v1666 = vunpack.c.l.b16 %v1609
      %v1667 = vunpack.c.h.b16 %v1609
      %v1668 = vunpack.c.l.b16 %v1610
      %v1669 = vunpack.c.h.b16 %v1610
      %v1670 = vunpack.c.l.b16 %v1611
      %v1671 = vunpack.c.h.b16 %v1611
      %v1672 = vunpack.c.l.b16 %v1612
      %v1673 = vunpack.c.h.b16 %v1612
      %v1674 = vunpack.c.l.b16 %v1613
      %v1675 = vunpack.c.h.b16 %v1613
      %v1676 = vunpack.c.l.b16 %v1614
      %v1677 = vunpack.c.h.b16 %v1614
      %v1678 = vunpack.c.l.b16 %v1615
      %v1679 = vunpack.c.h.b16 %v1615
      %v1680 = vunpack.c.l.b16 %v1616
      %v1681 = vunpack.c.h.b16 %v1616
      %v1682 = vunpack.c.l.b16 %v1617
      %v1683 = vunpack.c.h.b16 %v1617
      %v1684 = vunpack.c.l.b16 %v1618
      %v1685 = vunpack.c.h.b16 %v1618
      %v1686 = vunpack.c.l.b16 %v1619
      %v1687 = vunpack.c.h.b16 %v1619
      %v1688 = vunpack.c.l.b16 %v1620
      %v1689 = vunpack.c.h.b16 %v1620
      %v1690 = vunpack.c.l.b16 %v1621
      %v1691 = vunpack.c.h.b16 %v1621
      %v1692 = vunpack.c.l.b16 %v1622
      %v1693 = vunpack.c.h.b16 %v1622
      %v1694 = vunpack.c.l.b16 %v1623
      %v1695 = vunpack.c.h.b16 %v1623
      %v1696 = vunpack.c.l.b16 %v1624
      %v1697 = vunpack.c.h.b16 %v1624
      %v1698 = vunpack.c.l.b16 %v1625
      %v1699 = vunpack.c.h.b16 %v1625
      %v1700 = vunpack.c.l.b16 %v1626
      %v1701 = vunpack.c.h.b16 %v1626
      %v1702 = vunpack.c.l.b16 %v1627
      %v1703 = vunpack.c.h.b16 %v1627
      %v1704 = vunpack.c.l.b16 %v1628
      %v1705 = vunpack.c.h.b16 %v1628
      %v1706 = vunpack.c.l.b16 %v1629
      %v1707 = vunpack.c.h.b16 %v1629
      %v1708 = vpack.c.b16 %v1660, %v1658
      %v1709 = vpack.c.b16 %v1661, %v1659
      %v1710 = vpack.c.b16 %v1664, %v1662
      %v1711 = vpack.c.b16 %v1665, %v1663
      %v1712 = vpack.c.b16 %v1668, %v1666
      %v1713 = vpack.c.b16 %v1669, %v1667
      %v1714 = vpack.c.b16 %v1672, %v1670
      %v1715 = vpack.c.b16 %v1673, %v1671
      %v1716 = vpack.c.b16 %v1676, %v1674
      %v1717 = vpack.c.b16 %v1677, %v1675
      %v1718 = vpack.c.b16 %v1680, %v1678
      %v1719 = vpack.c.b16 %v1681, %v1679
      %v1720 = vpack.c.b16 %v1684, %v1682
      %v1721 = vpack.c.b16 %v1685, %v1683
      %v1722 = vpack.c.b16 %v1688, %v1686
      %v1723 = vpack.c.b16 %v1689, %v1687
      %v1724 = vpack.c.b16 %v1692, %v1690
      %v1725 = vpack.c.b16 %v1693, %v1691
      %v1726 = vpack.c.b16 %v1696, %v1694
      %v1727 = vpack.c.b16 %v1697, %v1695
      %v1728 = vpack.c.b16 %v1700, %v1698
      %v1729 = vpack.c.b16 %v1701, %v1699
      %v1730 = vpack.c.b16 %v1704, %v1702
      %v1731 = vpack.c.b16 %v1705, %v1703
      %v1732 = vpack.c.b16 %v1706, %v1706
      %v1733 = vpack.c.b16 %v1707, %v1707
      %v1759 = vsel %vm487, %v1631, 0
      %v1762 = vsel %vm491, %v1732, 0
      %v1765 = vsel %vm491, %v1733, 0
      %1767 = vmatpush.bf16.msra.mxu0 %v1722
      %1768 = vmatpush.bf16.msra.mxu0 %v1720
      %1769 = vmatpush.bf16.msra.mxu0 %v1718
      %1770 = vmatpush.bf16.msra.mxu0 %v1716
      %1771 = vmatpush.bf16.msra.mxu0 %v1714
      %1772 = vmatpush.bf16.msra.mxu0 %v1712
      %1773 = vmatpush.bf16.msra.mxu0 %v1710
      %1774 = vmatpush.bf16.msra.mxu0 %v1708
      %1775 = vmatmul.bf16.gmra.mxu0 %v1630
      %v1776 = vpop.f32.mrf.mxu0
      %v1777 = vadd.f32 0.0, %v1776
      %v1778 = vpop.f32.mrf.mxu0
      %1779 = vdwg.mxu0
      %1780 = vmatpush.bf16.msra.mxu0 0
      %1781 = vmatpush.bf16.msra.mxu0 0
      %1782 = vmatpush.bf16.msra.mxu0 0
      %1783 = vmatpush.bf16.msra.mxu0 %v1762
      %1784 = vmatpush.bf16.msra.mxu0 %v1730
      %1785 = vmatpush.bf16.msra.mxu0 %v1728
      %1786 = vmatpush.bf16.msra.mxu0 %v1726
      %1787 = vmatpush.bf16.msra.mxu0 %v1724
      %1788 = vmatmul.bf16.gmra.mxu0 %v1759
      %v1789 = vpop.f32.mrf.mxu0
      %v1790 = vadd.f32 %v1777, %v1789
      %v1791 = vpop.f32.mrf.mxu0
      %1792 = vdwg.mxu0
      %1793 = vmatpush.bf16.msra.mxu0 %v1723
      %1794 = vmatpush.bf16.msra.mxu0 %v1721
      %1795 = vmatpush.bf16.msra.mxu0 %v1719
      %1796 = vmatpush.bf16.msra.mxu0 %v1717
      %1797 = vmatpush.bf16.msra.mxu0 %v1715
      %1798 = vmatpush.bf16.msra.mxu0 %v1713
      %1799 = vmatpush.bf16.msra.mxu0 %v1711
      %1800 = vmatpush.bf16.msra.mxu0 %v1709
      %1801 = vmatmul.bf16.gmra.mxu0 %v1630
      %v1802 = vpop.f32.mrf.mxu0
      %v1803 = vadd.f32 0.0, %v1802
      %v1804 = vpop.f32.mrf.mxu0
      %1805 = vdwg.mxu0
      %1806 = vmatpush.bf16.msra.mxu0 0
      %1807 = vmatpush.bf16.msra.mxu0 0
      %1808 = vmatpush.bf16.msra.mxu0 0
      %1809 = vmatpush.bf16.msra.mxu0 %v1765
      %1810 = vmatpush.bf16.msra.mxu0 %v1731
      %1811 = vmatpush.bf16.msra.mxu0 %v1729
      %1812 = vmatpush.bf16.msra.mxu0 %v1727
      %1813 = vmatpush.bf16.msra.mxu0 %v1725
      %1814 = vmatmul.bf16.gmra.mxu0 %v1759
      %v1815 = vpop.f32.mrf.mxu0
      %v1816 = vadd.f32 %v1803, %v1815
      %v1817 = vpop.f32.mrf.mxu0
      %1818 = vdwg.mxu0
      %v1819 = vadd.f32 %v1602, %v1790
      %v1820 = vadd.f32 %v1603, %v1816
      %s1821 = scalar_lea.vmem %s2, 1400
      %v1822 = vld [vmem:[%s1821] sm:$0xff]
      %v1823 = vld [vmem:[%s1821 + $0x8] sm:$0xff]
      %v1824 = vld [vmem:[%s1821 + $0x10] sm:$0xff]
      %v1825 = vld [vmem:[%s1821 + $0x18] sm:$0xff]
      %v1826 = vld [vmem:[%s1821 + $0x20] sm:$0xff]
      %v1827 = vld [vmem:[%s1821 + $0x28] sm:$0xff]
      %v1828 = vld [vmem:[%s1821 + $0x30] sm:$0xff]
      %v1829 = vld [vmem:[%s1821 + $0x38] sm:$0xff]
      %v1830 = vld [vmem:[%s1821 + $0x40] sm:$0xff]
      %v1831 = vld [vmem:[%s1821 + $0x48] sm:$0xff]
      %v1832 = vld [vmem:[%s1821 + $0x50] sm:$0xff]
      %v1833 = vld [vmem:[%s1821 + $0x58] sm:$0xff]
      %v1834 = vld [vmem:[%s1821 + $0x60] sm:$0xff]
      %v1835 = vld [vmem:[%s1821 + $0x68] sm:$0xff]
      %v1836 = vld [vmem:[%s1821 + $0x70] sm:$0xff]
      %v1837 = vld [vmem:[%s1821 + $0x78] sm:$0xff]
      %v1838 = vld [vmem:[%s1821 + $0x80] sm:$0xff]
      %v1839 = vld [vmem:[%s1821 + $0x88] sm:$0xff]
      %v1840 = vld [vmem:[%s1821 + $0x90] sm:$0xff]
      %v1841 = vld [vmem:[%s1821 + $0x98] sm:$0xff]
      %v1842 = vld [vmem:[%s1821 + $0xa0] sm:$0xff]
      %v1843 = vld [vmem:[%s1821 + $0xa8] sm:$0xff]
      %v1844 = vld [vmem:[%s1821 + $0xb0] sm:$0xff]
      %v1845 = vld [vmem:[%s1821 + $0xb8] sm:$0xff]
      %v1846 = vld [vmem:[%s1821 + $0xc0] sm:$0x33]
      %v1847 = vrot.slane %v356, 3
      %v1848 = vrot.slane %v359, 3
      %v1875 = vunpack.c.l.b16 %v1822
      %v1876 = vunpack.c.h.b16 %v1822
      %v1877 = vunpack.c.l.b16 %v1823
      %v1878 = vunpack.c.h.b16 %v1823
      %v1879 = vunpack.c.l.b16 %v1824
      %v1880 = vunpack.c.h.b16 %v1824
      %v1881 = vunpack.c.l.b16 %v1825
      %v1882 = vunpack.c.h.b16 %v1825
      %v1883 = vunpack.c.l.b16 %v1826
      %v1884 = vunpack.c.h.b16 %v1826
      %v1885 = vunpack.c.l.b16 %v1827
      %v1886 = vunpack.c.h.b16 %v1827
      %v1887 = vunpack.c.l.b16 %v1828
      %v1888 = vunpack.c.h.b16 %v1828
      %v1889 = vunpack.c.l.b16 %v1829
      %v1890 = vunpack.c.h.b16 %v1829
      %v1891 = vunpack.c.l.b16 %v1830
      %v1892 = vunpack.c.h.b16 %v1830
      %v1893 = vunpack.c.l.b16 %v1831
      %v1894 = vunpack.c.h.b16 %v1831
      %v1895 = vunpack.c.l.b16 %v1832
      %v1896 = vunpack.c.h.b16 %v1832
      %v1897 = vunpack.c.l.b16 %v1833
      %v1898 = vunpack.c.h.b16 %v1833
      %v1899 = vunpack.c.l.b16 %v1834
      %v1900 = vunpack.c.h.b16 %v1834
      %v1901 = vunpack.c.l.b16 %v1835
      %v1902 = vunpack.c.h.b16 %v1835
      %v1903 = vunpack.c.l.b16 %v1836
      %v1904 = vunpack.c.h.b16 %v1836
      %v1905 = vunpack.c.l.b16 %v1837
      %v1906 = vunpack.c.h.b16 %v1837
      %v1907 = vunpack.c.l.b16 %v1838
      %v1908 = vunpack.c.h.b16 %v1838
      %v1909 = vunpack.c.l.b16 %v1839
      %v1910 = vunpack.c.h.b16 %v1839
      %v1911 = vunpack.c.l.b16 %v1840
      %v1912 = vunpack.c.h.b16 %v1840
      %v1913 = vunpack.c.l.b16 %v1841
      %v1914 = vunpack.c.h.b16 %v1841
      %v1915 = vunpack.c.l.b16 %v1842
      %v1916 = vunpack.c.h.b16 %v1842
      %v1917 = vunpack.c.l.b16 %v1843
      %v1918 = vunpack.c.h.b16 %v1843
      %v1919 = vunpack.c.l.b16 %v1844
      %v1920 = vunpack.c.h.b16 %v1844
      %v1921 = vunpack.c.l.b16 %v1845
      %v1922 = vunpack.c.h.b16 %v1845
      %v1923 = vunpack.c.l.b16 %v1846
      %v1924 = vunpack.c.h.b16 %v1846
      %v1925 = vpack.c.b16 %v1877, %v1875
      %v1926 = vpack.c.b16 %v1878, %v1876
      %v1927 = vpack.c.b16 %v1881, %v1879
      %v1928 = vpack.c.b16 %v1882, %v1880
      %v1929 = vpack.c.b16 %v1885, %v1883
      %v1930 = vpack.c.b16 %v1886, %v1884
      %v1931 = vpack.c.b16 %v1889, %v1887
      %v1932 = vpack.c.b16 %v1890, %v1888
      %v1933 = vpack.c.b16 %v1893, %v1891
      %v1934 = vpack.c.b16 %v1894, %v1892
      %v1935 = vpack.c.b16 %v1897, %v1895
      %v1936 = vpack.c.b16 %v1898, %v1896
      %v1937 = vpack.c.b16 %v1901, %v1899
      %v1938 = vpack.c.b16 %v1902, %v1900
      %v1939 = vpack.c.b16 %v1905, %v1903
      %v1940 = vpack.c.b16 %v1906, %v1904
      %v1941 = vpack.c.b16 %v1909, %v1907
      %v1942 = vpack.c.b16 %v1910, %v1908
      %v1943 = vpack.c.b16 %v1913, %v1911
      %v1944 = vpack.c.b16 %v1914, %v1912
      %v1945 = vpack.c.b16 %v1917, %v1915
      %v1946 = vpack.c.b16 %v1918, %v1916
      %v1947 = vpack.c.b16 %v1921, %v1919
      %v1948 = vpack.c.b16 %v1922, %v1920
      %v1949 = vpack.c.b16 %v1923, %v1923
      %v1950 = vpack.c.b16 %v1924, %v1924
      %v1976 = vsel %vm487, %v1848, 0
      %v1979 = vsel %vm491, %v1949, 0
      %v1982 = vsel %vm491, %v1950, 0
      %1984 = vmatpush.bf16.msra.mxu0 %v1939
      %1985 = vmatpush.bf16.msra.mxu0 %v1937
      %1986 = vmatpush.bf16.msra.mxu0 %v1935
      %1987 = vmatpush.bf16.msra.mxu0 %v1933
      %1988 = vmatpush.bf16.msra.mxu0 %v1931
      %1989 = vmatpush.bf16.msra.mxu0 %v1929
      %1990 = vmatpush.bf16.msra.mxu0 %v1927
      %1991 = vmatpush.bf16.msra.mxu0 %v1925
      %1992 = vmatmul.bf16.gmra.mxu0 %v1847
      %v1993 = vpop.f32.mrf.mxu0
      %v1994 = vadd.f32 0.0, %v1993
      %v1995 = vpop.f32.mrf.mxu0
      %1996 = vdwg.mxu0
      %1997 = vmatpush.bf16.msra.mxu0 0
      %1998 = vmatpush.bf16.msra.mxu0 0
      %1999 = vmatpush.bf16.msra.mxu0 0
      %2000 = vmatpush.bf16.msra.mxu0 %v1979
      %2001 = vmatpush.bf16.msra.mxu0 %v1947
      %2002 = vmatpush.bf16.msra.mxu0 %v1945
      %2003 = vmatpush.bf16.msra.mxu0 %v1943
      %2004 = vmatpush.bf16.msra.mxu0 %v1941
      %2005 = vmatmul.bf16.gmra.mxu0 %v1976
      %v2006 = vpop.f32.mrf.mxu0
      %v2007 = vadd.f32 %v1994, %v2006
      %v2008 = vpop.f32.mrf.mxu0
      %2009 = vdwg.mxu0
      %2010 = vmatpush.bf16.msra.mxu0 %v1940
      %2011 = vmatpush.bf16.msra.mxu0 %v1938
      %2012 = vmatpush.bf16.msra.mxu0 %v1936
      %2013 = vmatpush.bf16.msra.mxu0 %v1934
      %2014 = vmatpush.bf16.msra.mxu0 %v1932
      %2015 = vmatpush.bf16.msra.mxu0 %v1930
      %2016 = vmatpush.bf16.msra.mxu0 %v1928
      %2017 = vmatpush.bf16.msra.mxu0 %v1926
      %2018 = vmatmul.bf16.gmra.mxu0 %v1847
      %v2019 = vpop.f32.mrf.mxu0
      %v2020 = vadd.f32 0.0, %v2019
      %v2021 = vpop.f32.mrf.mxu0
      %2022 = vdwg.mxu0
      %2023 = vmatpush.bf16.msra.mxu0 0
      %2024 = vmatpush.bf16.msra.mxu0 0
      %2025 = vmatpush.bf16.msra.mxu0 0
      %2026 = vmatpush.bf16.msra.mxu0 %v1982
      %2027 = vmatpush.bf16.msra.mxu0 %v1948
      %2028 = vmatpush.bf16.msra.mxu0 %v1946
      %2029 = vmatpush.bf16.msra.mxu0 %v1944
      %2030 = vmatpush.bf16.msra.mxu0 %v1942
      %2031 = vmatmul.bf16.gmra.mxu0 %v1976
      %v2032 = vpop.f32.mrf.mxu0
      %v2033 = vadd.f32 %v2020, %v2032
      %v2034 = vpop.f32.mrf.mxu0
      %2035 = vdwg.mxu0
      %v2036 = vadd.f32 %v1819, %v2007
      %v2037 = vadd.f32 %v1820, %v2033
      %s2038 = scalar_lea.vmem %s2, 1600
      %v2039 = vld [vmem:[%s2038] sm:$0xff]
      %v2040 = vld [vmem:[%s2038 + $0x8] sm:$0xff]
      %v2041 = vld [vmem:[%s2038 + $0x10] sm:$0xff]
      %v2042 = vld [vmem:[%s2038 + $0x18] sm:$0xff]
      %v2043 = vld [vmem:[%s2038 + $0x20] sm:$0xff]
      %v2044 = vld [vmem:[%s2038 + $0x28] sm:$0xff]
      %v2045 = vld [vmem:[%s2038 + $0x30] sm:$0xff]
      %v2046 = vld [vmem:[%s2038 + $0x38] sm:$0xff]
      %v2047 = vld [vmem:[%s2038 + $0x40] sm:$0xff]
      %v2048 = vld [vmem:[%s2038 + $0x48] sm:$0xff]
      %v2049 = vld [vmem:[%s2038 + $0x50] sm:$0xff]
      %v2050 = vld [vmem:[%s2038 + $0x58] sm:$0xff]
      %v2051 = vld [vmem:[%s2038 + $0x60] sm:$0xff]
      %v2052 = vld [vmem:[%s2038 + $0x68] sm:$0xff]
      %v2053 = vld [vmem:[%s2038 + $0x70] sm:$0xff]
      %v2054 = vld [vmem:[%s2038 + $0x78] sm:$0xff]
      %v2055 = vld [vmem:[%s2038 + $0x80] sm:$0xff]
      %v2056 = vld [vmem:[%s2038 + $0x88] sm:$0xff]
      %v2057 = vld [vmem:[%s2038 + $0x90] sm:$0xff]
      %v2058 = vld [vmem:[%s2038 + $0x98] sm:$0xff]
      %v2059 = vld [vmem:[%s2038 + $0xa0] sm:$0xff]
      %v2060 = vld [vmem:[%s2038 + $0xa8] sm:$0xff]
      %v2061 = vld [vmem:[%s2038 + $0xb0] sm:$0xff]
      %v2062 = vld [vmem:[%s2038 + $0xb8] sm:$0xff]
      %v2063 = vld [vmem:[%s2038 + $0xc0] sm:$0x33]
      %v2065 = vunpack.c.l.b16 %v296
      %v2066 = vunpack.c.h.b16 %v296
      %v2067 = vpack.c.b16 %v2065, %v2065
      %v2068 = vpack.c.b16 %v2066, %v2066
      %v2095 = vunpack.c.l.b16 %v2039
      %v2096 = vunpack.c.h.b16 %v2039
      %v2097 = vunpack.c.l.b16 %v2040
      %v2098 = vunpack.c.h.b16 %v2040
      %v2099 = vunpack.c.l.b16 %v2041
      %v2100 = vunpack.c.h.b16 %v2041
      %v2101 = vunpack.c.l.b16 %v2042
      %v2102 = vunpack.c.h.b16 %v2042
      %v2103 = vunpack.c.l.b16 %v2043
      %v2104 = vunpack.c.h.b16 %v2043
      %v2105 = vunpack.c.l.b16 %v2044
      %v2106 = vunpack.c.h.b16 %v2044
      %v2107 = vunpack.c.l.b16 %v2045
      %v2108 = vunpack.c.h.b16 %v2045
      %v2109 = vunpack.c.l.b16 %v2046
      %v2110 = vunpack.c.h.b16 %v2046
      %v2111 = vunpack.c.l.b16 %v2047
      %v2112 = vunpack.c.h.b16 %v2047
      %v2113 = vunpack.c.l.b16 %v2048
      %v2114 = vunpack.c.h.b16 %v2048
      %v2115 = vunpack.c.l.b16 %v2049
      %v2116 = vunpack.c.h.b16 %v2049
      %v2117 = vunpack.c.l.b16 %v2050
      %v2118 = vunpack.c.h.b16 %v2050
      %v2119 = vunpack.c.l.b16 %v2051
      %v2120 = vunpack.c.h.b16 %v2051
      %v2121 = vunpack.c.l.b16 %v2052
      %v2122 = vunpack.c.h.b16 %v2052
      %v2123 = vunpack.c.l.b16 %v2053
      %v2124 = vunpack.c.h.b16 %v2053
      %v2125 = vunpack.c.l.b16 %v2054
      %v2126 = vunpack.c.h.b16 %v2054
      %v2127 = vunpack.c.l.b16 %v2055
      %v2128 = vunpack.c.h.b16 %v2055
      %v2129 = vunpack.c.l.b16 %v2056
      %v2130 = vunpack.c.h.b16 %v2056
      %v2131 = vunpack.c.l.b16 %v2057
      %v2132 = vunpack.c.h.b16 %v2057
      %v2133 = vunpack.c.l.b16 %v2058
      %v2134 = vunpack.c.h.b16 %v2058
      %v2135 = vunpack.c.l.b16 %v2059
      %v2136 = vunpack.c.h.b16 %v2059
      %v2137 = vunpack.c.l.b16 %v2060
      %v2138 = vunpack.c.h.b16 %v2060
      %v2139 = vunpack.c.l.b16 %v2061
      %v2140 = vunpack.c.h.b16 %v2061
      %v2141 = vunpack.c.l.b16 %v2062
      %v2142 = vunpack.c.h.b16 %v2062
      %v2143 = vunpack.c.l.b16 %v2063
      %v2144 = vunpack.c.h.b16 %v2063
      %v2145 = vpack.c.b16 %v2097, %v2095
      %v2146 = vpack.c.b16 %v2098, %v2096
      %v2147 = vpack.c.b16 %v2101, %v2099
      %v2148 = vpack.c.b16 %v2102, %v2100
      %v2149 = vpack.c.b16 %v2105, %v2103
      %v2150 = vpack.c.b16 %v2106, %v2104
      %v2151 = vpack.c.b16 %v2109, %v2107
      %v2152 = vpack.c.b16 %v2110, %v2108
      %v2153 = vpack.c.b16 %v2113, %v2111
      %v2154 = vpack.c.b16 %v2114, %v2112
      %v2155 = vpack.c.b16 %v2117, %v2115
      %v2156 = vpack.c.b16 %v2118, %v2116
      %v2157 = vpack.c.b16 %v2121, %v2119
      %v2158 = vpack.c.b16 %v2122, %v2120
      %v2159 = vpack.c.b16 %v2125, %v2123
      %v2160 = vpack.c.b16 %v2126, %v2124
      %v2161 = vpack.c.b16 %v2129, %v2127
      %v2162 = vpack.c.b16 %v2130, %v2128
      %v2163 = vpack.c.b16 %v2133, %v2131
      %v2164 = vpack.c.b16 %v2134, %v2132
      %v2165 = vpack.c.b16 %v2137, %v2135
      %v2166 = vpack.c.b16 %v2138, %v2136
      %v2167 = vpack.c.b16 %v2141, %v2139
      %v2168 = vpack.c.b16 %v2142, %v2140
      %v2169 = vpack.c.b16 %v2143, %v2143
      %v2170 = vpack.c.b16 %v2144, %v2144
      %v2196 = vsel %vm487, %v2068, 0
      %v2199 = vsel %vm491, %v2169, 0
      %v2202 = vsel %vm491, %v2170, 0
      %2204 = vmatpush.bf16.msra.mxu0 %v2159
      %2205 = vmatpush.bf16.msra.mxu0 %v2157
      %2206 = vmatpush.bf16.msra.mxu0 %v2155
      %2207 = vmatpush.bf16.msra.mxu0 %v2153
      %2208 = vmatpush.bf16.msra.mxu0 %v2151
      %2209 = vmatpush.bf16.msra.mxu0 %v2149
      %2210 = vmatpush.bf16.msra.mxu0 %v2147
      %2211 = vmatpush.bf16.msra.mxu0 %v2145
      %2212 = vmatmul.bf16.gmra.mxu0 %v2067
      %v2213 = vpop.f32.mrf.mxu0
      %v2214 = vadd.f32 0.0, %v2213
      %v2215 = vpop.f32.mrf.mxu0
      %2216 = vdwg.mxu0
      %2217 = vmatpush.bf16.msra.mxu0 0
      %2218 = vmatpush.bf16.msra.mxu0 0
      %2219 = vmatpush.bf16.msra.mxu0 0
      %2220 = vmatpush.bf16.msra.mxu0 %v2199
      %2221 = vmatpush.bf16.msra.mxu0 %v2167
      %2222 = vmatpush.bf16.msra.mxu0 %v2165
      %2223 = vmatpush.bf16.msra.mxu0 %v2163
      %2224 = vmatpush.bf16.msra.mxu0 %v2161
      %2225 = vmatmul.bf16.gmra.mxu0 %v2196
      %v2226 = vpop.f32.mrf.mxu0
      %v2227 = vadd.f32 %v2214, %v2226
      %v2228 = vpop.f32.mrf.mxu0
      %2229 = vdwg.mxu0
      %2230 = vmatpush.bf16.msra.mxu0 %v2160
      %2231 = vmatpush.bf16.msra.mxu0 %v2158
      %2232 = vmatpush.bf16.msra.mxu0 %v2156
      %2233 = vmatpush.bf16.msra.mxu0 %v2154
      %2234 = vmatpush.bf16.msra.mxu0 %v2152
      %2235 = vmatpush.bf16.msra.mxu0 %v2150
      %2236 = vmatpush.bf16.msra.mxu0 %v2148
      %2237 = vmatpush.bf16.msra.mxu0 %v2146
      %2238 = vmatmul.bf16.gmra.mxu0 %v2067
      %v2239 = vpop.f32.mrf.mxu0
      %v2240 = vadd.f32 0.0, %v2239
      %v2241 = vpop.f32.mrf.mxu0
      %2242 = vdwg.mxu0
      %2243 = vmatpush.bf16.msra.mxu0 0
      %2244 = vmatpush.bf16.msra.mxu0 0
      %2245 = vmatpush.bf16.msra.mxu0 0
      %2246 = vmatpush.bf16.msra.mxu0 %v2202
      %2247 = vmatpush.bf16.msra.mxu0 %v2168
      %2248 = vmatpush.bf16.msra.mxu0 %v2166
      %2249 = vmatpush.bf16.msra.mxu0 %v2164
      %2250 = vmatpush.bf16.msra.mxu0 %v2162
      %2251 = vmatmul.bf16.gmra.mxu0 %v2196
      %v2252 = vpop.f32.mrf.mxu0
      %v2253 = vadd.f32 %v2240, %v2252
      %v2254 = vpop.f32.mrf.mxu0
      %2255 = vdwg.mxu0
      %v2256 = vadd.f32 %v2036, %v2227
      %v2257 = vadd.f32 %v2037, %v2253
      %s2258 = scalar_lea.vmem %s2, 1800
      %v2259 = vld [vmem:[%s2258] sm:$0xff]
      %v2260 = vld [vmem:[%s2258 + $0x8] sm:$0xff]
      %v2261 = vld [vmem:[%s2258 + $0x10] sm:$0xff]
      %v2262 = vld [vmem:[%s2258 + $0x18] sm:$0xff]
      %v2263 = vld [vmem:[%s2258 + $0x20] sm:$0xff]
      %v2264 = vld [vmem:[%s2258 + $0x28] sm:$0xff]
      %v2265 = vld [vmem:[%s2258 + $0x30] sm:$0xff]
      %v2266 = vld [vmem:[%s2258 + $0x38] sm:$0xff]
      %v2267 = vld [vmem:[%s2258 + $0x40] sm:$0xff]
      %v2268 = vld [vmem:[%s2258 + $0x48] sm:$0xff]
      %v2269 = vld [vmem:[%s2258 + $0x50] sm:$0xff]
      %v2270 = vld [vmem:[%s2258 + $0x58] sm:$0xff]
      %v2271 = vld [vmem:[%s2258 + $0x60] sm:$0xff]
      %v2272 = vld [vmem:[%s2258 + $0x68] sm:$0xff]
      %v2273 = vld [vmem:[%s2258 + $0x70] sm:$0xff]
      %v2274 = vld [vmem:[%s2258 + $0x78] sm:$0xff]
      %v2275 = vld [vmem:[%s2258 + $0x80] sm:$0xff]
      %v2276 = vld [vmem:[%s2258 + $0x88] sm:$0xff]
      %v2277 = vld [vmem:[%s2258 + $0x90] sm:$0xff]
      %v2278 = vld [vmem:[%s2258 + $0x98] sm:$0xff]
      %v2279 = vld [vmem:[%s2258 + $0xa0] sm:$0xff]
      %v2280 = vld [vmem:[%s2258 + $0xa8] sm:$0xff]
      %v2281 = vld [vmem:[%s2258 + $0xb0] sm:$0xff]
      %v2282 = vld [vmem:[%s2258 + $0xb8] sm:$0xff]
      %v2283 = vld [vmem:[%s2258 + $0xc0] sm:$0x33]
      %v2285 = vshrl.u32 %v2067, 16
      %v2287 = vshrl.u32 %v2068, 16
      %v2315 = vunpack.c.l.b16 %v2259
      %v2316 = vunpack.c.h.b16 %v2259
      %v2317 = vunpack.c.l.b16 %v2260
      %v2318 = vunpack.c.h.b16 %v2260
      %v2319 = vunpack.c.l.b16 %v2261
      %v2320 = vunpack.c.h.b16 %v2261
      %v2321 = vunpack.c.l.b16 %v2262
      %v2322 = vunpack.c.h.b16 %v2262
      %v2323 = vunpack.c.l.b16 %v2263
      %v2324 = vunpack.c.h.b16 %v2263
      %v2325 = vunpack.c.l.b16 %v2264
      %v2326 = vunpack.c.h.b16 %v2264
      %v2327 = vunpack.c.l.b16 %v2265
      %v2328 = vunpack.c.h.b16 %v2265
      %v2329 = vunpack.c.l.b16 %v2266
      %v2330 = vunpack.c.h.b16 %v2266
      %v2331 = vunpack.c.l.b16 %v2267
      %v2332 = vunpack.c.h.b16 %v2267
      %v2333 = vunpack.c.l.b16 %v2268
      %v2334 = vunpack.c.h.b16 %v2268
      %v2335 = vunpack.c.l.b16 %v2269
      %v2336 = vunpack.c.h.b16 %v2269
      %v2337 = vunpack.c.l.b16 %v2270
      %v2338 = vunpack.c.h.b16 %v2270
      %v2339 = vunpack.c.l.b16 %v2271
      %v2340 = vunpack.c.h.b16 %v2271
      %v2341 = vunpack.c.l.b16 %v2272
      %v2342 = vunpack.c.h.b16 %v2272
      %v2343 = vunpack.c.l.b16 %v2273
      %v2344 = vunpack.c.h.b16 %v2273
      %v2345 = vunpack.c.l.b16 %v2274
      %v2346 = vunpack.c.h.b16 %v2274
      %v2347 = vunpack.c.l.b16 %v2275
      %v2348 = vunpack.c.h.b16 %v2275
      %v2349 = vunpack.c.l.b16 %v2276
      %v2350 = vunpack.c.h.b16 %v2276
      %v2351 = vunpack.c.l.b16 %v2277
      %v2352 = vunpack.c.h.b16 %v2277
      %v2353 = vunpack.c.l.b16 %v2278
      %v2354 = vunpack.c.h.b16 %v2278
      %v2355 = vunpack.c.l.b16 %v2279
      %v2356 = vunpack.c.h.b16 %v2279
      %v2357 = vunpack.c.l.b16 %v2280
      %v2358 = vunpack.c.h.b16 %v2280
      %v2359 = vunpack.c.l.b16 %v2281
      %v2360 = vunpack.c.h.b16 %v2281
      %v2361 = vunpack.c.l.b16 %v2282
      %v2362 = vunpack.c.h.b16 %v2282
      %v2363 = vunpack.c.l.b16 %v2283
      %v2364 = vunpack.c.h.b16 %v2283
      %v2365 = vpack.c.b16 %v2317, %v2315
      %v2366 = vpack.c.b16 %v2318, %v2316
      %v2367 = vpack.c.b16 %v2321, %v2319
      %v2368 = vpack.c.b16 %v2322, %v2320
      %v2369 = vpack.c.b16 %v2325, %v2323
      %v2370 = vpack.c.b16 %v2326, %v2324
      %v2371 = vpack.c.b16 %v2329, %v2327
      %v2372 = vpack.c.b16 %v2330, %v2328
      %v2373 = vpack.c.b16 %v2333, %v2331
      %v2374 = vpack.c.b16 %v2334, %v2332
      %v2375 = vpack.c.b16 %v2337, %v2335
      %v2376 = vpack.c.b16 %v2338, %v2336
      %v2377 = vpack.c.b16 %v2341, %v2339
      %v2378 = vpack.c.b16 %v2342, %v2340
      %v2379 = vpack.c.b16 %v2345, %v2343
      %v2380 = vpack.c.b16 %v2346, %v2344
      %v2381 = vpack.c.b16 %v2349, %v2347
      %v2382 = vpack.c.b16 %v2350, %v2348
      %v2383 = vpack.c.b16 %v2353, %v2351
      %v2384 = vpack.c.b16 %v2354, %v2352
      %v2385 = vpack.c.b16 %v2357, %v2355
      %v2386 = vpack.c.b16 %v2358, %v2356
      %v2387 = vpack.c.b16 %v2361, %v2359
      %v2388 = vpack.c.b16 %v2362, %v2360
      %v2389 = vpack.c.b16 %v2363, %v2363
      %v2390 = vpack.c.b16 %v2364, %v2364
      %v2416 = vsel %vm487, %v2287, 0
      %v2419 = vsel %vm491, %v2389, 0
      %v2422 = vsel %vm491, %v2390, 0
      %2424 = vmatpush.bf16.msra.mxu0 %v2379
      %2425 = vmatpush.bf16.msra.mxu0 %v2377
      %2426 = vmatpush.bf16.msra.mxu0 %v2375
      %2427 = vmatpush.bf16.msra.mxu0 %v2373
      %2428 = vmatpush.bf16.msra.mxu0 %v2371
      %2429 = vmatpush.bf16.msra.mxu0 %v2369
      %2430 = vmatpush.bf16.msra.mxu0 %v2367
      %2431 = vmatpush.bf16.msra.mxu0 %v2365
      %2432 = vmatmul.bf16.gmra.mxu0 %v2285
      %v2433 = vpop.f32.mrf.mxu0
      %v2434 = vadd.f32 0.0, %v2433
      %v2435 = vpop.f32.mrf.mxu0
      %2436 = vdwg.mxu0
      %2437 = vmatpush.bf16.msra.mxu0 0
      %2438 = vmatpush.bf16.msra.mxu0 0
      %2439 = vmatpush.bf16.msra.mxu0 0
      %2440 = vmatpush.bf16.msra.mxu0 %v2419
      %2441 = vmatpush.bf16.msra.mxu0 %v2387
      %2442 = vmatpush.bf16.msra.mxu0 %v2385
      %2443 = vmatpush.bf16.msra.mxu0 %v2383
      %2444 = vmatpush.bf16.msra.mxu0 %v2381
      %2445 = vmatmul.bf16.gmra.mxu0 %v2416
      %v2446 = vpop.f32.mrf.mxu0
      %v2447 = vadd.f32 %v2434, %v2446
      %v2448 = vpop.f32.mrf.mxu0
      %2449 = vdwg.mxu0
      %2450 = vmatpush.bf16.msra.mxu0 %v2380
      %2451 = vmatpush.bf16.msra.mxu0 %v2378
      %2452 = vmatpush.bf16.msra.mxu0 %v2376
      %2453 = vmatpush.bf16.msra.mxu0 %v2374
      %2454 = vmatpush.bf16.msra.mxu0 %v2372
      %2455 = vmatpush.bf16.msra.mxu0 %v2370
      %2456 = vmatpush.bf16.msra.mxu0 %v2368
      %2457 = vmatpush.bf16.msra.mxu0 %v2366
      %2458 = vmatmul.bf16.gmra.mxu0 %v2285
      %v2459 = vpop.f32.mrf.mxu0
      %v2460 = vadd.f32 0.0, %v2459
      %v2461 = vpop.f32.mrf.mxu0
      %2462 = vdwg.mxu0
      %2463 = vmatpush.bf16.msra.mxu0 0
      %2464 = vmatpush.bf16.msra.mxu0 0
      %2465 = vmatpush.bf16.msra.mxu0 0
      %2466 = vmatpush.bf16.msra.mxu0 %v2422
      %2467 = vmatpush.bf16.msra.mxu0 %v2388
      %2468 = vmatpush.bf16.msra.mxu0 %v2386
      %2469 = vmatpush.bf16.msra.mxu0 %v2384
      %2470 = vmatpush.bf16.msra.mxu0 %v2382
      %2471 = vmatmul.bf16.gmra.mxu0 %v2416
      %v2472 = vpop.f32.mrf.mxu0
      %v2473 = vadd.f32 %v2460, %v2472
      %v2474 = vpop.f32.mrf.mxu0
      %2475 = vdwg.mxu0
      %v2476 = vadd.f32 %v2256, %v2447
      %v2477 = vadd.f32 %v2257, %v2473
      %s2478 = scalar_lea.vmem %s2, 2000
      %v2479 = vld [vmem:[%s2478] sm:$0xff]
      %v2480 = vld [vmem:[%s2478 + $0x8] sm:$0xff]
      %v2481 = vld [vmem:[%s2478 + $0x10] sm:$0xff]
      %v2482 = vld [vmem:[%s2478 + $0x18] sm:$0xff]
      %v2483 = vld [vmem:[%s2478 + $0x20] sm:$0xff]
      %v2484 = vld [vmem:[%s2478 + $0x28] sm:$0xff]
      %v2485 = vld [vmem:[%s2478 + $0x30] sm:$0xff]
      %v2486 = vld [vmem:[%s2478 + $0x38] sm:$0xff]
      %v2487 = vld [vmem:[%s2478 + $0x40] sm:$0xff]
      %v2488 = vld [vmem:[%s2478 + $0x48] sm:$0xff]
      %v2489 = vld [vmem:[%s2478 + $0x50] sm:$0xff]
      %v2490 = vld [vmem:[%s2478 + $0x58] sm:$0xff]
      %v2491 = vld [vmem:[%s2478 + $0x60] sm:$0xff]
      %v2492 = vld [vmem:[%s2478 + $0x68] sm:$0xff]
      %v2493 = vld [vmem:[%s2478 + $0x70] sm:$0xff]
      %v2494 = vld [vmem:[%s2478 + $0x78] sm:$0xff]
      %v2495 = vld [vmem:[%s2478 + $0x80] sm:$0xff]
      %v2496 = vld [vmem:[%s2478 + $0x88] sm:$0xff]
      %v2497 = vld [vmem:[%s2478 + $0x90] sm:$0xff]
      %v2498 = vld [vmem:[%s2478 + $0x98] sm:$0xff]
      %v2499 = vld [vmem:[%s2478 + $0xa0] sm:$0xff]
      %v2500 = vld [vmem:[%s2478 + $0xa8] sm:$0xff]
      %v2501 = vld [vmem:[%s2478 + $0xb0] sm:$0xff]
      %v2502 = vld [vmem:[%s2478 + $0xb8] sm:$0xff]
      %v2503 = vld [vmem:[%s2478 + $0xc0] sm:$0x33]
      %v2504 = vrot.slane %v2067, 1
      %v2505 = vrot.slane %v2068, 1
      %v2532 = vunpack.c.l.b16 %v2479
      %v2533 = vunpack.c.h.b16 %v2479
      %v2534 = vunpack.c.l.b16 %v2480
      %v2535 = vunpack.c.h.b16 %v2480
      %v2536 = vunpack.c.l.b16 %v2481
      %v2537 = vunpack.c.h.b16 %v2481
      %v2538 = vunpack.c.l.b16 %v2482
      %v2539 = vunpack.c.h.b16 %v2482
      %v2540 = vunpack.c.l.b16 %v2483
      %v2541 = vunpack.c.h.b16 %v2483
      %v2542 = vunpack.c.l.b16 %v2484
      %v2543 = vunpack.c.h.b16 %v2484
      %v2544 = vunpack.c.l.b16 %v2485
      %v2545 = vunpack.c.h.b16 %v2485
      %v2546 = vunpack.c.l.b16 %v2486
      %v2547 = vunpack.c.h.b16 %v2486
      %v2548 = vunpack.c.l.b16 %v2487
      %v2549 = vunpack.c.h.b16 %v2487
      %v2550 = vunpack.c.l.b16 %v2488
      %v2551 = vunpack.c.h.b16 %v2488
      %v2552 = vunpack.c.l.b16 %v2489
      %v2553 = vunpack.c.h.b16 %v2489
      %v2554 = vunpack.c.l.b16 %v2490
      %v2555 = vunpack.c.h.b16 %v2490
      %v2556 = vunpack.c.l.b16 %v2491
      %v2557 = vunpack.c.h.b16 %v2491
      %v2558 = vunpack.c.l.b16 %v2492
      %v2559 = vunpack.c.h.b16 %v2492
      %v2560 = vunpack.c.l.b16 %v2493
      %v2561 = vunpack.c.h.b16 %v2493
      %v2562 = vunpack.c.l.b16 %v2494
      %v2563 = vunpack.c.h.b16 %v2494
      %v2564 = vunpack.c.l.b16 %v2495
      %v2565 = vunpack.c.h.b16 %v2495
      %v2566 = vunpack.c.l.b16 %v2496
      %v2567 = vunpack.c.h.b16 %v2496
      %v2568 = vunpack.c.l.b16 %v2497
      %v2569 = vunpack.c.h.b16 %v2497
      %v2570 = vunpack.c.l.b16 %v2498
      %v2571 = vunpack.c.h.b16 %v2498
      %v2572 = vunpack.c.l.b16 %v2499
      %v2573 = vunpack.c.h.b16 %v2499
      %v2574 = vunpack.c.l.b16 %v2500
      %v2575 = vunpack.c.h.b16 %v2500
      %v2576 = vunpack.c.l.b16 %v2501
      %v2577 = vunpack.c.h.b16 %v2501
      %v2578 = vunpack.c.l.b16 %v2502
      %v2579 = vunpack.c.h.b16 %v2502
      %v2580 = vunpack.c.l.b16 %v2503
      %v2581 = vunpack.c.h.b16 %v2503
      %v2582 = vpack.c.b16 %v2534, %v2532
      %v2583 = vpack.c.b16 %v2535, %v2533
      %v2584 = vpack.c.b16 %v2538, %v2536
      %v2585 = vpack.c.b16 %v2539, %v2537
      %v2586 = vpack.c.b16 %v2542, %v2540
      %v2587 = vpack.c.b16 %v2543, %v2541
      %v2588 = vpack.c.b16 %v2546, %v2544
      %v2589 = vpack.c.b16 %v2547, %v2545
      %v2590 = vpack.c.b16 %v2550, %v2548
      %v2591 = vpack.c.b16 %v2551, %v2549
      %v2592 = vpack.c.b16 %v2554, %v2552
      %v2593 = vpack.c.b16 %v2555, %v2553
      %v2594 = vpack.c.b16 %v2558, %v2556
      %v2595 = vpack.c.b16 %v2559, %v2557
      %v2596 = vpack.c.b16 %v2562, %v2560
      %v2597 = vpack.c.b16 %v2563, %v2561
      %v2598 = vpack.c.b16 %v2566, %v2564
      %v2599 = vpack.c.b16 %v2567, %v2565
      %v2600 = vpack.c.b16 %v2570, %v2568
      %v2601 = vpack.c.b16 %v2571, %v2569
      %v2602 = vpack.c.b16 %v2574, %v2572
      %v2603 = vpack.c.b16 %v2575, %v2573
      %v2604 = vpack.c.b16 %v2578, %v2576
      %v2605 = vpack.c.b16 %v2579, %v2577
      %v2606 = vpack.c.b16 %v2580, %v2580
      %v2607 = vpack.c.b16 %v2581, %v2581
      %v2633 = vsel %vm487, %v2505, 0
      %v2636 = vsel %vm491, %v2606, 0
      %v2639 = vsel %vm491, %v2607, 0
      %2641 = vmatpush.bf16.msra.mxu0 %v2596
      %2642 = vmatpush.bf16.msra.mxu0 %v2594
      %2643 = vmatpush.bf16.msra.mxu0 %v2592
      %2644 = vmatpush.bf16.msra.mxu0 %v2590
      %2645 = vmatpush.bf16.msra.mxu0 %v2588
      %2646 = vmatpush.bf16.msra.mxu0 %v2586
      %2647 = vmatpush.bf16.msra.mxu0 %v2584
      %2648 = vmatpush.bf16.msra.mxu0 %v2582
      %2649 = vmatmul.bf16.gmra.mxu0 %v2504
      %v2650 = vpop.f32.mrf.mxu0
      %v2651 = vadd.f32 0.0, %v2650
      %v2652 = vpop.f32.mrf.mxu0
      %2653 = vdwg.mxu0
      %2654 = vmatpush.bf16.msra.mxu0 0
      %2655 = vmatpush.bf16.msra.mxu0 0
      %2656 = vmatpush.bf16.msra.mxu0 0
      %2657 = vmatpush.bf16.msra.mxu0 %v2636
      %2658 = vmatpush.bf16.msra.mxu0 %v2604
      %2659 = vmatpush.bf16.msra.mxu0 %v2602
      %2660 = vmatpush.bf16.msra.mxu0 %v2600
      %2661 = vmatpush.bf16.msra.mxu0 %v2598
      %2662 = vmatmul.bf16.gmra.mxu0 %v2633
      %v2663 = vpop.f32.mrf.mxu0
      %v2664 = vadd.f32 %v2651, %v2663
      %v2665 = vpop.f32.mrf.mxu0
      %2666 = vdwg.mxu0
      %2667 = vmatpush.bf16.msra.mxu0 %v2597
      %2668 = vmatpush.bf16.msra.mxu0 %v2595
      %2669 = vmatpush.bf16.msra.mxu0 %v2593
      %2670 = vmatpush.bf16.msra.mxu0 %v2591
      %2671 = vmatpush.bf16.msra.mxu0 %v2589
      %2672 = vmatpush.bf16.msra.mxu0 %v2587
      %2673 = vmatpush.bf16.msra.mxu0 %v2585
      %2674 = vmatpush.bf16.msra.mxu0 %v2583
      %2675 = vmatmul.bf16.gmra.mxu0 %v2504
      %v2676 = vpop.f32.mrf.mxu0
      %v2677 = vadd.f32 0.0, %v2676
      %v2678 = vpop.f32.mrf.mxu0
      %2679 = vdwg.mxu0
      %2680 = vmatpush.bf16.msra.mxu0 0
      %2681 = vmatpush.bf16.msra.mxu0 0
      %2682 = vmatpush.bf16.msra.mxu0 0
      %2683 = vmatpush.bf16.msra.mxu0 %v2639
      %2684 = vmatpush.bf16.msra.mxu0 %v2605
      %2685 = vmatpush.bf16.msra.mxu0 %v2603
      %2686 = vmatpush.bf16.msra.mxu0 %v2601
      %2687 = vmatpush.bf16.msra.mxu0 %v2599
      %2688 = vmatmul.bf16.gmra.mxu0 %v2633
      %v2689 = vpop.f32.mrf.mxu0
      %v2690 = vadd.f32 %v2677, %v2689
      %v2691 = vpop.f32.mrf.mxu0
      %2692 = vdwg.mxu0
      %v2693 = vadd.f32 %v2476, %v2664
      %v2694 = vadd.f32 %v2477, %v2690
      %s2695 = scalar_lea.vmem %s2, 2200
      %v2696 = vld [vmem:[%s2695] sm:$0xff]
      %v2697 = vld [vmem:[%s2695 + $0x8] sm:$0xff]
      %v2698 = vld [vmem:[%s2695 + $0x10] sm:$0xff]
      %v2699 = vld [vmem:[%s2695 + $0x18] sm:$0xff]
      %v2700 = vld [vmem:[%s2695 + $0x20] sm:$0xff]
      %v2701 = vld [vmem:[%s2695 + $0x28] sm:$0xff]
      %v2702 = vld [vmem:[%s2695 + $0x30] sm:$0xff]
      %v2703 = vld [vmem:[%s2695 + $0x38] sm:$0xff]
      %v2704 = vld [vmem:[%s2695 + $0x40] sm:$0xff]
      %v2705 = vld [vmem:[%s2695 + $0x48] sm:$0xff]
      %v2706 = vld [vmem:[%s2695 + $0x50] sm:$0xff]
      %v2707 = vld [vmem:[%s2695 + $0x58] sm:$0xff]
      %v2708 = vld [vmem:[%s2695 + $0x60] sm:$0xff]
      %v2709 = vld [vmem:[%s2695 + $0x68] sm:$0xff]
      %v2710 = vld [vmem:[%s2695 + $0x70] sm:$0xff]
      %v2711 = vld [vmem:[%s2695 + $0x78] sm:$0xff]
      %v2712 = vld [vmem:[%s2695 + $0x80] sm:$0xff]
      %v2713 = vld [vmem:[%s2695 + $0x88] sm:$0xff]
      %v2714 = vld [vmem:[%s2695 + $0x90] sm:$0xff]
      %v2715 = vld [vmem:[%s2695 + $0x98] sm:$0xff]
      %v2716 = vld [vmem:[%s2695 + $0xa0] sm:$0xff]
      %v2717 = vld [vmem:[%s2695 + $0xa8] sm:$0xff]
      %v2718 = vld [vmem:[%s2695 + $0xb0] sm:$0xff]
      %v2719 = vld [vmem:[%s2695 + $0xb8] sm:$0xff]
      %v2720 = vld [vmem:[%s2695 + $0xc0] sm:$0x33]
      %v2721 = vrot.slane %v2285, 1
      %v2722 = vrot.slane %v2287, 1
      %v2749 = vunpack.c.l.b16 %v2696
      %v2750 = vunpack.c.h.b16 %v2696
      %v2751 = vunpack.c.l.b16 %v2697
      %v2752 = vunpack.c.h.b16 %v2697
      %v2753 = vunpack.c.l.b16 %v2698
      %v2754 = vunpack.c.h.b16 %v2698
      %v2755 = vunpack.c.l.b16 %v2699
      %v2756 = vunpack.c.h.b16 %v2699
      %v2757 = vunpack.c.l.b16 %v2700
      %v2758 = vunpack.c.h.b16 %v2700
      %v2759 = vunpack.c.l.b16 %v2701
      %v2760 = vunpack.c.h.b16 %v2701
      %v2761 = vunpack.c.l.b16 %v2702
      %v2762 = vunpack.c.h.b16 %v2702
      %v2763 = vunpack.c.l.b16 %v2703
      %v2764 = vunpack.c.h.b16 %v2703
      %v2765 = vunpack.c.l.b16 %v2704
      %v2766 = vunpack.c.h.b16 %v2704
      %v2767 = vunpack.c.l.b16 %v2705
      %v2768 = vunpack.c.h.b16 %v2705
      %v2769 = vunpack.c.l.b16 %v2706
      %v2770 = vunpack.c.h.b16 %v2706
      %v2771 = vunpack.c.l.b16 %v2707
      %v2772 = vunpack.c.h.b16 %v2707
      %v2773 = vunpack.c.l.b16 %v2708
      %v2774 = vunpack.c.h.b16 %v2708
      %v2775 = vunpack.c.l.b16 %v2709
      %v2776 = vunpack.c.h.b16 %v2709
      %v2777 = vunpack.c.l.b16 %v2710
      %v2778 = vunpack.c.h.b16 %v2710
      %v2779 = vunpack.c.l.b16 %v2711
      %v2780 = vunpack.c.h.b16 %v2711
      %v2781 = vunpack.c.l.b16 %v2712
      %v2782 = vunpack.c.h.b16 %v2712
      %v2783 = vunpack.c.l.b16 %v2713
      %v2784 = vunpack.c.h.b16 %v2713
      %v2785 = vunpack.c.l.b16 %v2714
      %v2786 = vunpack.c.h.b16 %v2714
      %v2787 = vunpack.c.l.b16 %v2715
      %v2788 = vunpack.c.h.b16 %v2715
      %v2789 = vunpack.c.l.b16 %v2716
      %v2790 = vunpack.c.h.b16 %v2716
      %v2791 = vunpack.c.l.b16 %v2717
      %v2792 = vunpack.c.h.b16 %v2717
      %v2793 = vunpack.c.l.b16 %v2718
      %v2794 = vunpack.c.h.b16 %v2718
      %v2795 = vunpack.c.l.b16 %v2719
      %v2796 = vunpack.c.h.b16 %v2719
      %v2797 = vunpack.c.l.b16 %v2720
      %v2798 = vunpack.c.h.b16 %v2720
      %v2799 = vpack.c.b16 %v2751, %v2749
      %v2800 = vpack.c.b16 %v2752, %v2750
      %v2801 = vpack.c.b16 %v2755, %v2753
      %v2802 = vpack.c.b16 %v2756, %v2754
      %v2803 = vpack.c.b16 %v2759, %v2757
      %v2804 = vpack.c.b16 %v2760, %v2758
      %v2805 = vpack.c.b16 %v2763, %v2761
      %v2806 = vpack.c.b16 %v2764, %v2762
      %v2807 = vpack.c.b16 %v2767, %v2765
      %v2808 = vpack.c.b16 %v2768, %v2766
      %v2809 = vpack.c.b16 %v2771, %v2769
      %v2810 = vpack.c.b16 %v2772, %v2770
      %v2811 = vpack.c.b16 %v2775, %v2773
      %v2812 = vpack.c.b16 %v2776, %v2774
      %v2813 = vpack.c.b16 %v2779, %v2777
      %v2814 = vpack.c.b16 %v2780, %v2778
      %v2815 = vpack.c.b16 %v2783, %v2781
      %v2816 = vpack.c.b16 %v2784, %v2782
      %v2817 = vpack.c.b16 %v2787, %v2785
      %v2818 = vpack.c.b16 %v2788, %v2786
      %v2819 = vpack.c.b16 %v2791, %v2789
      %v2820 = vpack.c.b16 %v2792, %v2790
      %v2821 = vpack.c.b16 %v2795, %v2793
      %v2822 = vpack.c.b16 %v2796, %v2794
      %v2823 = vpack.c.b16 %v2797, %v2797
      %v2824 = vpack.c.b16 %v2798, %v2798
      %v2850 = vsel %vm487, %v2722, 0
      %v2853 = vsel %vm491, %v2823, 0
      %v2856 = vsel %vm491, %v2824, 0
      %2858 = vmatpush.bf16.msra.mxu0 %v2813
      %2859 = vmatpush.bf16.msra.mxu0 %v2811
      %2860 = vmatpush.bf16.msra.mxu0 %v2809
      %2861 = vmatpush.bf16.msra.mxu0 %v2807
      %2862 = vmatpush.bf16.msra.mxu0 %v2805
      %2863 = vmatpush.bf16.msra.mxu0 %v2803
      %2864 = vmatpush.bf16.msra.mxu0 %v2801
      %2865 = vmatpush.bf16.msra.mxu0 %v2799
      %2866 = vmatmul.bf16.gmra.mxu0 %v2721
      %v2867 = vpop.f32.mrf.mxu0
      %v2868 = vadd.f32 0.0, %v2867
      %v2869 = vpop.f32.mrf.mxu0
      %2870 = vdwg.mxu0
      %2871 = vmatpush.bf16.msra.mxu0 0
      %2872 = vmatpush.bf16.msra.mxu0 0
      %2873 = vmatpush.bf16.msra.mxu0 0
      %2874 = vmatpush.bf16.msra.mxu0 %v2853
      %2875 = vmatpush.bf16.msra.mxu0 %v2821
      %2876 = vmatpush.bf16.msra.mxu0 %v2819
      %2877 = vmatpush.bf16.msra.mxu0 %v2817
      %2878 = vmatpush.bf16.msra.mxu0 %v2815
      %2879 = vmatmul.bf16.gmra.mxu0 %v2850
      %v2880 = vpop.f32.mrf.mxu0
      %v2881 = vadd.f32 %v2868, %v2880
      %v2882 = vpop.f32.mrf.mxu0
      %2883 = vdwg.mxu0
      %2884 = vmatpush.bf16.msra.mxu0 %v2814
      %2885 = vmatpush.bf16.msra.mxu0 %v2812
      %2886 = vmatpush.bf16.msra.mxu0 %v2810
      %2887 = vmatpush.bf16.msra.mxu0 %v2808
      %2888 = vmatpush.bf16.msra.mxu0 %v2806
      %2889 = vmatpush.bf16.msra.mxu0 %v2804
      %2890 = vmatpush.bf16.msra.mxu0 %v2802
      %2891 = vmatpush.bf16.msra.mxu0 %v2800
      %2892 = vmatmul.bf16.gmra.mxu0 %v2721
      %v2893 = vpop.f32.mrf.mxu0
      %v2894 = vadd.f32 0.0, %v2893
      %v2895 = vpop.f32.mrf.mxu0
      %2896 = vdwg.mxu0
      %2897 = vmatpush.bf16.msra.mxu0 0
      %2898 = vmatpush.bf16.msra.mxu0 0
      %2899 = vmatpush.bf16.msra.mxu0 0
      %2900 = vmatpush.bf16.msra.mxu0 %v2856
      %2901 = vmatpush.bf16.msra.mxu0 %v2822
      %2902 = vmatpush.bf16.msra.mxu0 %v2820
      %2903 = vmatpush.bf16.msra.mxu0 %v2818
      %2904 = vmatpush.bf16.msra.mxu0 %v2816
      %2905 = vmatmul.bf16.gmra.mxu0 %v2850
      %v2906 = vpop.f32.mrf.mxu0
      %v2907 = vadd.f32 %v2894, %v2906
      %v2908 = vpop.f32.mrf.mxu0
      %2909 = vdwg.mxu0
      %v2910 = vadd.f32 %v2693, %v2881
      %v2911 = vadd.f32 %v2694, %v2907
      %s2912 = scalar_lea.vmem %s2, 2400
      %v2913 = vld [vmem:[%s2912] sm:$0xff]
      %v2914 = vld [vmem:[%s2912 + $0x8] sm:$0xff]
      %v2915 = vld [vmem:[%s2912 + $0x10] sm:$0xff]
      %v2916 = vld [vmem:[%s2912 + $0x18] sm:$0xff]
      %v2917 = vld [vmem:[%s2912 + $0x20] sm:$0xff]
      %v2918 = vld [vmem:[%s2912 + $0x28] sm:$0xff]
      %v2919 = vld [vmem:[%s2912 + $0x30] sm:$0xff]
      %v2920 = vld [vmem:[%s2912 + $0x38] sm:$0xff]
      %v2921 = vld [vmem:[%s2912 + $0x40] sm:$0xff]
      %v2922 = vld [vmem:[%s2912 + $0x48] sm:$0xff]
      %v2923 = vld [vmem:[%s2912 + $0x50] sm:$0xff]
      %v2924 = vld [vmem:[%s2912 + $0x58] sm:$0xff]
      %v2925 = vld [vmem:[%s2912 + $0x60] sm:$0xff]
      %v2926 = vld [vmem:[%s2912 + $0x68] sm:$0xff]
      %v2927 = vld [vmem:[%s2912 + $0x70] sm:$0xff]
      %v2928 = vld [vmem:[%s2912 + $0x78] sm:$0xff]
      %v2929 = vld [vmem:[%s2912 + $0x80] sm:$0xff]
      %v2930 = vld [vmem:[%s2912 + $0x88] sm:$0xff]
      %v2931 = vld [vmem:[%s2912 + $0x90] sm:$0xff]
      %v2932 = vld [vmem:[%s2912 + $0x98] sm:$0xff]
      %v2933 = vld [vmem:[%s2912 + $0xa0] sm:$0xff]
      %v2934 = vld [vmem:[%s2912 + $0xa8] sm:$0xff]
      %v2935 = vld [vmem:[%s2912 + $0xb0] sm:$0xff]
      %v2936 = vld [vmem:[%s2912 + $0xb8] sm:$0xff]
      %v2937 = vld [vmem:[%s2912 + $0xc0] sm:$0x33]
      %v2938 = vrot.slane %v2067, 2
      %v2939 = vrot.slane %v2068, 2
      %v2966 = vunpack.c.l.b16 %v2913
      %v2967 = vunpack.c.h.b16 %v2913
      %v2968 = vunpack.c.l.b16 %v2914
      %v2969 = vunpack.c.h.b16 %v2914
      %v2970 = vunpack.c.l.b16 %v2915
      %v2971 = vunpack.c.h.b16 %v2915
      %v2972 = vunpack.c.l.b16 %v2916
      %v2973 = vunpack.c.h.b16 %v2916
      %v2974 = vunpack.c.l.b16 %v2917
      %v2975 = vunpack.c.h.b16 %v2917
      %v2976 = vunpack.c.l.b16 %v2918
      %v2977 = vunpack.c.h.b16 %v2918
      %v2978 = vunpack.c.l.b16 %v2919
      %v2979 = vunpack.c.h.b16 %v2919
      %v2980 = vunpack.c.l.b16 %v2920
      %v2981 = vunpack.c.h.b16 %v2920
      %v2982 = vunpack.c.l.b16 %v2921
      %v2983 = vunpack.c.h.b16 %v2921
      %v2984 = vunpack.c.l.b16 %v2922
      %v2985 = vunpack.c.h.b16 %v2922
      %v2986 = vunpack.c.l.b16 %v2923
      %v2987 = vunpack.c.h.b16 %v2923
      %v2988 = vunpack.c.l.b16 %v2924
      %v2989 = vunpack.c.h.b16 %v2924
      %v2990 = vunpack.c.l.b16 %v2925
      %v2991 = vunpack.c.h.b16 %v2925
      %v2992 = vunpack.c.l.b16 %v2926
      %v2993 = vunpack.c.h.b16 %v2926
      %v2994 = vunpack.c.l.b16 %v2927
      %v2995 = vunpack.c.h.b16 %v2927
      %v2996 = vunpack.c.l.b16 %v2928
      %v2997 = vunpack.c.h.b16 %v2928
      %v2998 = vunpack.c.l.b16 %v2929
      %v2999 = vunpack.c.h.b16 %v2929
      %v3000 = vunpack.c.l.b16 %v2930
      %v3001 = vunpack.c.h.b16 %v2930
      %v3002 = vunpack.c.l.b16 %v2931
      %v3003 = vunpack.c.h.b16 %v2931
      %v3004 = vunpack.c.l.b16 %v2932
      %v3005 = vunpack.c.h.b16 %v2932
      %v3006 = vunpack.c.l.b16 %v2933
      %v3007 = vunpack.c.h.b16 %v2933
      %v3008 = vunpack.c.l.b16 %v2934
      %v3009 = vunpack.c.h.b16 %v2934
      %v3010 = vunpack.c.l.b16 %v2935
      %v3011 = vunpack.c.h.b16 %v2935
      %v3012 = vunpack.c.l.b16 %v2936
      %v3013 = vunpack.c.h.b16 %v2936
      %v3014 = vunpack.c.l.b16 %v2937
      %v3015 = vunpack.c.h.b16 %v2937
      %v3016 = vpack.c.b16 %v2968, %v2966
      %v3017 = vpack.c.b16 %v2969, %v2967
      %v3018 = vpack.c.b16 %v2972, %v2970
      %v3019 = vpack.c.b16 %v2973, %v2971
      %v3020 = vpack.c.b16 %v2976, %v2974
      %v3021 = vpack.c.b16 %v2977, %v2975
      %v3022 = vpack.c.b16 %v2980, %v2978
      %v3023 = vpack.c.b16 %v2981, %v2979
      %v3024 = vpack.c.b16 %v2984, %v2982
      %v3025 = vpack.c.b16 %v2985, %v2983
      %v3026 = vpack.c.b16 %v2988, %v2986
      %v3027 = vpack.c.b16 %v2989, %v2987
      %v3028 = vpack.c.b16 %v2992, %v2990
      %v3029 = vpack.c.b16 %v2993, %v2991
      %v3030 = vpack.c.b16 %v2996, %v2994
      %v3031 = vpack.c.b16 %v2997, %v2995
      %v3032 = vpack.c.b16 %v3000, %v2998
      %v3033 = vpack.c.b16 %v3001, %v2999
      %v3034 = vpack.c.b16 %v3004, %v3002
      %v3035 = vpack.c.b16 %v3005, %v3003
      %v3036 = vpack.c.b16 %v3008, %v3006
      %v3037 = vpack.c.b16 %v3009, %v3007
      %v3038 = vpack.c.b16 %v3012, %v3010
      %v3039 = vpack.c.b16 %v3013, %v3011
      %v3040 = vpack.c.b16 %v3014, %v3014
      %v3041 = vpack.c.b16 %v3015, %v3015
      %v3067 = vsel %vm487, %v2939, 0
      %v3070 = vsel %vm491, %v3040, 0
      %v3073 = vsel %vm491, %v3041, 0
      %3075 = vmatpush.bf16.msra.mxu0 %v3030
      %3076 = vmatpush.bf16.msra.mxu0 %v3028
      %3077 = vmatpush.bf16.msra.mxu0 %v3026
      %3078 = vmatpush.bf16.msra.mxu0 %v3024
      %3079 = vmatpush.bf16.msra.mxu0 %v3022
      %3080 = vmatpush.bf16.msra.mxu0 %v3020
      %3081 = vmatpush.bf16.msra.mxu0 %v3018
      %3082 = vmatpush.bf16.msra.mxu0 %v3016
      %3083 = vmatmul.bf16.gmra.mxu0 %v2938
      %v3084 = vpop.f32.mrf.mxu0
      %v3085 = vadd.f32 0.0, %v3084
      %v3086 = vpop.f32.mrf.mxu0
      %3087 = vdwg.mxu0
      %3088 = vmatpush.bf16.msra.mxu0 0
      %3089 = vmatpush.bf16.msra.mxu0 0
      %3090 = vmatpush.bf16.msra.mxu0 0
      %3091 = vmatpush.bf16.msra.mxu0 %v3070
      %3092 = vmatpush.bf16.msra.mxu0 %v3038
      %3093 = vmatpush.bf16.msra.mxu0 %v3036
      %3094 = vmatpush.bf16.msra.mxu0 %v3034
      %3095 = vmatpush.bf16.msra.mxu0 %v3032
      %3096 = vmatmul.bf16.gmra.mxu0 %v3067
      %v3097 = vpop.f32.mrf.mxu0
      %v3098 = vadd.f32 %v3085, %v3097
      %v3099 = vpop.f32.mrf.mxu0
      %3100 = vdwg.mxu0
      %3101 = vmatpush.bf16.msra.mxu0 %v3031
      %3102 = vmatpush.bf16.msra.mxu0 %v3029
      %3103 = vmatpush.bf16.msra.mxu0 %v3027
      %3104 = vmatpush.bf16.msra.mxu0 %v3025
      %3105 = vmatpush.bf16.msra.mxu0 %v3023
      %3106 = vmatpush.bf16.msra.mxu0 %v3021
      %3107 = vmatpush.bf16.msra.mxu0 %v3019
      %3108 = vmatpush.bf16.msra.mxu0 %v3017
      %3109 = vmatmul.bf16.gmra.mxu0 %v2938
      %v3110 = vpop.f32.mrf.mxu0
      %v3111 = vadd.f32 0.0, %v3110
      %v3112 = vpop.f32.mrf.mxu0
      %3113 = vdwg.mxu0
      %3114 = vmatpush.bf16.msra.mxu0 0
      %3115 = vmatpush.bf16.msra.mxu0 0
      %3116 = vmatpush.bf16.msra.mxu0 0
      %3117 = vmatpush.bf16.msra.mxu0 %v3073
      %3118 = vmatpush.bf16.msra.mxu0 %v3039
      %3119 = vmatpush.bf16.msra.mxu0 %v3037
      %3120 = vmatpush.bf16.msra.mxu0 %v3035
      %3121 = vmatpush.bf16.msra.mxu0 %v3033
      %3122 = vmatmul.bf16.gmra.mxu0 %v3067
      %v3123 = vpop.f32.mrf.mxu0
      %v3124 = vadd.f32 %v3111, %v3123
      %v3125 = vpop.f32.mrf.mxu0
      %3126 = vdwg.mxu0
      %v3127 = vadd.f32 %v2910, %v3098
      %v3128 = vadd.f32 %v2911, %v3124
      %s3129 = scalar_lea.vmem %s2, 2600
      %v3130 = vld [vmem:[%s3129] sm:$0xff]
      %v3131 = vld [vmem:[%s3129 + $0x8] sm:$0xff]
      %v3132 = vld [vmem:[%s3129 + $0x10] sm:$0xff]
      %v3133 = vld [vmem:[%s3129 + $0x18] sm:$0xff]
      %v3134 = vld [vmem:[%s3129 + $0x20] sm:$0xff]
      %v3135 = vld [vmem:[%s3129 + $0x28] sm:$0xff]
      %v3136 = vld [vmem:[%s3129 + $0x30] sm:$0xff]
      %v3137 = vld [vmem:[%s3129 + $0x38] sm:$0xff]
      %v3138 = vld [vmem:[%s3129 + $0x40] sm:$0xff]
      %v3139 = vld [vmem:[%s3129 + $0x48] sm:$0xff]
      %v3140 = vld [vmem:[%s3129 + $0x50] sm:$0xff]
      %v3141 = vld [vmem:[%s3129 + $0x58] sm:$0xff]
      %v3142 = vld [vmem:[%s3129 + $0x60] sm:$0xff]
      %v3143 = vld [vmem:[%s3129 + $0x68] sm:$0xff]
      %v3144 = vld [vmem:[%s3129 + $0x70] sm:$0xff]
      %v3145 = vld [vmem:[%s3129 + $0x78] sm:$0xff]
      %v3146 = vld [vmem:[%s3129 + $0x80] sm:$0xff]
      %v3147 = vld [vmem:[%s3129 + $0x88] sm:$0xff]
      %v3148 = vld [vmem:[%s3129 + $0x90] sm:$0xff]
      %v3149 = vld [vmem:[%s3129 + $0x98] sm:$0xff]
      %v3150 = vld [vmem:[%s3129 + $0xa0] sm:$0xff]
      %v3151 = vld [vmem:[%s3129 + $0xa8] sm:$0xff]
      %v3152 = vld [vmem:[%s3129 + $0xb0] sm:$0xff]
      %v3153 = vld [vmem:[%s3129 + $0xb8] sm:$0xff]
      %v3154 = vld [vmem:[%s3129 + $0xc0] sm:$0x33]
      %v3155 = vrot.slane %v2285, 2
      %v3156 = vrot.slane %v2287, 2
      %v3183 = vunpack.c.l.b16 %v3130
      %v3184 = vunpack.c.h.b16 %v3130
      %v3185 = vunpack.c.l.b16 %v3131
      %v3186 = vunpack.c.h.b16 %v3131
      %v3187 = vunpack.c.l.b16 %v3132
      %v3188 = vunpack.c.h.b16 %v3132
      %v3189 = vunpack.c.l.b16 %v3133
      %v3190 = vunpack.c.h.b16 %v3133
      %v3191 = vunpack.c.l.b16 %v3134
      %v3192 = vunpack.c.h.b16 %v3134
      %v3193 = vunpack.c.l.b16 %v3135
      %v3194 = vunpack.c.h.b16 %v3135
      %v3195 = vunpack.c.l.b16 %v3136
      %v3196 = vunpack.c.h.b16 %v3136
      %v3197 = vunpack.c.l.b16 %v3137
      %v3198 = vunpack.c.h.b16 %v3137
      %v3199 = vunpack.c.l.b16 %v3138
      %v3200 = vunpack.c.h.b16 %v3138
      %v3201 = vunpack.c.l.b16 %v3139
      %v3202 = vunpack.c.h.b16 %v3139
      %v3203 = vunpack.c.l.b16 %v3140
      %v3204 = vunpack.c.h.b16 %v3140
      %v3205 = vunpack.c.l.b16 %v3141
      %v3206 = vunpack.c.h.b16 %v3141
      %v3207 = vunpack.c.l.b16 %v3142
      %v3208 = vunpack.c.h.b16 %v3142
      %v3209 = vunpack.c.l.b16 %v3143
      %v3210 = vunpack.c.h.b16 %v3143
      %v3211 = vunpack.c.l.b16 %v3144
      %v3212 = vunpack.c.h.b16 %v3144
      %v3213 = vunpack.c.l.b16 %v3145
      %v3214 = vunpack.c.h.b16 %v3145
      %v3215 = vunpack.c.l.b16 %v3146
      %v3216 = vunpack.c.h.b16 %v3146
      %v3217 = vunpack.c.l.b16 %v3147
      %v3218 = vunpack.c.h.b16 %v3147
      %v3219 = vunpack.c.l.b16 %v3148
      %v3220 = vunpack.c.h.b16 %v3148
      %v3221 = vunpack.c.l.b16 %v3149
      %v3222 = vunpack.c.h.b16 %v3149
      %v3223 = vunpack.c.l.b16 %v3150
      %v3224 = vunpack.c.h.b16 %v3150
      %v3225 = vunpack.c.l.b16 %v3151
      %v3226 = vunpack.c.h.b16 %v3151
      %v3227 = vunpack.c.l.b16 %v3152
      %v3228 = vunpack.c.h.b16 %v3152
      %v3229 = vunpack.c.l.b16 %v3153
      %v3230 = vunpack.c.h.b16 %v3153
      %v3231 = vunpack.c.l.b16 %v3154
      %v3232 = vunpack.c.h.b16 %v3154
      %v3233 = vpack.c.b16 %v3185, %v3183
      %v3234 = vpack.c.b16 %v3186, %v3184
      %v3235 = vpack.c.b16 %v3189, %v3187
      %v3236 = vpack.c.b16 %v3190, %v3188
      %v3237 = vpack.c.b16 %v3193, %v3191
      %v3238 = vpack.c.b16 %v3194, %v3192
      %v3239 = vpack.c.b16 %v3197, %v3195
      %v3240 = vpack.c.b16 %v3198, %v3196
      %v3241 = vpack.c.b16 %v3201, %v3199
      %v3242 = vpack.c.b16 %v3202, %v3200
      %v3243 = vpack.c.b16 %v3205, %v3203
      %v3244 = vpack.c.b16 %v3206, %v3204
      %v3245 = vpack.c.b16 %v3209, %v3207
      %v3246 = vpack.c.b16 %v3210, %v3208
      %v3247 = vpack.c.b16 %v3213, %v3211
      %v3248 = vpack.c.b16 %v3214, %v3212
      %v3249 = vpack.c.b16 %v3217, %v3215
      %v3250 = vpack.c.b16 %v3218, %v3216
      %v3251 = vpack.c.b16 %v3221, %v3219
      %v3252 = vpack.c.b16 %v3222, %v3220
      %v3253 = vpack.c.b16 %v3225, %v3223
      %v3254 = vpack.c.b16 %v3226, %v3224
      %v3255 = vpack.c.b16 %v3229, %v3227
      %v3256 = vpack.c.b16 %v3230, %v3228
      %v3257 = vpack.c.b16 %v3231, %v3231
      %v3258 = vpack.c.b16 %v3232, %v3232
      %v3284 = vsel %vm487, %v3156, 0
      %v3287 = vsel %vm491, %v3257, 0
      %v3290 = vsel %vm491, %v3258, 0
      %3292 = vmatpush.bf16.msra.mxu0 %v3247
      %3293 = vmatpush.bf16.msra.mxu0 %v3245
      %3294 = vmatpush.bf16.msra.mxu0 %v3243
      %3295 = vmatpush.bf16.msra.mxu0 %v3241
      %3296 = vmatpush.bf16.msra.mxu0 %v3239
      %3297 = vmatpush.bf16.msra.mxu0 %v3237
      %3298 = vmatpush.bf16.msra.mxu0 %v3235
      %3299 = vmatpush.bf16.msra.mxu0 %v3233
      %3300 = vmatmul.bf16.gmra.mxu0 %v3155
      %v3301 = vpop.f32.mrf.mxu0
      %v3302 = vadd.f32 0.0, %v3301
      %v3303 = vpop.f32.mrf.mxu0
      %3304 = vdwg.mxu0
      %3305 = vmatpush.bf16.msra.mxu0 0
      %3306 = vmatpush.bf16.msra.mxu0 0
      %3307 = vmatpush.bf16.msra.mxu0 0
      %3308 = vmatpush.bf16.msra.mxu0 %v3287
      %3309 = vmatpush.bf16.msra.mxu0 %v3255
      %3310 = vmatpush.bf16.msra.mxu0 %v3253
      %3311 = vmatpush.bf16.msra.mxu0 %v3251
      %3312 = vmatpush.bf16.msra.mxu0 %v3249
      %3313 = vmatmul.bf16.gmra.mxu0 %v3284
      %v3314 = vpop.f32.mrf.mxu0
      %v3315 = vadd.f32 %v3302, %v3314
      %v3316 = vpop.f32.mrf.mxu0
      %3317 = vdwg.mxu0
      %3318 = vmatpush.bf16.msra.mxu0 %v3248
      %3319 = vmatpush.bf16.msra.mxu0 %v3246
      %3320 = vmatpush.bf16.msra.mxu0 %v3244
      %3321 = vmatpush.bf16.msra.mxu0 %v3242
      %3322 = vmatpush.bf16.msra.mxu0 %v3240
      %3323 = vmatpush.bf16.msra.mxu0 %v3238
      %3324 = vmatpush.bf16.msra.mxu0 %v3236
      %3325 = vmatpush.bf16.msra.mxu0 %v3234
      %3326 = vmatmul.bf16.gmra.mxu0 %v3155
      %v3327 = vpop.f32.mrf.mxu0
      %v3328 = vadd.f32 0.0, %v3327
      %v3329 = vpop.f32.mrf.mxu0
      %3330 = vdwg.mxu0
      %3331 = vmatpush.bf16.msra.mxu0 0
      %3332 = vmatpush.bf16.msra.mxu0 0
      %3333 = vmatpush.bf16.msra.mxu0 0
      %3334 = vmatpush.bf16.msra.mxu0 %v3290
      %3335 = vmatpush.bf16.msra.mxu0 %v3256
      %3336 = vmatpush.bf16.msra.mxu0 %v3254
      %3337 = vmatpush.bf16.msra.mxu0 %v3252
      %3338 = vmatpush.bf16.msra.mxu0 %v3250
      %3339 = vmatmul.bf16.gmra.mxu0 %v3284
      %v3340 = vpop.f32.mrf.mxu0
      %v3341 = vadd.f32 %v3328, %v3340
      %v3342 = vpop.f32.mrf.mxu0
      %3343 = vdwg.mxu0
      %v3344 = vadd.f32 %v3127, %v3315
      %v3345 = vadd.f32 %v3128, %v3341
      %s3346 = scalar_lea.vmem %s2, 2800
      %v3347 = vld [vmem:[%s3346] sm:$0xff]
      %v3348 = vld [vmem:[%s3346 + $0x8] sm:$0xff]
      %v3349 = vld [vmem:[%s3346 + $0x10] sm:$0xff]
      %v3350 = vld [vmem:[%s3346 + $0x18] sm:$0xff]
      %v3351 = vld [vmem:[%s3346 + $0x20] sm:$0xff]
      %v3352 = vld [vmem:[%s3346 + $0x28] sm:$0xff]
      %v3353 = vld [vmem:[%s3346 + $0x30] sm:$0xff]
      %v3354 = vld [vmem:[%s3346 + $0x38] sm:$0xff]
      %v3355 = vld [vmem:[%s3346 + $0x40] sm:$0xff]
      %v3356 = vld [vmem:[%s3346 + $0x48] sm:$0xff]
      %v3357 = vld [vmem:[%s3346 + $0x50] sm:$0xff]
      %v3358 = vld [vmem:[%s3346 + $0x58] sm:$0xff]
      %v3359 = vld [vmem:[%s3346 + $0x60] sm:$0xff]
      %v3360 = vld [vmem:[%s3346 + $0x68] sm:$0xff]
      %v3361 = vld [vmem:[%s3346 + $0x70] sm:$0xff]
      %v3362 = vld [vmem:[%s3346 + $0x78] sm:$0xff]
      %v3363 = vld [vmem:[%s3346 + $0x80] sm:$0xff]
      %v3364 = vld [vmem:[%s3346 + $0x88] sm:$0xff]
      %v3365 = vld [vmem:[%s3346 + $0x90] sm:$0xff]
      %v3366 = vld [vmem:[%s3346 + $0x98] sm:$0xff]
      %v3367 = vld [vmem:[%s3346 + $0xa0] sm:$0xff]
      %v3368 = vld [vmem:[%s3346 + $0xa8] sm:$0xff]
      %v3369 = vld [vmem:[%s3346 + $0xb0] sm:$0xff]
      %v3370 = vld [vmem:[%s3346 + $0xb8] sm:$0xff]
      %v3371 = vld [vmem:[%s3346 + $0xc0] sm:$0x33]
      %v3372 = vrot.slane %v2067, 3
      %v3373 = vrot.slane %v2068, 3
      %v3400 = vunpack.c.l.b16 %v3347
      %v3401 = vunpack.c.h.b16 %v3347
      %v3402 = vunpack.c.l.b16 %v3348
      %v3403 = vunpack.c.h.b16 %v3348
      %v3404 = vunpack.c.l.b16 %v3349
      %v3405 = vunpack.c.h.b16 %v3349
      %v3406 = vunpack.c.l.b16 %v3350
      %v3407 = vunpack.c.h.b16 %v3350
      %v3408 = vunpack.c.l.b16 %v3351
      %v3409 = vunpack.c.h.b16 %v3351
      %v3410 = vunpack.c.l.b16 %v3352
      %v3411 = vunpack.c.h.b16 %v3352
      %v3412 = vunpack.c.l.b16 %v3353
      %v3413 = vunpack.c.h.b16 %v3353
      %v3414 = vunpack.c.l.b16 %v3354
      %v3415 = vunpack.c.h.b16 %v3354
      %v3416 = vunpack.c.l.b16 %v3355
      %v3417 = vunpack.c.h.b16 %v3355
      %v3418 = vunpack.c.l.b16 %v3356
      %v3419 = vunpack.c.h.b16 %v3356
      %v3420 = vunpack.c.l.b16 %v3357
      %v3421 = vunpack.c.h.b16 %v3357
      %v3422 = vunpack.c.l.b16 %v3358
      %v3423 = vunpack.c.h.b16 %v3358
      %v3424 = vunpack.c.l.b16 %v3359
      %v3425 = vunpack.c.h.b16 %v3359
      %v3426 = vunpack.c.l.b16 %v3360
      %v3427 = vunpack.c.h.b16 %v3360
      %v3428 = vunpack.c.l.b16 %v3361
      %v3429 = vunpack.c.h.b16 %v3361
      %v3430 = vunpack.c.l.b16 %v3362
      %v3431 = vunpack.c.h.b16 %v3362
      %v3432 = vunpack.c.l.b16 %v3363
      %v3433 = vunpack.c.h.b16 %v3363
      %v3434 = vunpack.c.l.b16 %v3364
      %v3435 = vunpack.c.h.b16 %v3364
      %v3436 = vunpack.c.l.b16 %v3365
      %v3437 = vunpack.c.h.b16 %v3365
      %v3438 = vunpack.c.l.b16 %v3366
      %v3439 = vunpack.c.h.b16 %v3366
      %v3440 = vunpack.c.l.b16 %v3367
      %v3441 = vunpack.c.h.b16 %v3367
      %v3442 = vunpack.c.l.b16 %v3368
      %v3443 = vunpack.c.h.b16 %v3368
      %v3444 = vunpack.c.l.b16 %v3369
      %v3445 = vunpack.c.h.b16 %v3369
      %v3446 = vunpack.c.l.b16 %v3370
      %v3447 = vunpack.c.h.b16 %v3370
      %v3448 = vunpack.c.l.b16 %v3371
      %v3449 = vunpack.c.h.b16 %v3371
      %v3450 = vpack.c.b16 %v3402, %v3400
      %v3451 = vpack.c.b16 %v3403, %v3401
      %v3452 = vpack.c.b16 %v3406, %v3404
      %v3453 = vpack.c.b16 %v3407, %v3405
      %v3454 = vpack.c.b16 %v3410, %v3408
      %v3455 = vpack.c.b16 %v3411, %v3409
      %v3456 = vpack.c.b16 %v3414, %v3412
      %v3457 = vpack.c.b16 %v3415, %v3413
      %v3458 = vpack.c.b16 %v3418, %v3416
      %v3459 = vpack.c.b16 %v3419, %v3417
      %v3460 = vpack.c.b16 %v3422, %v3420
      %v3461 = vpack.c.b16 %v3423, %v3421
      %v3462 = vpack.c.b16 %v3426, %v3424
      %v3463 = vpack.c.b16 %v3427, %v3425
      %v3464 = vpack.c.b16 %v3430, %v3428
      %v3465 = vpack.c.b16 %v3431, %v3429
      %v3466 = vpack.c.b16 %v3434, %v3432
      %v3467 = vpack.c.b16 %v3435, %v3433
      %v3468 = vpack.c.b16 %v3438, %v3436
      %v3469 = vpack.c.b16 %v3439, %v3437
      %v3470 = vpack.c.b16 %v3442, %v3440
      %v3471 = vpack.c.b16 %v3443, %v3441
      %v3472 = vpack.c.b16 %v3446, %v3444
      %v3473 = vpack.c.b16 %v3447, %v3445
      %v3474 = vpack.c.b16 %v3448, %v3448
      %v3475 = vpack.c.b16 %v3449, %v3449
      %v3501 = vsel %vm487, %v3373, 0
      %v3504 = vsel %vm491, %v3474, 0
      %v3507 = vsel %vm491, %v3475, 0
      %3509 = vmatpush.bf16.msra.mxu0 %v3464
      %3510 = vmatpush.bf16.msra.mxu0 %v3462
      %3511 = vmatpush.bf16.msra.mxu0 %v3460
      %3512 = vmatpush.bf16.msra.mxu0 %v3458
      %3513 = vmatpush.bf16.msra.mxu0 %v3456
      %3514 = vmatpush.bf16.msra.mxu0 %v3454
      %3515 = vmatpush.bf16.msra.mxu0 %v3452
      %3516 = vmatpush.bf16.msra.mxu0 %v3450
      %3517 = vmatmul.bf16.gmra.mxu0 %v3372
      %v3518 = vpop.f32.mrf.mxu0
      %v3519 = vadd.f32 0.0, %v3518
      %v3520 = vpop.f32.mrf.mxu0
      %3521 = vdwg.mxu0
      %3522 = vmatpush.bf16.msra.mxu0 0
      %3523 = vmatpush.bf16.msra.mxu0 0
      %3524 = vmatpush.bf16.msra.mxu0 0
      %3525 = vmatpush.bf16.msra.mxu0 %v3504
      %3526 = vmatpush.bf16.msra.mxu0 %v3472
      %3527 = vmatpush.bf16.msra.mxu0 %v3470
      %3528 = vmatpush.bf16.msra.mxu0 %v3468
      %3529 = vmatpush.bf16.msra.mxu0 %v3466
      %3530 = vmatmul.bf16.gmra.mxu0 %v3501
      %v3531 = vpop.f32.mrf.mxu0
      %v3532 = vadd.f32 %v3519, %v3531
      %v3533 = vpop.f32.mrf.mxu0
      %3534 = vdwg.mxu0
      %3535 = vmatpush.bf16.msra.mxu0 %v3465
      %3536 = vmatpush.bf16.msra.mxu0 %v3463
      %3537 = vmatpush.bf16.msra.mxu0 %v3461
      %3538 = vmatpush.bf16.msra.mxu0 %v3459
      %3539 = vmatpush.bf16.msra.mxu0 %v3457
      %3540 = vmatpush.bf16.msra.mxu0 %v3455
      %3541 = vmatpush.bf16.msra.mxu0 %v3453
      %3542 = vmatpush.bf16.msra.mxu0 %v3451
      %3543 = vmatmul.bf16.gmra.mxu0 %v3372
      %v3544 = vpop.f32.mrf.mxu0
      %v3545 = vadd.f32 0.0, %v3544
      %v3546 = vpop.f32.mrf.mxu0
      %3547 = vdwg.mxu0
      %3548 = vmatpush.bf16.msra.mxu0 0
      %3549 = vmatpush.bf16.msra.mxu0 0
      %3550 = vmatpush.bf16.msra.mxu0 0
      %3551 = vmatpush.bf16.msra.mxu0 %v3507
      %3552 = vmatpush.bf16.msra.mxu0 %v3473
      %3553 = vmatpush.bf16.msra.mxu0 %v3471
      %3554 = vmatpush.bf16.msra.mxu0 %v3469
      %3555 = vmatpush.bf16.msra.mxu0 %v3467
      %3556 = vmatmul.bf16.gmra.mxu0 %v3501
      %v3557 = vpop.f32.mrf.mxu0
      %v3558 = vadd.f32 %v3545, %v3557
      %v3559 = vpop.f32.mrf.mxu0
      %3560 = vdwg.mxu0
      %v3561 = vadd.f32 %v3344, %v3532
      %v3562 = vadd.f32 %v3345, %v3558
      %s3563 = scalar_lea.vmem %s2, 3000
      %v3564 = vld [vmem:[%s3563] sm:$0xff]
      %v3565 = vld [vmem:[%s3563 + $0x8] sm:$0xff]
      %v3566 = vld [vmem:[%s3563 + $0x10] sm:$0xff]
      %v3567 = vld [vmem:[%s3563 + $0x18] sm:$0xff]
      %v3568 = vld [vmem:[%s3563 + $0x20] sm:$0xff]
      %v3569 = vld [vmem:[%s3563 + $0x28] sm:$0xff]
      %v3570 = vld [vmem:[%s3563 + $0x30] sm:$0xff]
      %v3571 = vld [vmem:[%s3563 + $0x38] sm:$0xff]
      %v3572 = vld [vmem:[%s3563 + $0x40] sm:$0xff]
      %v3573 = vld [vmem:[%s3563 + $0x48] sm:$0xff]
      %v3574 = vld [vmem:[%s3563 + $0x50] sm:$0xff]
      %v3575 = vld [vmem:[%s3563 + $0x58] sm:$0xff]
      %v3576 = vld [vmem:[%s3563 + $0x60] sm:$0xff]
      %v3577 = vld [vmem:[%s3563 + $0x68] sm:$0xff]
      %v3578 = vld [vmem:[%s3563 + $0x70] sm:$0xff]
      %v3579 = vld [vmem:[%s3563 + $0x78] sm:$0xff]
      %v3580 = vld [vmem:[%s3563 + $0x80] sm:$0xff]
      %v3581 = vld [vmem:[%s3563 + $0x88] sm:$0xff]
      %v3582 = vld [vmem:[%s3563 + $0x90] sm:$0xff]
      %v3583 = vld [vmem:[%s3563 + $0x98] sm:$0xff]
      %v3584 = vld [vmem:[%s3563 + $0xa0] sm:$0xff]
      %v3585 = vld [vmem:[%s3563 + $0xa8] sm:$0xff]
      %v3586 = vld [vmem:[%s3563 + $0xb0] sm:$0xff]
      %v3587 = vld [vmem:[%s3563 + $0xb8] sm:$0xff]
      %v3588 = vld [vmem:[%s3563 + $0xc0] sm:$0x33]
      %v3589 = vrot.slane %v2285, 3
      %v3590 = vrot.slane %v2287, 3
      %v3617 = vunpack.c.l.b16 %v3564
      %v3618 = vunpack.c.h.b16 %v3564
      %v3619 = vunpack.c.l.b16 %v3565
      %v3620 = vunpack.c.h.b16 %v3565
      %v3621 = vunpack.c.l.b16 %v3566
      %v3622 = vunpack.c.h.b16 %v3566
      %v3623 = vunpack.c.l.b16 %v3567
      %v3624 = vunpack.c.h.b16 %v3567
      %v3625 = vunpack.c.l.b16 %v3568
      %v3626 = vunpack.c.h.b16 %v3568
      %v3627 = vunpack.c.l.b16 %v3569
      %v3628 = vunpack.c.h.b16 %v3569
      %v3629 = vunpack.c.l.b16 %v3570
      %v3630 = vunpack.c.h.b16 %v3570
      %v3631 = vunpack.c.l.b16 %v3571
      %v3632 = vunpack.c.h.b16 %v3571
      %v3633 = vunpack.c.l.b16 %v3572
      %v3634 = vunpack.c.h.b16 %v3572
      %v3635 = vunpack.c.l.b16 %v3573
      %v3636 = vunpack.c.h.b16 %v3573
      %v3637 = vunpack.c.l.b16 %v3574
      %v3638 = vunpack.c.h.b16 %v3574
      %v3639 = vunpack.c.l.b16 %v3575
      %v3640 = vunpack.c.h.b16 %v3575
      %v3641 = vunpack.c.l.b16 %v3576
      %v3642 = vunpack.c.h.b16 %v3576
      %v3643 = vunpack.c.l.b16 %v3577
      %v3644 = vunpack.c.h.b16 %v3577
      %v3645 = vunpack.c.l.b16 %v3578
      %v3646 = vunpack.c.h.b16 %v3578
      %v3647 = vunpack.c.l.b16 %v3579
      %v3648 = vunpack.c.h.b16 %v3579
      %v3649 = vunpack.c.l.b16 %v3580
      %v3650 = vunpack.c.h.b16 %v3580
      %v3651 = vunpack.c.l.b16 %v3581
      %v3652 = vunpack.c.h.b16 %v3581
      %v3653 = vunpack.c.l.b16 %v3582
      %v3654 = vunpack.c.h.b16 %v3582
      %v3655 = vunpack.c.l.b16 %v3583
      %v3656 = vunpack.c.h.b16 %v3583
      %v3657 = vunpack.c.l.b16 %v3584
      %v3658 = vunpack.c.h.b16 %v3584
      %v3659 = vunpack.c.l.b16 %v3585
      %v3660 = vunpack.c.h.b16 %v3585
      %v3661 = vunpack.c.l.b16 %v3586
      %v3662 = vunpack.c.h.b16 %v3586
      %v3663 = vunpack.c.l.b16 %v3587
      %v3664 = vunpack.c.h.b16 %v3587
      %v3665 = vunpack.c.l.b16 %v3588
      %v3666 = vunpack.c.h.b16 %v3588
      %v3667 = vpack.c.b16 %v3619, %v3617
      %v3668 = vpack.c.b16 %v3620, %v3618
      %v3669 = vpack.c.b16 %v3623, %v3621
      %v3670 = vpack.c.b16 %v3624, %v3622
      %v3671 = vpack.c.b16 %v3627, %v3625
      %v3672 = vpack.c.b16 %v3628, %v3626
      %v3673 = vpack.c.b16 %v3631, %v3629
      %v3674 = vpack.c.b16 %v3632, %v3630
      %v3675 = vpack.c.b16 %v3635, %v3633
      %v3676 = vpack.c.b16 %v3636, %v3634
      %v3677 = vpack.c.b16 %v3639, %v3637
      %v3678 = vpack.c.b16 %v3640, %v3638
      %v3679 = vpack.c.b16 %v3643, %v3641
      %v3680 = vpack.c.b16 %v3644, %v3642
      %v3681 = vpack.c.b16 %v3647, %v3645
      %v3682 = vpack.c.b16 %v3648, %v3646
      %v3683 = vpack.c.b16 %v3651, %v3649
      %v3684 = vpack.c.b16 %v3652, %v3650
      %v3685 = vpack.c.b16 %v3655, %v3653
      %v3686 = vpack.c.b16 %v3656, %v3654
      %v3687 = vpack.c.b16 %v3659, %v3657
      %v3688 = vpack.c.b16 %v3660, %v3658
      %v3689 = vpack.c.b16 %v3663, %v3661
      %v3690 = vpack.c.b16 %v3664, %v3662
      %v3691 = vpack.c.b16 %v3665, %v3665
      %v3692 = vpack.c.b16 %v3666, %v3666
      %v3718 = vsel %vm487, %v3590, 0
      %v3721 = vsel %vm491, %v3691, 0
      %v3724 = vsel %vm491, %v3692, 0
      %3726 = vmatpush.bf16.msra.mxu0 %v3681
      %3727 = vmatpush.bf16.msra.mxu0 %v3679
      %3728 = vmatpush.bf16.msra.mxu0 %v3677
      %3729 = vmatpush.bf16.msra.mxu0 %v3675
      %3730 = vmatpush.bf16.msra.mxu0 %v3673
      %3731 = vmatpush.bf16.msra.mxu0 %v3671
      %3732 = vmatpush.bf16.msra.mxu0 %v3669
      %3733 = vmatpush.bf16.msra.mxu0 %v3667
      %3734 = vmatmul.bf16.gmra.mxu0 %v3589
      %v3735 = vpop.f32.mrf.mxu0
      %v3736 = vadd.f32 0.0, %v3735
      %v3737 = vpop.f32.mrf.mxu0
      %3738 = vdwg.mxu0
      %3739 = vmatpush.bf16.msra.mxu0 0
      %3740 = vmatpush.bf16.msra.mxu0 0
      %3741 = vmatpush.bf16.msra.mxu0 0
      %3742 = vmatpush.bf16.msra.mxu0 %v3721
      %3743 = vmatpush.bf16.msra.mxu0 %v3689
      %3744 = vmatpush.bf16.msra.mxu0 %v3687
      %3745 = vmatpush.bf16.msra.mxu0 %v3685
      %3746 = vmatpush.bf16.msra.mxu0 %v3683
      %3747 = vmatmul.bf16.gmra.mxu0 %v3718
      %v3748 = vpop.f32.mrf.mxu0
      %v3749 = vadd.f32 %v3736, %v3748
      %v3750 = vpop.f32.mrf.mxu0
      %3751 = vdwg.mxu0
      %3752 = vmatpush.bf16.msra.mxu0 %v3682
      %3753 = vmatpush.bf16.msra.mxu0 %v3680
      %3754 = vmatpush.bf16.msra.mxu0 %v3678
      %3755 = vmatpush.bf16.msra.mxu0 %v3676
      %3756 = vmatpush.bf16.msra.mxu0 %v3674
      %3757 = vmatpush.bf16.msra.mxu0 %v3672
      %3758 = vmatpush.bf16.msra.mxu0 %v3670
      %3759 = vmatpush.bf16.msra.mxu0 %v3668
      %3760 = vmatmul.bf16.gmra.mxu0 %v3589
      %v3761 = vpop.f32.mrf.mxu0
      %v3762 = vadd.f32 0.0, %v3761
      %v3763 = vpop.f32.mrf.mxu0
      %3764 = vdwg.mxu0
      %3765 = vmatpush.bf16.msra.mxu0 0
      %3766 = vmatpush.bf16.msra.mxu0 0
      %3767 = vmatpush.bf16.msra.mxu0 0
      %3768 = vmatpush.bf16.msra.mxu0 %v3724
      %3769 = vmatpush.bf16.msra.mxu0 %v3690
      %3770 = vmatpush.bf16.msra.mxu0 %v3688
      %3771 = vmatpush.bf16.msra.mxu0 %v3686
      %3772 = vmatpush.bf16.msra.mxu0 %v3684
      %3773 = vmatmul.bf16.gmra.mxu0 %v3718
      %v3774 = vpop.f32.mrf.mxu0
      %v3775 = vadd.f32 %v3762, %v3774
      %v3776 = vpop.f32.mrf.mxu0
      %3777 = vdwg.mxu0
      %v3778 = vadd.f32 %v3561, %v3749
      %v3779 = vadd.f32 %v3562, %v3775
      %s3780 = scalar_lea.vmem %s2, 3200
      %v3781 = vld [vmem:[%s3780] sm:$0xff]
      %v3782 = vld [vmem:[%s3780 + $0x8] sm:$0xff]
      %v3783 = vld [vmem:[%s3780 + $0x10] sm:$0xff]
      %v3784 = vld [vmem:[%s3780 + $0x18] sm:$0xff]
      %v3785 = vld [vmem:[%s3780 + $0x20] sm:$0xff]
      %v3786 = vld [vmem:[%s3780 + $0x28] sm:$0xff]
      %v3787 = vld [vmem:[%s3780 + $0x30] sm:$0xff]
      %v3788 = vld [vmem:[%s3780 + $0x38] sm:$0xff]
      %v3789 = vld [vmem:[%s3780 + $0x40] sm:$0xff]
      %v3790 = vld [vmem:[%s3780 + $0x48] sm:$0xff]
      %v3791 = vld [vmem:[%s3780 + $0x50] sm:$0xff]
      %v3792 = vld [vmem:[%s3780 + $0x58] sm:$0xff]
      %v3793 = vld [vmem:[%s3780 + $0x60] sm:$0xff]
      %v3794 = vld [vmem:[%s3780 + $0x68] sm:$0xff]
      %v3795 = vld [vmem:[%s3780 + $0x70] sm:$0xff]
      %v3796 = vld [vmem:[%s3780 + $0x78] sm:$0xff]
      %v3797 = vld [vmem:[%s3780 + $0x80] sm:$0xff]
      %v3798 = vld [vmem:[%s3780 + $0x88] sm:$0xff]
      %v3799 = vld [vmem:[%s3780 + $0x90] sm:$0xff]
      %v3800 = vld [vmem:[%s3780 + $0x98] sm:$0xff]
      %v3801 = vld [vmem:[%s3780 + $0xa0] sm:$0xff]
      %v3802 = vld [vmem:[%s3780 + $0xa8] sm:$0xff]
      %v3803 = vld [vmem:[%s3780 + $0xb0] sm:$0xff]
      %v3804 = vld [vmem:[%s3780 + $0xb8] sm:$0xff]
      %v3805 = vld [vmem:[%s3780 + $0xc0] sm:$0x33]
      %v3807 = vunpack.c.l.b16 %v297
      %v3808 = vunpack.c.h.b16 %v297
      %v3809 = vpack.c.b16 %v3807, %v3807
      %v3810 = vpack.c.b16 %v3808, %v3808
      %v3837 = vunpack.c.l.b16 %v3781
      %v3838 = vunpack.c.h.b16 %v3781
      %v3839 = vunpack.c.l.b16 %v3782
      %v3840 = vunpack.c.h.b16 %v3782
      %v3841 = vunpack.c.l.b16 %v3783
      %v3842 = vunpack.c.h.b16 %v3783
      %v3843 = vunpack.c.l.b16 %v3784
      %v3844 = vunpack.c.h.b16 %v3784
      %v3845 = vunpack.c.l.b16 %v3785
      %v3846 = vunpack.c.h.b16 %v3785
      %v3847 = vunpack.c.l.b16 %v3786
      %v3848 = vunpack.c.h.b16 %v3786
      %v3849 = vunpack.c.l.b16 %v3787
      %v3850 = vunpack.c.h.b16 %v3787
      %v3851 = vunpack.c.l.b16 %v3788
      %v3852 = vunpack.c.h.b16 %v3788
      %v3853 = vunpack.c.l.b16 %v3789
      %v3854 = vunpack.c.h.b16 %v3789
      %v3855 = vunpack.c.l.b16 %v3790
      %v3856 = vunpack.c.h.b16 %v3790
      %v3857 = vunpack.c.l.b16 %v3791
      %v3858 = vunpack.c.h.b16 %v3791
      %v3859 = vunpack.c.l.b16 %v3792
      %v3860 = vunpack.c.h.b16 %v3792
      %v3861 = vunpack.c.l.b16 %v3793
      %v3862 = vunpack.c.h.b16 %v3793
      %v3863 = vunpack.c.l.b16 %v3794
      %v3864 = vunpack.c.h.b16 %v3794
      %v3865 = vunpack.c.l.b16 %v3795
      %v3866 = vunpack.c.h.b16 %v3795
      %v3867 = vunpack.c.l.b16 %v3796
      %v3868 = vunpack.c.h.b16 %v3796
      %v3869 = vunpack.c.l.b16 %v3797
      %v3870 = vunpack.c.h.b16 %v3797
      %v3871 = vunpack.c.l.b16 %v3798
      %v3872 = vunpack.c.h.b16 %v3798
      %v3873 = vunpack.c.l.b16 %v3799
      %v3874 = vunpack.c.h.b16 %v3799
      %v3875 = vunpack.c.l.b16 %v3800
      %v3876 = vunpack.c.h.b16 %v3800
      %v3877 = vunpack.c.l.b16 %v3801
      %v3878 = vunpack.c.h.b16 %v3801
      %v3879 = vunpack.c.l.b16 %v3802
      %v3880 = vunpack.c.h.b16 %v3802
      %v3881 = vunpack.c.l.b16 %v3803
      %v3882 = vunpack.c.h.b16 %v3803
      %v3883 = vunpack.c.l.b16 %v3804
      %v3884 = vunpack.c.h.b16 %v3804
      %v3885 = vunpack.c.l.b16 %v3805
      %v3886 = vunpack.c.h.b16 %v3805
      %v3887 = vpack.c.b16 %v3839, %v3837
      %v3888 = vpack.c.b16 %v3840, %v3838
      %v3889 = vpack.c.b16 %v3843, %v3841
      %v3890 = vpack.c.b16 %v3844, %v3842
      %v3891 = vpack.c.b16 %v3847, %v3845
      %v3892 = vpack.c.b16 %v3848, %v3846
      %v3893 = vpack.c.b16 %v3851, %v3849
      %v3894 = vpack.c.b16 %v3852, %v3850
      %v3895 = vpack.c.b16 %v3855, %v3853
      %v3896 = vpack.c.b16 %v3856, %v3854
      %v3897 = vpack.c.b16 %v3859, %v3857
      %v3898 = vpack.c.b16 %v3860, %v3858
      %v3899 = vpack.c.b16 %v3863, %v3861
      %v3900 = vpack.c.b16 %v3864, %v3862
      %v3901 = vpack.c.b16 %v3867, %v3865
      %v3902 = vpack.c.b16 %v3868, %v3866
      %v3903 = vpack.c.b16 %v3871, %v3869
      %v3904 = vpack.c.b16 %v3872, %v3870
      %v3905 = vpack.c.b16 %v3875, %v3873
      %v3906 = vpack.c.b16 %v3876, %v3874
      %v3907 = vpack.c.b16 %v3879, %v3877
      %v3908 = vpack.c.b16 %v3880, %v3878
      %v3909 = vpack.c.b16 %v3883, %v3881
      %v3910 = vpack.c.b16 %v3884, %v3882
      %v3911 = vpack.c.b16 %v3885, %v3885
      %v3912 = vpack.c.b16 %v3886, %v3886
      %v3938 = vsel %vm487, %v3810, 0
      %v3941 = vsel %vm491, %v3911, 0
      %v3944 = vsel %vm491, %v3912, 0
      %3946 = vmatpush.bf16.msra.mxu0 %v3901
      %3947 = vmatpush.bf16.msra.mxu0 %v3899
      %3948 = vmatpush.bf16.msra.mxu0 %v3897
      %3949 = vmatpush.bf16.msra.mxu0 %v3895
      %3950 = vmatpush.bf16.msra.mxu0 %v3893
      %3951 = vmatpush.bf16.msra.mxu0 %v3891
      %3952 = vmatpush.bf16.msra.mxu0 %v3889
      %3953 = vmatpush.bf16.msra.mxu0 %v3887
      %3954 = vmatmul.bf16.gmra.mxu0 %v3809
      %v3955 = vpop.f32.mrf.mxu0
      %v3956 = vadd.f32 0.0, %v3955
      %v3957 = vpop.f32.mrf.mxu0
      %3958 = vdwg.mxu0
      %3959 = vmatpush.bf16.msra.mxu0 0
      %3960 = vmatpush.bf16.msra.mxu0 0
      %3961 = vmatpush.bf16.msra.mxu0 0
      %3962 = vmatpush.bf16.msra.mxu0 %v3941
      %3963 = vmatpush.bf16.msra.mxu0 %v3909
      %3964 = vmatpush.bf16.msra.mxu0 %v3907
      %3965 = vmatpush.bf16.msra.mxu0 %v3905
      %3966 = vmatpush.bf16.msra.mxu0 %v3903
      %3967 = vmatmul.bf16.gmra.mxu0 %v3938
      %v3968 = vpop.f32.mrf.mxu0
      %v3969 = vadd.f32 %v3956, %v3968
      %v3970 = vpop.f32.mrf.mxu0
      %3971 = vdwg.mxu0
      %3972 = vmatpush.bf16.msra.mxu0 %v3902
      %3973 = vmatpush.bf16.msra.mxu0 %v3900
      %3974 = vmatpush.bf16.msra.mxu0 %v3898
      %3975 = vmatpush.bf16.msra.mxu0 %v3896
      %3976 = vmatpush.bf16.msra.mxu0 %v3894
      %3977 = vmatpush.bf16.msra.mxu0 %v3892
      %3978 = vmatpush.bf16.msra.mxu0 %v3890
      %3979 = vmatpush.bf16.msra.mxu0 %v3888
      %3980 = vmatmul.bf16.gmra.mxu0 %v3809
      %v3981 = vpop.f32.mrf.mxu0
      %v3982 = vadd.f32 0.0, %v3981
      %v3983 = vpop.f32.mrf.mxu0
      %3984 = vdwg.mxu0
      %3985 = vmatpush.bf16.msra.mxu0 0
      %3986 = vmatpush.bf16.msra.mxu0 0
      %3987 = vmatpush.bf16.msra.mxu0 0
      %3988 = vmatpush.bf16.msra.mxu0 %v3944
      %3989 = vmatpush.bf16.msra.mxu0 %v3910
      %3990 = vmatpush.bf16.msra.mxu0 %v3908
      %3991 = vmatpush.bf16.msra.mxu0 %v3906
      %3992 = vmatpush.bf16.msra.mxu0 %v3904
      %3993 = vmatmul.bf16.gmra.mxu0 %v3938
      %v3994 = vpop.f32.mrf.mxu0
      %v3995 = vadd.f32 %v3982, %v3994
      %v3996 = vpop.f32.mrf.mxu0
      %3997 = vdwg.mxu0
      %v3998 = vadd.f32 %v3778, %v3969
      %v3999 = vadd.f32 %v3779, %v3995
      %s4000 = scalar_lea.vmem %s2, 3400
      %v4001 = vld [vmem:[%s4000] sm:$0xff]
      %v4002 = vld [vmem:[%s4000 + $0x8] sm:$0xff]
      %v4003 = vld [vmem:[%s4000 + $0x10] sm:$0xff]
      %v4004 = vld [vmem:[%s4000 + $0x18] sm:$0xff]
      %v4005 = vld [vmem:[%s4000 + $0x20] sm:$0xff]
      %v4006 = vld [vmem:[%s4000 + $0x28] sm:$0xff]
      %v4007 = vld [vmem:[%s4000 + $0x30] sm:$0xff]
      %v4008 = vld [vmem:[%s4000 + $0x38] sm:$0xff]
      %v4009 = vld [vmem:[%s4000 + $0x40] sm:$0xff]
      %v4010 = vld [vmem:[%s4000 + $0x48] sm:$0xff]
      %v4011 = vld [vmem:[%s4000 + $0x50] sm:$0xff]
      %v4012 = vld [vmem:[%s4000 + $0x58] sm:$0xff]
      %v4013 = vld [vmem:[%s4000 + $0x60] sm:$0xff]
      %v4014 = vld [vmem:[%s4000 + $0x68] sm:$0xff]
      %v4015 = vld [vmem:[%s4000 + $0x70] sm:$0xff]
      %v4016 = vld [vmem:[%s4000 + $0x78] sm:$0xff]
      %v4017 = vld [vmem:[%s4000 + $0x80] sm:$0xff]
      %v4018 = vld [vmem:[%s4000 + $0x88] sm:$0xff]
      %v4019 = vld [vmem:[%s4000 + $0x90] sm:$0xff]
      %v4020 = vld [vmem:[%s4000 + $0x98] sm:$0xff]
      %v4021 = vld [vmem:[%s4000 + $0xa0] sm:$0xff]
      %v4022 = vld [vmem:[%s4000 + $0xa8] sm:$0xff]
      %v4023 = vld [vmem:[%s4000 + $0xb0] sm:$0xff]
      %v4024 = vld [vmem:[%s4000 + $0xb8] sm:$0xff]
      %v4025 = vld [vmem:[%s4000 + $0xc0] sm:$0x33]
      %v4027 = vshrl.u32 %v3809, 16
      %v4029 = vshrl.u32 %v3810, 16
      %v4057 = vunpack.c.l.b16 %v4001
      %v4058 = vunpack.c.h.b16 %v4001
      %v4059 = vunpack.c.l.b16 %v4002
      %v4060 = vunpack.c.h.b16 %v4002
      %v4061 = vunpack.c.l.b16 %v4003
      %v4062 = vunpack.c.h.b16 %v4003
      %v4063 = vunpack.c.l.b16 %v4004
      %v4064 = vunpack.c.h.b16 %v4004
      %v4065 = vunpack.c.l.b16 %v4005
      %v4066 = vunpack.c.h.b16 %v4005
      %v4067 = vunpack.c.l.b16 %v4006
      %v4068 = vunpack.c.h.b16 %v4006
      %v4069 = vunpack.c.l.b16 %v4007
      %v4070 = vunpack.c.h.b16 %v4007
      %v4071 = vunpack.c.l.b16 %v4008
      %v4072 = vunpack.c.h.b16 %v4008
      %v4073 = vunpack.c.l.b16 %v4009
      %v4074 = vunpack.c.h.b16 %v4009
      %v4075 = vunpack.c.l.b16 %v4010
      %v4076 = vunpack.c.h.b16 %v4010
      %v4077 = vunpack.c.l.b16 %v4011
      %v4078 = vunpack.c.h.b16 %v4011
      %v4079 = vunpack.c.l.b16 %v4012
      %v4080 = vunpack.c.h.b16 %v4012
      %v4081 = vunpack.c.l.b16 %v4013
      %v4082 = vunpack.c.h.b16 %v4013
      %v4083 = vunpack.c.l.b16 %v4014
      %v4084 = vunpack.c.h.b16 %v4014
      %v4085 = vunpack.c.l.b16 %v4015
      %v4086 = vunpack.c.h.b16 %v4015
      %v4087 = vunpack.c.l.b16 %v4016
      %v4088 = vunpack.c.h.b16 %v4016
      %v4089 = vunpack.c.l.b16 %v4017
      %v4090 = vunpack.c.h.b16 %v4017
      %v4091 = vunpack.c.l.b16 %v4018
      %v4092 = vunpack.c.h.b16 %v4018
      %v4093 = vunpack.c.l.b16 %v4019
      %v4094 = vunpack.c.h.b16 %v4019
      %v4095 = vunpack.c.l.b16 %v4020
      %v4096 = vunpack.c.h.b16 %v4020
      %v4097 = vunpack.c.l.b16 %v4021
      %v4098 = vunpack.c.h.b16 %v4021
      %v4099 = vunpack.c.l.b16 %v4022
      %v4100 = vunpack.c.h.b16 %v4022
      %v4101 = vunpack.c.l.b16 %v4023
      %v4102 = vunpack.c.h.b16 %v4023
      %v4103 = vunpack.c.l.b16 %v4024
      %v4104 = vunpack.c.h.b16 %v4024
      %v4105 = vunpack.c.l.b16 %v4025
      %v4106 = vunpack.c.h.b16 %v4025
      %v4107 = vpack.c.b16 %v4059, %v4057
      %v4108 = vpack.c.b16 %v4060, %v4058
      %v4109 = vpack.c.b16 %v4063, %v4061
      %v4110 = vpack.c.b16 %v4064, %v4062
      %v4111 = vpack.c.b16 %v4067, %v4065
      %v4112 = vpack.c.b16 %v4068, %v4066
      %v4113 = vpack.c.b16 %v4071, %v4069
      %v4114 = vpack.c.b16 %v4072, %v4070
      %v4115 = vpack.c.b16 %v4075, %v4073
      %v4116 = vpack.c.b16 %v4076, %v4074
      %v4117 = vpack.c.b16 %v4079, %v4077
      %v4118 = vpack.c.b16 %v4080, %v4078
      %v4119 = vpack.c.b16 %v4083, %v4081
      %v4120 = vpack.c.b16 %v4084, %v4082
      %v4121 = vpack.c.b16 %v4087, %v4085
      %v4122 = vpack.c.b16 %v4088, %v4086
      %v4123 = vpack.c.b16 %v4091, %v4089
      %v4124 = vpack.c.b16 %v4092, %v4090
      %v4125 = vpack.c.b16 %v4095, %v4093
      %v4126 = vpack.c.b16 %v4096, %v4094
      %v4127 = vpack.c.b16 %v4099, %v4097
      %v4128 = vpack.c.b16 %v4100, %v4098
      %v4129 = vpack.c.b16 %v4103, %v4101
      %v4130 = vpack.c.b16 %v4104, %v4102
      %v4131 = vpack.c.b16 %v4105, %v4105
      %v4132 = vpack.c.b16 %v4106, %v4106
      %v4158 = vsel %vm487, %v4029, 0
      %v4161 = vsel %vm491, %v4131, 0
      %v4164 = vsel %vm491, %v4132, 0
      %4166 = vmatpush.bf16.msra.mxu0 %v4121
      %4167 = vmatpush.bf16.msra.mxu0 %v4119
      %4168 = vmatpush.bf16.msra.mxu0 %v4117
      %4169 = vmatpush.bf16.msra.mxu0 %v4115
      %4170 = vmatpush.bf16.msra.mxu0 %v4113
      %4171 = vmatpush.bf16.msra.mxu0 %v4111
      %4172 = vmatpush.bf16.msra.mxu0 %v4109
      %4173 = vmatpush.bf16.msra.mxu0 %v4107
      %4174 = vmatmul.bf16.gmra.mxu0 %v4027
      %v4175 = vpop.f32.mrf.mxu0
      %v4176 = vadd.f32 0.0, %v4175
      %v4177 = vpop.f32.mrf.mxu0
      %4178 = vdwg.mxu0
      %4179 = vmatpush.bf16.msra.mxu0 0
      %4180 = vmatpush.bf16.msra.mxu0 0
      %4181 = vmatpush.bf16.msra.mxu0 0
      %4182 = vmatpush.bf16.msra.mxu0 %v4161
      %4183 = vmatpush.bf16.msra.mxu0 %v4129
      %4184 = vmatpush.bf16.msra.mxu0 %v4127
      %4185 = vmatpush.bf16.msra.mxu0 %v4125
      %4186 = vmatpush.bf16.msra.mxu0 %v4123
      %4187 = vmatmul.bf16.gmra.mxu0 %v4158
      %v4188 = vpop.f32.mrf.mxu0
      %v4189 = vadd.f32 %v4176, %v4188
      %v4190 = vpop.f32.mrf.mxu0
      %4191 = vdwg.mxu0
      %4192 = vmatpush.bf16.msra.mxu0 %v4122
      %4193 = vmatpush.bf16.msra.mxu0 %v4120
      %4194 = vmatpush.bf16.msra.mxu0 %v4118
      %4195 = vmatpush.bf16.msra.mxu0 %v4116
      %4196 = vmatpush.bf16.msra.mxu0 %v4114
      %4197 = vmatpush.bf16.msra.mxu0 %v4112
      %4198 = vmatpush.bf16.msra.mxu0 %v4110
      %4199 = vmatpush.bf16.msra.mxu0 %v4108
      %4200 = vmatmul.bf16.gmra.mxu0 %v4027
      %v4201 = vpop.f32.mrf.mxu0
      %v4202 = vadd.f32 0.0, %v4201
      %v4203 = vpop.f32.mrf.mxu0
      %4204 = vdwg.mxu0
      %4205 = vmatpush.bf16.msra.mxu0 0
      %4206 = vmatpush.bf16.msra.mxu0 0
      %4207 = vmatpush.bf16.msra.mxu0 0
      %4208 = vmatpush.bf16.msra.mxu0 %v4164
      %4209 = vmatpush.bf16.msra.mxu0 %v4130
      %4210 = vmatpush.bf16.msra.mxu0 %v4128
      %4211 = vmatpush.bf16.msra.mxu0 %v4126
      %4212 = vmatpush.bf16.msra.mxu0 %v4124
      %4213 = vmatmul.bf16.gmra.mxu0 %v4158
      %v4214 = vpop.f32.mrf.mxu0
      %v4215 = vadd.f32 %v4202, %v4214
      %v4216 = vpop.f32.mrf.mxu0
      %4217 = vdwg.mxu0
      %v4218 = vadd.f32 %v3998, %v4189
      %v4219 = vadd.f32 %v3999, %v4215
      %s4220 = scalar_lea.vmem %s2, 3600
      %v4221 = vld [vmem:[%s4220] sm:$0xff]
      %v4222 = vld [vmem:[%s4220 + $0x8] sm:$0xff]
      %v4223 = vld [vmem:[%s4220 + $0x10] sm:$0xff]
      %v4224 = vld [vmem:[%s4220 + $0x18] sm:$0xff]
      %v4225 = vld [vmem:[%s4220 + $0x20] sm:$0xff]
      %v4226 = vld [vmem:[%s4220 + $0x28] sm:$0xff]
      %v4227 = vld [vmem:[%s4220 + $0x30] sm:$0xff]
      %v4228 = vld [vmem:[%s4220 + $0x38] sm:$0xff]
      %v4229 = vld [vmem:[%s4220 + $0x40] sm:$0xff]
      %v4230 = vld [vmem:[%s4220 + $0x48] sm:$0xff]
      %v4231 = vld [vmem:[%s4220 + $0x50] sm:$0xff]
      %v4232 = vld [vmem:[%s4220 + $0x58] sm:$0xff]
      %v4233 = vld [vmem:[%s4220 + $0x60] sm:$0xff]
      %v4234 = vld [vmem:[%s4220 + $0x68] sm:$0xff]
      %v4235 = vld [vmem:[%s4220 + $0x70] sm:$0xff]
      %v4236 = vld [vmem:[%s4220 + $0x78] sm:$0xff]
      %v4237 = vld [vmem:[%s4220 + $0x80] sm:$0xff]
      %v4238 = vld [vmem:[%s4220 + $0x88] sm:$0xff]
      %v4239 = vld [vmem:[%s4220 + $0x90] sm:$0xff]
      %v4240 = vld [vmem:[%s4220 + $0x98] sm:$0xff]
      %v4241 = vld [vmem:[%s4220 + $0xa0] sm:$0xff]
      %v4242 = vld [vmem:[%s4220 + $0xa8] sm:$0xff]
      %v4243 = vld [vmem:[%s4220 + $0xb0] sm:$0xff]
      %v4244 = vld [vmem:[%s4220 + $0xb8] sm:$0xff]
      %v4245 = vld [vmem:[%s4220 + $0xc0] sm:$0x33]
      %v4246 = vrot.slane %v3809, 1
      %v4247 = vrot.slane %v3810, 1
      %v4274 = vunpack.c.l.b16 %v4221
      %v4275 = vunpack.c.h.b16 %v4221
      %v4276 = vunpack.c.l.b16 %v4222
      %v4277 = vunpack.c.h.b16 %v4222
      %v4278 = vunpack.c.l.b16 %v4223
      %v4279 = vunpack.c.h.b16 %v4223
      %v4280 = vunpack.c.l.b16 %v4224
      %v4281 = vunpack.c.h.b16 %v4224
      %v4282 = vunpack.c.l.b16 %v4225
      %v4283 = vunpack.c.h.b16 %v4225
      %v4284 = vunpack.c.l.b16 %v4226
      %v4285 = vunpack.c.h.b16 %v4226
      %v4286 = vunpack.c.l.b16 %v4227
      %v4287 = vunpack.c.h.b16 %v4227
      %v4288 = vunpack.c.l.b16 %v4228
      %v4289 = vunpack.c.h.b16 %v4228
      %v4290 = vunpack.c.l.b16 %v4229
      %v4291 = vunpack.c.h.b16 %v4229
      %v4292 = vunpack.c.l.b16 %v4230
      %v4293 = vunpack.c.h.b16 %v4230
      %v4294 = vunpack.c.l.b16 %v4231
      %v4295 = vunpack.c.h.b16 %v4231
      %v4296 = vunpack.c.l.b16 %v4232
      %v4297 = vunpack.c.h.b16 %v4232
      %v4298 = vunpack.c.l.b16 %v4233
      %v4299 = vunpack.c.h.b16 %v4233
      %v4300 = vunpack.c.l.b16 %v4234
      %v4301 = vunpack.c.h.b16 %v4234
      %v4302 = vunpack.c.l.b16 %v4235
      %v4303 = vunpack.c.h.b16 %v4235
      %v4304 = vunpack.c.l.b16 %v4236
      %v4305 = vunpack.c.h.b16 %v4236
      %v4306 = vunpack.c.l.b16 %v4237
      %v4307 = vunpack.c.h.b16 %v4237
      %v4308 = vunpack.c.l.b16 %v4238
      %v4309 = vunpack.c.h.b16 %v4238
      %v4310 = vunpack.c.l.b16 %v4239
      %v4311 = vunpack.c.h.b16 %v4239
      %v4312 = vunpack.c.l.b16 %v4240
      %v4313 = vunpack.c.h.b16 %v4240
      %v4314 = vunpack.c.l.b16 %v4241
      %v4315 = vunpack.c.h.b16 %v4241
      %v4316 = vunpack.c.l.b16 %v4242
      %v4317 = vunpack.c.h.b16 %v4242
      %v4318 = vunpack.c.l.b16 %v4243
      %v4319 = vunpack.c.h.b16 %v4243
      %v4320 = vunpack.c.l.b16 %v4244
      %v4321 = vunpack.c.h.b16 %v4244
      %v4322 = vunpack.c.l.b16 %v4245
      %v4323 = vunpack.c.h.b16 %v4245
      %v4324 = vpack.c.b16 %v4276, %v4274
      %v4325 = vpack.c.b16 %v4277, %v4275
      %v4326 = vpack.c.b16 %v4280, %v4278
      %v4327 = vpack.c.b16 %v4281, %v4279
      %v4328 = vpack.c.b16 %v4284, %v4282
      %v4329 = vpack.c.b16 %v4285, %v4283
      %v4330 = vpack.c.b16 %v4288, %v4286
      %v4331 = vpack.c.b16 %v4289, %v4287
      %v4332 = vpack.c.b16 %v4292, %v4290
      %v4333 = vpack.c.b16 %v4293, %v4291
      %v4334 = vpack.c.b16 %v4296, %v4294
      %v4335 = vpack.c.b16 %v4297, %v4295
      %v4336 = vpack.c.b16 %v4300, %v4298
      %v4337 = vpack.c.b16 %v4301, %v4299
      %v4338 = vpack.c.b16 %v4304, %v4302
      %v4339 = vpack.c.b16 %v4305, %v4303
      %v4340 = vpack.c.b16 %v4308, %v4306
      %v4341 = vpack.c.b16 %v4309, %v4307
      %v4342 = vpack.c.b16 %v4312, %v4310
      %v4343 = vpack.c.b16 %v4313, %v4311
      %v4344 = vpack.c.b16 %v4316, %v4314
      %v4345 = vpack.c.b16 %v4317, %v4315
      %v4346 = vpack.c.b16 %v4320, %v4318
      %v4347 = vpack.c.b16 %v4321, %v4319
      %v4348 = vpack.c.b16 %v4322, %v4322
      %v4349 = vpack.c.b16 %v4323, %v4323
      %v4375 = vsel %vm487, %v4247, 0
      %v4378 = vsel %vm491, %v4348, 0
      %v4381 = vsel %vm491, %v4349, 0
      %4383 = vmatpush.bf16.msra.mxu0 %v4338
      %4384 = vmatpush.bf16.msra.mxu0 %v4336
      %4385 = vmatpush.bf16.msra.mxu0 %v4334
      %4386 = vmatpush.bf16.msra.mxu0 %v4332
      %4387 = vmatpush.bf16.msra.mxu0 %v4330
      %4388 = vmatpush.bf16.msra.mxu0 %v4328
      %4389 = vmatpush.bf16.msra.mxu0 %v4326
      %4390 = vmatpush.bf16.msra.mxu0 %v4324
      %4391 = vmatmul.bf16.gmra.mxu0 %v4246
      %v4392 = vpop.f32.mrf.mxu0
      %v4393 = vadd.f32 0.0, %v4392
      %v4394 = vpop.f32.mrf.mxu0
      %4395 = vdwg.mxu0
      %4396 = vmatpush.bf16.msra.mxu0 0
      %4397 = vmatpush.bf16.msra.mxu0 0
      %4398 = vmatpush.bf16.msra.mxu0 0
      %4399 = vmatpush.bf16.msra.mxu0 %v4378
      %4400 = vmatpush.bf16.msra.mxu0 %v4346
      %4401 = vmatpush.bf16.msra.mxu0 %v4344
      %4402 = vmatpush.bf16.msra.mxu0 %v4342
      %4403 = vmatpush.bf16.msra.mxu0 %v4340
      %4404 = vmatmul.bf16.gmra.mxu0 %v4375
      %v4405 = vpop.f32.mrf.mxu0
      %v4406 = vadd.f32 %v4393, %v4405
      %v4407 = vpop.f32.mrf.mxu0
      %4408 = vdwg.mxu0
      %4409 = vmatpush.bf16.msra.mxu0 %v4339
      %4410 = vmatpush.bf16.msra.mxu0 %v4337
      %4411 = vmatpush.bf16.msra.mxu0 %v4335
      %4412 = vmatpush.bf16.msra.mxu0 %v4333
      %4413 = vmatpush.bf16.msra.mxu0 %v4331
      %4414 = vmatpush.bf16.msra.mxu0 %v4329
      %4415 = vmatpush.bf16.msra.mxu0 %v4327
      %4416 = vmatpush.bf16.msra.mxu0 %v4325
      %4417 = vmatmul.bf16.gmra.mxu0 %v4246
      %v4418 = vpop.f32.mrf.mxu0
      %v4419 = vadd.f32 0.0, %v4418
      %v4420 = vpop.f32.mrf.mxu0
      %4421 = vdwg.mxu0
      %4422 = vmatpush.bf16.msra.mxu0 0
      %4423 = vmatpush.bf16.msra.mxu0 0
      %4424 = vmatpush.bf16.msra.mxu0 0
      %4425 = vmatpush.bf16.msra.mxu0 %v4381
      %4426 = vmatpush.bf16.msra.mxu0 %v4347
      %4427 = vmatpush.bf16.msra.mxu0 %v4345
      %4428 = vmatpush.bf16.msra.mxu0 %v4343
      %4429 = vmatpush.bf16.msra.mxu0 %v4341
      %4430 = vmatmul.bf16.gmra.mxu0 %v4375
      %v4431 = vpop.f32.mrf.mxu0
      %v4432 = vadd.f32 %v4419, %v4431
      %v4433 = vpop.f32.mrf.mxu0
      %4434 = vdwg.mxu0
      %v4435 = vadd.f32 %v4218, %v4406
      %v4436 = vadd.f32 %v4219, %v4432
      %s4437 = scalar_lea.vmem %s2, 3800
      %v4438 = vld [vmem:[%s4437] sm:$0xff]
      %v4439 = vld [vmem:[%s4437 + $0x8] sm:$0xff]
      %v4440 = vld [vmem:[%s4437 + $0x10] sm:$0xff]
      %v4441 = vld [vmem:[%s4437 + $0x18] sm:$0xff]
      %v4442 = vld [vmem:[%s4437 + $0x20] sm:$0xff]
      %v4443 = vld [vmem:[%s4437 + $0x28] sm:$0xff]
      %v4444 = vld [vmem:[%s4437 + $0x30] sm:$0xff]
      %v4445 = vld [vmem:[%s4437 + $0x38] sm:$0xff]
      %v4446 = vld [vmem:[%s4437 + $0x40] sm:$0xff]
      %v4447 = vld [vmem:[%s4437 + $0x48] sm:$0xff]
      %v4448 = vld [vmem:[%s4437 + $0x50] sm:$0xff]
      %v4449 = vld [vmem:[%s4437 + $0x58] sm:$0xff]
      %v4450 = vld [vmem:[%s4437 + $0x60] sm:$0xff]
      %v4451 = vld [vmem:[%s4437 + $0x68] sm:$0xff]
      %v4452 = vld [vmem:[%s4437 + $0x70] sm:$0xff]
      %v4453 = vld [vmem:[%s4437 + $0x78] sm:$0xff]
      %v4454 = vld [vmem:[%s4437 + $0x80] sm:$0xff]
      %v4455 = vld [vmem:[%s4437 + $0x88] sm:$0xff]
      %v4456 = vld [vmem:[%s4437 + $0x90] sm:$0xff]
      %v4457 = vld [vmem:[%s4437 + $0x98] sm:$0xff]
      %v4458 = vld [vmem:[%s4437 + $0xa0] sm:$0xff]
      %v4459 = vld [vmem:[%s4437 + $0xa8] sm:$0xff]
      %v4460 = vld [vmem:[%s4437 + $0xb0] sm:$0xff]
      %v4461 = vld [vmem:[%s4437 + $0xb8] sm:$0xff]
      %v4462 = vld [vmem:[%s4437 + $0xc0] sm:$0x33]
      %v4463 = vrot.slane %v4027, 1
      %v4464 = vrot.slane %v4029, 1
      %v4491 = vunpack.c.l.b16 %v4438
      %v4492 = vunpack.c.h.b16 %v4438
      %v4493 = vunpack.c.l.b16 %v4439
      %v4494 = vunpack.c.h.b16 %v4439
      %v4495 = vunpack.c.l.b16 %v4440
      %v4496 = vunpack.c.h.b16 %v4440
      %v4497 = vunpack.c.l.b16 %v4441
      %v4498 = vunpack.c.h.b16 %v4441
      %v4499 = vunpack.c.l.b16 %v4442
      %v4500 = vunpack.c.h.b16 %v4442
      %v4501 = vunpack.c.l.b16 %v4443
      %v4502 = vunpack.c.h.b16 %v4443
      %v4503 = vunpack.c.l.b16 %v4444
      %v4504 = vunpack.c.h.b16 %v4444
      %v4505 = vunpack.c.l.b16 %v4445
      %v4506 = vunpack.c.h.b16 %v4445
      %v4507 = vunpack.c.l.b16 %v4446
      %v4508 = vunpack.c.h.b16 %v4446
      %v4509 = vunpack.c.l.b16 %v4447
      %v4510 = vunpack.c.h.b16 %v4447
      %v4511 = vunpack.c.l.b16 %v4448
      %v4512 = vunpack.c.h.b16 %v4448
      %v4513 = vunpack.c.l.b16 %v4449
      %v4514 = vunpack.c.h.b16 %v4449
      %v4515 = vunpack.c.l.b16 %v4450
      %v4516 = vunpack.c.h.b16 %v4450
      %v4517 = vunpack.c.l.b16 %v4451
      %v4518 = vunpack.c.h.b16 %v4451
      %v4519 = vunpack.c.l.b16 %v4452
      %v4520 = vunpack.c.h.b16 %v4452
      %v4521 = vunpack.c.l.b16 %v4453
      %v4522 = vunpack.c.h.b16 %v4453
      %v4523 = vunpack.c.l.b16 %v4454
      %v4524 = vunpack.c.h.b16 %v4454
      %v4525 = vunpack.c.l.b16 %v4455
      %v4526 = vunpack.c.h.b16 %v4455
      %v4527 = vunpack.c.l.b16 %v4456
      %v4528 = vunpack.c.h.b16 %v4456
      %v4529 = vunpack.c.l.b16 %v4457
      %v4530 = vunpack.c.h.b16 %v4457
      %v4531 = vunpack.c.l.b16 %v4458
      %v4532 = vunpack.c.h.b16 %v4458
      %v4533 = vunpack.c.l.b16 %v4459
      %v4534 = vunpack.c.h.b16 %v4459
      %v4535 = vunpack.c.l.b16 %v4460
      %v4536 = vunpack.c.h.b16 %v4460
      %v4537 = vunpack.c.l.b16 %v4461
      %v4538 = vunpack.c.h.b16 %v4461
      %v4539 = vunpack.c.l.b16 %v4462
      %v4540 = vunpack.c.h.b16 %v4462
      %v4541 = vpack.c.b16 %v4493, %v4491
      %v4542 = vpack.c.b16 %v4494, %v4492
      %v4543 = vpack.c.b16 %v4497, %v4495
      %v4544 = vpack.c.b16 %v4498, %v4496
      %v4545 = vpack.c.b16 %v4501, %v4499
      %v4546 = vpack.c.b16 %v4502, %v4500
      %v4547 = vpack.c.b16 %v4505, %v4503
      %v4548 = vpack.c.b16 %v4506, %v4504
      %v4549 = vpack.c.b16 %v4509, %v4507
      %v4550 = vpack.c.b16 %v4510, %v4508
      %v4551 = vpack.c.b16 %v4513, %v4511
      %v4552 = vpack.c.b16 %v4514, %v4512
      %v4553 = vpack.c.b16 %v4517, %v4515
      %v4554 = vpack.c.b16 %v4518, %v4516
      %v4555 = vpack.c.b16 %v4521, %v4519
      %v4556 = vpack.c.b16 %v4522, %v4520
      %v4557 = vpack.c.b16 %v4525, %v4523
      %v4558 = vpack.c.b16 %v4526, %v4524
      %v4559 = vpack.c.b16 %v4529, %v4527
      %v4560 = vpack.c.b16 %v4530, %v4528
      %v4561 = vpack.c.b16 %v4533, %v4531
      %v4562 = vpack.c.b16 %v4534, %v4532
      %v4563 = vpack.c.b16 %v4537, %v4535
      %v4564 = vpack.c.b16 %v4538, %v4536
      %v4565 = vpack.c.b16 %v4539, %v4539
      %v4566 = vpack.c.b16 %v4540, %v4540
      %v4592 = vsel %vm487, %v4464, 0
      %v4595 = vsel %vm491, %v4565, 0
      %v4598 = vsel %vm491, %v4566, 0
      %4600 = vmatpush.bf16.msra.mxu0 %v4555
      %4601 = vmatpush.bf16.msra.mxu0 %v4553
      %4602 = vmatpush.bf16.msra.mxu0 %v4551
      %4603 = vmatpush.bf16.msra.mxu0 %v4549
      %4604 = vmatpush.bf16.msra.mxu0 %v4547
      %4605 = vmatpush.bf16.msra.mxu0 %v4545
      %4606 = vmatpush.bf16.msra.mxu0 %v4543
      %4607 = vmatpush.bf16.msra.mxu0 %v4541
      %4608 = vmatmul.bf16.gmra.mxu0 %v4463
      %v4609 = vpop.f32.mrf.mxu0
      %v4610 = vadd.f32 0.0, %v4609
      %v4611 = vpop.f32.mrf.mxu0
      %4612 = vdwg.mxu0
      %4613 = vmatpush.bf16.msra.mxu0 0
      %4614 = vmatpush.bf16.msra.mxu0 0
      %4615 = vmatpush.bf16.msra.mxu0 0
      %4616 = vmatpush.bf16.msra.mxu0 %v4595
      %4617 = vmatpush.bf16.msra.mxu0 %v4563
      %4618 = vmatpush.bf16.msra.mxu0 %v4561
      %4619 = vmatpush.bf16.msra.mxu0 %v4559
      %4620 = vmatpush.bf16.msra.mxu0 %v4557
      %4621 = vmatmul.bf16.gmra.mxu0 %v4592
      %v4622 = vpop.f32.mrf.mxu0
      %v4623 = vadd.f32 %v4610, %v4622
      %v4624 = vpop.f32.mrf.mxu0
      %4625 = vdwg.mxu0
      %4626 = vmatpush.bf16.msra.mxu0 %v4556
      %4627 = vmatpush.bf16.msra.mxu0 %v4554
      %4628 = vmatpush.bf16.msra.mxu0 %v4552
      %4629 = vmatpush.bf16.msra.mxu0 %v4550
      %4630 = vmatpush.bf16.msra.mxu0 %v4548
      %4631 = vmatpush.bf16.msra.mxu0 %v4546
      %4632 = vmatpush.bf16.msra.mxu0 %v4544
      %4633 = vmatpush.bf16.msra.mxu0 %v4542
      %4634 = vmatmul.bf16.gmra.mxu0 %v4463
      %v4635 = vpop.f32.mrf.mxu0
      %v4636 = vadd.f32 0.0, %v4635
      %v4637 = vpop.f32.mrf.mxu0
      %4638 = vdwg.mxu0
      %4639 = vmatpush.bf16.msra.mxu0 0
      %4640 = vmatpush.bf16.msra.mxu0 0
      %4641 = vmatpush.bf16.msra.mxu0 0
      %4642 = vmatpush.bf16.msra.mxu0 %v4598
      %4643 = vmatpush.bf16.msra.mxu0 %v4564
      %4644 = vmatpush.bf16.msra.mxu0 %v4562
      %4645 = vmatpush.bf16.msra.mxu0 %v4560
      %4646 = vmatpush.bf16.msra.mxu0 %v4558
      %4647 = vmatmul.bf16.gmra.mxu0 %v4592
      %v4648 = vpop.f32.mrf.mxu0
      %v4649 = vadd.f32 %v4636, %v4648
      %v4650 = vpop.f32.mrf.mxu0
      %4651 = vdwg.mxu0
      %v4652 = vadd.f32 %v4435, %v4623
      %v4653 = vadd.f32 %v4436, %v4649
      %s4654 = scalar_lea.vmem %s2, 4000
      %v4655 = vld [vmem:[%s4654] sm:$0xff]
      %v4656 = vld [vmem:[%s4654 + $0x8] sm:$0xff]
      %v4657 = vld [vmem:[%s4654 + $0x10] sm:$0xff]
      %v4658 = vld [vmem:[%s4654 + $0x18] sm:$0xff]
      %v4659 = vld [vmem:[%s4654 + $0x20] sm:$0xff]
      %v4660 = vld [vmem:[%s4654 + $0x28] sm:$0xff]
      %v4661 = vld [vmem:[%s4654 + $0x30] sm:$0xff]
      %v4662 = vld [vmem:[%s4654 + $0x38] sm:$0xff]
      %v4663 = vld [vmem:[%s4654 + $0x40] sm:$0xff]
      %v4664 = vld [vmem:[%s4654 + $0x48] sm:$0xff]
      %v4665 = vld [vmem:[%s4654 + $0x50] sm:$0xff]
      %v4666 = vld [vmem:[%s4654 + $0x58] sm:$0xff]
      %v4667 = vld [vmem:[%s4654 + $0x60] sm:$0xff]
      %v4668 = vld [vmem:[%s4654 + $0x68] sm:$0xff]
      %v4669 = vld [vmem:[%s4654 + $0x70] sm:$0xff]
      %v4670 = vld [vmem:[%s4654 + $0x78] sm:$0xff]
      %v4671 = vld [vmem:[%s4654 + $0x80] sm:$0xff]
      %v4672 = vld [vmem:[%s4654 + $0x88] sm:$0xff]
      %v4673 = vld [vmem:[%s4654 + $0x90] sm:$0xff]
      %v4674 = vld [vmem:[%s4654 + $0x98] sm:$0xff]
      %v4675 = vld [vmem:[%s4654 + $0xa0] sm:$0xff]
      %v4676 = vld [vmem:[%s4654 + $0xa8] sm:$0xff]
      %v4677 = vld [vmem:[%s4654 + $0xb0] sm:$0xff]
      %v4678 = vld [vmem:[%s4654 + $0xb8] sm:$0xff]
      %v4679 = vld [vmem:[%s4654 + $0xc0] sm:$0x33]
      %v4680 = vrot.slane %v3809, 2
      %v4681 = vrot.slane %v3810, 2
      %v4708 = vunpack.c.l.b16 %v4655
      %v4709 = vunpack.c.h.b16 %v4655
      %v4710 = vunpack.c.l.b16 %v4656
      %v4711 = vunpack.c.h.b16 %v4656
      %v4712 = vunpack.c.l.b16 %v4657
      %v4713 = vunpack.c.h.b16 %v4657
      %v4714 = vunpack.c.l.b16 %v4658
      %v4715 = vunpack.c.h.b16 %v4658
      %v4716 = vunpack.c.l.b16 %v4659
      %v4717 = vunpack.c.h.b16 %v4659
      %v4718 = vunpack.c.l.b16 %v4660
      %v4719 = vunpack.c.h.b16 %v4660
      %v4720 = vunpack.c.l.b16 %v4661
      %v4721 = vunpack.c.h.b16 %v4661
      %v4722 = vunpack.c.l.b16 %v4662
      %v4723 = vunpack.c.h.b16 %v4662
      %v4724 = vunpack.c.l.b16 %v4663
      %v4725 = vunpack.c.h.b16 %v4663
      %v4726 = vunpack.c.l.b16 %v4664
      %v4727 = vunpack.c.h.b16 %v4664
      %v4728 = vunpack.c.l.b16 %v4665
      %v4729 = vunpack.c.h.b16 %v4665
      %v4730 = vunpack.c.l.b16 %v4666
      %v4731 = vunpack.c.h.b16 %v4666
      %v4732 = vunpack.c.l.b16 %v4667
      %v4733 = vunpack.c.h.b16 %v4667
      %v4734 = vunpack.c.l.b16 %v4668
      %v4735 = vunpack.c.h.b16 %v4668
      %v4736 = vunpack.c.l.b16 %v4669
      %v4737 = vunpack.c.h.b16 %v4669
      %v4738 = vunpack.c.l.b16 %v4670
      %v4739 = vunpack.c.h.b16 %v4670
      %v4740 = vunpack.c.l.b16 %v4671
      %v4741 = vunpack.c.h.b16 %v4671
      %v4742 = vunpack.c.l.b16 %v4672
      %v4743 = vunpack.c.h.b16 %v4672
      %v4744 = vunpack.c.l.b16 %v4673
      %v4745 = vunpack.c.h.b16 %v4673
      %v4746 = vunpack.c.l.b16 %v4674
      %v4747 = vunpack.c.h.b16 %v4674
      %v4748 = vunpack.c.l.b16 %v4675
      %v4749 = vunpack.c.h.b16 %v4675
      %v4750 = vunpack.c.l.b16 %v4676
      %v4751 = vunpack.c.h.b16 %v4676
      %v4752 = vunpack.c.l.b16 %v4677
      %v4753 = vunpack.c.h.b16 %v4677
      %v4754 = vunpack.c.l.b16 %v4678
      %v4755 = vunpack.c.h.b16 %v4678
      %v4756 = vunpack.c.l.b16 %v4679
      %v4757 = vunpack.c.h.b16 %v4679
      %v4758 = vpack.c.b16 %v4710, %v4708
      %v4759 = vpack.c.b16 %v4711, %v4709
      %v4760 = vpack.c.b16 %v4714, %v4712
      %v4761 = vpack.c.b16 %v4715, %v4713
      %v4762 = vpack.c.b16 %v4718, %v4716
      %v4763 = vpack.c.b16 %v4719, %v4717
      %v4764 = vpack.c.b16 %v4722, %v4720
      %v4765 = vpack.c.b16 %v4723, %v4721
      %v4766 = vpack.c.b16 %v4726, %v4724
      %v4767 = vpack.c.b16 %v4727, %v4725
      %v4768 = vpack.c.b16 %v4730, %v4728
      %v4769 = vpack.c.b16 %v4731, %v4729
      %v4770 = vpack.c.b16 %v4734, %v4732
      %v4771 = vpack.c.b16 %v4735, %v4733
      %v4772 = vpack.c.b16 %v4738, %v4736
      %v4773 = vpack.c.b16 %v4739, %v4737
      %v4774 = vpack.c.b16 %v4742, %v4740
      %v4775 = vpack.c.b16 %v4743, %v4741
      %v4776 = vpack.c.b16 %v4746, %v4744
      %v4777 = vpack.c.b16 %v4747, %v4745
      %v4778 = vpack.c.b16 %v4750, %v4748
      %v4779 = vpack.c.b16 %v4751, %v4749
      %v4780 = vpack.c.b16 %v4754, %v4752
      %v4781 = vpack.c.b16 %v4755, %v4753
      %v4782 = vpack.c.b16 %v4756, %v4756
      %v4783 = vpack.c.b16 %v4757, %v4757
      %v4809 = vsel %vm487, %v4681, 0
      %v4812 = vsel %vm491, %v4782, 0
      %v4815 = vsel %vm491, %v4783, 0
      %4817 = vmatpush.bf16.msra.mxu0 %v4772
      %4818 = vmatpush.bf16.msra.mxu0 %v4770
      %4819 = vmatpush.bf16.msra.mxu0 %v4768
      %4820 = vmatpush.bf16.msra.mxu0 %v4766
      %4821 = vmatpush.bf16.msra.mxu0 %v4764
      %4822 = vmatpush.bf16.msra.mxu0 %v4762
      %4823 = vmatpush.bf16.msra.mxu0 %v4760
      %4824 = vmatpush.bf16.msra.mxu0 %v4758
      %4825 = vmatmul.bf16.gmra.mxu0 %v4680
      %v4826 = vpop.f32.mrf.mxu0
      %v4827 = vadd.f32 0.0, %v4826
      %v4828 = vpop.f32.mrf.mxu0
      %4829 = vdwg.mxu0
      %4830 = vmatpush.bf16.msra.mxu0 0
      %4831 = vmatpush.bf16.msra.mxu0 0
      %4832 = vmatpush.bf16.msra.mxu0 0
      %4833 = vmatpush.bf16.msra.mxu0 %v4812
      %4834 = vmatpush.bf16.msra.mxu0 %v4780
      %4835 = vmatpush.bf16.msra.mxu0 %v4778
      %4836 = vmatpush.bf16.msra.mxu0 %v4776
      %4837 = vmatpush.bf16.msra.mxu0 %v4774
      %4838 = vmatmul.bf16.gmra.mxu0 %v4809
      %v4839 = vpop.f32.mrf.mxu0
      %v4840 = vadd.f32 %v4827, %v4839
      %v4841 = vpop.f32.mrf.mxu0
      %4842 = vdwg.mxu0
      %4843 = vmatpush.bf16.msra.mxu0 %v4773
      %4844 = vmatpush.bf16.msra.mxu0 %v4771
      %4845 = vmatpush.bf16.msra.mxu0 %v4769
      %4846 = vmatpush.bf16.msra.mxu0 %v4767
      %4847 = vmatpush.bf16.msra.mxu0 %v4765
      %4848 = vmatpush.bf16.msra.mxu0 %v4763
      %4849 = vmatpush.bf16.msra.mxu0 %v4761
      %4850 = vmatpush.bf16.msra.mxu0 %v4759
      %4851 = vmatmul.bf16.gmra.mxu0 %v4680
      %v4852 = vpop.f32.mrf.mxu0
      %v4853 = vadd.f32 0.0, %v4852
      %v4854 = vpop.f32.mrf.mxu0
      %4855 = vdwg.mxu0
      %4856 = vmatpush.bf16.msra.mxu0 0
      %4857 = vmatpush.bf16.msra.mxu0 0
      %4858 = vmatpush.bf16.msra.mxu0 0
      %4859 = vmatpush.bf16.msra.mxu0 %v4815
      %4860 = vmatpush.bf16.msra.mxu0 %v4781
      %4861 = vmatpush.bf16.msra.mxu0 %v4779
      %4862 = vmatpush.bf16.msra.mxu0 %v4777
      %4863 = vmatpush.bf16.msra.mxu0 %v4775
      %4864 = vmatmul.bf16.gmra.mxu0 %v4809
      %v4865 = vpop.f32.mrf.mxu0
      %v4866 = vadd.f32 %v4853, %v4865
      %v4867 = vpop.f32.mrf.mxu0
      %4868 = vdwg.mxu0
      %v4869 = vadd.f32 %v4652, %v4840
      %v4870 = vadd.f32 %v4653, %v4866
      %s4871 = scalar_lea.vmem %s2, 4200
      %v4872 = vld [vmem:[%s4871] sm:$0xff]
      %v4873 = vld [vmem:[%s4871 + $0x8] sm:$0xff]
      %v4874 = vld [vmem:[%s4871 + $0x10] sm:$0xff]
      %v4875 = vld [vmem:[%s4871 + $0x18] sm:$0xff]
      %v4876 = vld [vmem:[%s4871 + $0x20] sm:$0xff]
      %v4877 = vld [vmem:[%s4871 + $0x28] sm:$0xff]
      %v4878 = vld [vmem:[%s4871 + $0x30] sm:$0xff]
      %v4879 = vld [vmem:[%s4871 + $0x38] sm:$0xff]
      %v4880 = vld [vmem:[%s4871 + $0x40] sm:$0xff]
      %v4881 = vld [vmem:[%s4871 + $0x48] sm:$0xff]
      %v4882 = vld [vmem:[%s4871 + $0x50] sm:$0xff]
      %v4883 = vld [vmem:[%s4871 + $0x58] sm:$0xff]
      %v4884 = vld [vmem:[%s4871 + $0x60] sm:$0xff]
      %v4885 = vld [vmem:[%s4871 + $0x68] sm:$0xff]
      %v4886 = vld [vmem:[%s4871 + $0x70] sm:$0xff]
      %v4887 = vld [vmem:[%s4871 + $0x78] sm:$0xff]
      %v4888 = vld [vmem:[%s4871 + $0x80] sm:$0xff]
      %v4889 = vld [vmem:[%s4871 + $0x88] sm:$0xff]
      %v4890 = vld [vmem:[%s4871 + $0x90] sm:$0xff]
      %v4891 = vld [vmem:[%s4871 + $0x98] sm:$0xff]
      %v4892 = vld [vmem:[%s4871 + $0xa0] sm:$0xff]
      %v4893 = vld [vmem:[%s4871 + $0xa8] sm:$0xff]
      %v4894 = vld [vmem:[%s4871 + $0xb0] sm:$0xff]
      %v4895 = vld [vmem:[%s4871 + $0xb8] sm:$0xff]
      %v4896 = vld [vmem:[%s4871 + $0xc0] sm:$0x33]
      %v4897 = vrot.slane %v4027, 2
      %v4898 = vrot.slane %v4029, 2
      %v4925 = vunpack.c.l.b16 %v4872
      %v4926 = vunpack.c.h.b16 %v4872
      %v4927 = vunpack.c.l.b16 %v4873
      %v4928 = vunpack.c.h.b16 %v4873
      %v4929 = vunpack.c.l.b16 %v4874
      %v4930 = vunpack.c.h.b16 %v4874
      %v4931 = vunpack.c.l.b16 %v4875
      %v4932 = vunpack.c.h.b16 %v4875
      %v4933 = vunpack.c.l.b16 %v4876
      %v4934 = vunpack.c.h.b16 %v4876
      %v4935 = vunpack.c.l.b16 %v4877
      %v4936 = vunpack.c.h.b16 %v4877
      %v4937 = vunpack.c.l.b16 %v4878
      %v4938 = vunpack.c.h.b16 %v4878
      %v4939 = vunpack.c.l.b16 %v4879
      %v4940 = vunpack.c.h.b16 %v4879
      %v4941 = vunpack.c.l.b16 %v4880
      %v4942 = vunpack.c.h.b16 %v4880
      %v4943 = vunpack.c.l.b16 %v4881
      %v4944 = vunpack.c.h.b16 %v4881
      %v4945 = vunpack.c.l.b16 %v4882
      %v4946 = vunpack.c.h.b16 %v4882
      %v4947 = vunpack.c.l.b16 %v4883
      %v4948 = vunpack.c.h.b16 %v4883
      %v4949 = vunpack.c.l.b16 %v4884
      %v4950 = vunpack.c.h.b16 %v4884
      %v4951 = vunpack.c.l.b16 %v4885
      %v4952 = vunpack.c.h.b16 %v4885
      %v4953 = vunpack.c.l.b16 %v4886
      %v4954 = vunpack.c.h.b16 %v4886
      %v4955 = vunpack.c.l.b16 %v4887
      %v4956 = vunpack.c.h.b16 %v4887
      %v4957 = vunpack.c.l.b16 %v4888
      %v4958 = vunpack.c.h.b16 %v4888
      %v4959 = vunpack.c.l.b16 %v4889
      %v4960 = vunpack.c.h.b16 %v4889
      %v4961 = vunpack.c.l.b16 %v4890
      %v4962 = vunpack.c.h.b16 %v4890
      %v4963 = vunpack.c.l.b16 %v4891
      %v4964 = vunpack.c.h.b16 %v4891
      %v4965 = vunpack.c.l.b16 %v4892
      %v4966 = vunpack.c.h.b16 %v4892
      %v4967 = vunpack.c.l.b16 %v4893
      %v4968 = vunpack.c.h.b16 %v4893
      %v4969 = vunpack.c.l.b16 %v4894
      %v4970 = vunpack.c.h.b16 %v4894
      %v4971 = vunpack.c.l.b16 %v4895
      %v4972 = vunpack.c.h.b16 %v4895
      %v4973 = vunpack.c.l.b16 %v4896
      %v4974 = vunpack.c.h.b16 %v4896
      %v4975 = vpack.c.b16 %v4927, %v4925
      %v4976 = vpack.c.b16 %v4928, %v4926
      %v4977 = vpack.c.b16 %v4931, %v4929
      %v4978 = vpack.c.b16 %v4932, %v4930
      %v4979 = vpack.c.b16 %v4935, %v4933
      %v4980 = vpack.c.b16 %v4936, %v4934
      %v4981 = vpack.c.b16 %v4939, %v4937
      %v4982 = vpack.c.b16 %v4940, %v4938
      %v4983 = vpack.c.b16 %v4943, %v4941
      %v4984 = vpack.c.b16 %v4944, %v4942
      %v4985 = vpack.c.b16 %v4947, %v4945
      %v4986 = vpack.c.b16 %v4948, %v4946
      %v4987 = vpack.c.b16 %v4951, %v4949
      %v4988 = vpack.c.b16 %v4952, %v4950
      %v4989 = vpack.c.b16 %v4955, %v4953
      %v4990 = vpack.c.b16 %v4956, %v4954
      %v4991 = vpack.c.b16 %v4959, %v4957
      %v4992 = vpack.c.b16 %v4960, %v4958
      %v4993 = vpack.c.b16 %v4963, %v4961
      %v4994 = vpack.c.b16 %v4964, %v4962
      %v4995 = vpack.c.b16 %v4967, %v4965
      %v4996 = vpack.c.b16 %v4968, %v4966
      %v4997 = vpack.c.b16 %v4971, %v4969
      %v4998 = vpack.c.b16 %v4972, %v4970
      %v4999 = vpack.c.b16 %v4973, %v4973
      %v5000 = vpack.c.b16 %v4974, %v4974
      %v5026 = vsel %vm487, %v4898, 0
      %v5029 = vsel %vm491, %v4999, 0
      %v5032 = vsel %vm491, %v5000, 0
      %5034 = vmatpush.bf16.msra.mxu0 %v4989
      %5035 = vmatpush.bf16.msra.mxu0 %v4987
      %5036 = vmatpush.bf16.msra.mxu0 %v4985
      %5037 = vmatpush.bf16.msra.mxu0 %v4983
      %5038 = vmatpush.bf16.msra.mxu0 %v4981
      %5039 = vmatpush.bf16.msra.mxu0 %v4979
      %5040 = vmatpush.bf16.msra.mxu0 %v4977
      %5041 = vmatpush.bf16.msra.mxu0 %v4975
      %5042 = vmatmul.bf16.gmra.mxu0 %v4897
      %v5043 = vpop.f32.mrf.mxu0
      %v5044 = vadd.f32 0.0, %v5043
      %v5045 = vpop.f32.mrf.mxu0
      %5046 = vdwg.mxu0
      %5047 = vmatpush.bf16.msra.mxu0 0
      %5048 = vmatpush.bf16.msra.mxu0 0
      %5049 = vmatpush.bf16.msra.mxu0 0
      %5050 = vmatpush.bf16.msra.mxu0 %v5029
      %5051 = vmatpush.bf16.msra.mxu0 %v4997
      %5052 = vmatpush.bf16.msra.mxu0 %v4995
      %5053 = vmatpush.bf16.msra.mxu0 %v4993
      %5054 = vmatpush.bf16.msra.mxu0 %v4991
      %5055 = vmatmul.bf16.gmra.mxu0 %v5026
      %v5056 = vpop.f32.mrf.mxu0
      %v5057 = vadd.f32 %v5044, %v5056
      %v5058 = vpop.f32.mrf.mxu0
      %5059 = vdwg.mxu0
      %5060 = vmatpush.bf16.msra.mxu0 %v4990
      %5061 = vmatpush.bf16.msra.mxu0 %v4988
      %5062 = vmatpush.bf16.msra.mxu0 %v4986
      %5063 = vmatpush.bf16.msra.mxu0 %v4984
      %5064 = vmatpush.bf16.msra.mxu0 %v4982
      %5065 = vmatpush.bf16.msra.mxu0 %v4980
      %5066 = vmatpush.bf16.msra.mxu0 %v4978
      %5067 = vmatpush.bf16.msra.mxu0 %v4976
      %5068 = vmatmul.bf16.gmra.mxu0 %v4897
      %v5069 = vpop.f32.mrf.mxu0
      %v5070 = vadd.f32 0.0, %v5069
      %v5071 = vpop.f32.mrf.mxu0
      %5072 = vdwg.mxu0
      %5073 = vmatpush.bf16.msra.mxu0 0
      %5074 = vmatpush.bf16.msra.mxu0 0
      %5075 = vmatpush.bf16.msra.mxu0 0
      %5076 = vmatpush.bf16.msra.mxu0 %v5032
      %5077 = vmatpush.bf16.msra.mxu0 %v4998
      %5078 = vmatpush.bf16.msra.mxu0 %v4996
      %5079 = vmatpush.bf16.msra.mxu0 %v4994
      %5080 = vmatpush.bf16.msra.mxu0 %v4992
      %5081 = vmatmul.bf16.gmra.mxu0 %v5026
      %v5082 = vpop.f32.mrf.mxu0
      %v5083 = vadd.f32 %v5070, %v5082
      %v5084 = vpop.f32.mrf.mxu0
      %5085 = vdwg.mxu0
      %v5086 = vadd.f32 %v4869, %v5057
      %v5087 = vadd.f32 %v4870, %v5083
      %s5088 = scalar_lea.vmem %s2, 4400
      %v5089 = vld [vmem:[%s5088] sm:$0xff]
      %v5090 = vld [vmem:[%s5088 + $0x8] sm:$0xff]
      %v5091 = vld [vmem:[%s5088 + $0x10] sm:$0xff]
      %v5092 = vld [vmem:[%s5088 + $0x18] sm:$0xff]
      %v5093 = vld [vmem:[%s5088 + $0x20] sm:$0xff]
      %v5094 = vld [vmem:[%s5088 + $0x28] sm:$0xff]
      %v5095 = vld [vmem:[%s5088 + $0x30] sm:$0xff]
      %v5096 = vld [vmem:[%s5088 + $0x38] sm:$0xff]
      %v5097 = vld [vmem:[%s5088 + $0x40] sm:$0xff]
      %v5098 = vld [vmem:[%s5088 + $0x48] sm:$0xff]
      %v5099 = vld [vmem:[%s5088 + $0x50] sm:$0xff]
      %v5100 = vld [vmem:[%s5088 + $0x58] sm:$0xff]
      %v5101 = vld [vmem:[%s5088 + $0x60] sm:$0xff]
      %v5102 = vld [vmem:[%s5088 + $0x68] sm:$0xff]
      %v5103 = vld [vmem:[%s5088 + $0x70] sm:$0xff]
      %v5104 = vld [vmem:[%s5088 + $0x78] sm:$0xff]
      %v5105 = vld [vmem:[%s5088 + $0x80] sm:$0xff]
      %v5106 = vld [vmem:[%s5088 + $0x88] sm:$0xff]
      %v5107 = vld [vmem:[%s5088 + $0x90] sm:$0xff]
      %v5108 = vld [vmem:[%s5088 + $0x98] sm:$0xff]
      %v5109 = vld [vmem:[%s5088 + $0xa0] sm:$0xff]
      %v5110 = vld [vmem:[%s5088 + $0xa8] sm:$0xff]
      %v5111 = vld [vmem:[%s5088 + $0xb0] sm:$0xff]
      %v5112 = vld [vmem:[%s5088 + $0xb8] sm:$0xff]
      %v5113 = vld [vmem:[%s5088 + $0xc0] sm:$0x33]
      %v5114 = vrot.slane %v3809, 3
      %v5115 = vrot.slane %v3810, 3
      %v5142 = vunpack.c.l.b16 %v5089
      %v5143 = vunpack.c.h.b16 %v5089
      %v5144 = vunpack.c.l.b16 %v5090
      %v5145 = vunpack.c.h.b16 %v5090
      %v5146 = vunpack.c.l.b16 %v5091
      %v5147 = vunpack.c.h.b16 %v5091
      %v5148 = vunpack.c.l.b16 %v5092
      %v5149 = vunpack.c.h.b16 %v5092
      %v5150 = vunpack.c.l.b16 %v5093
      %v5151 = vunpack.c.h.b16 %v5093
      %v5152 = vunpack.c.l.b16 %v5094
      %v5153 = vunpack.c.h.b16 %v5094
      %v5154 = vunpack.c.l.b16 %v5095
      %v5155 = vunpack.c.h.b16 %v5095
      %v5156 = vunpack.c.l.b16 %v5096
      %v5157 = vunpack.c.h.b16 %v5096
      %v5158 = vunpack.c.l.b16 %v5097
      %v5159 = vunpack.c.h.b16 %v5097
      %v5160 = vunpack.c.l.b16 %v5098
      %v5161 = vunpack.c.h.b16 %v5098
      %v5162 = vunpack.c.l.b16 %v5099
      %v5163 = vunpack.c.h.b16 %v5099
      %v5164 = vunpack.c.l.b16 %v5100
      %v5165 = vunpack.c.h.b16 %v5100
      %v5166 = vunpack.c.l.b16 %v5101
      %v5167 = vunpack.c.h.b16 %v5101
      %v5168 = vunpack.c.l.b16 %v5102
      %v5169 = vunpack.c.h.b16 %v5102
      %v5170 = vunpack.c.l.b16 %v5103
      %v5171 = vunpack.c.h.b16 %v5103
      %v5172 = vunpack.c.l.b16 %v5104
      %v5173 = vunpack.c.h.b16 %v5104
      %v5174 = vunpack.c.l.b16 %v5105
      %v5175 = vunpack.c.h.b16 %v5105
      %v5176 = vunpack.c.l.b16 %v5106
      %v5177 = vunpack.c.h.b16 %v5106
      %v5178 = vunpack.c.l.b16 %v5107
      %v5179 = vunpack.c.h.b16 %v5107
      %v5180 = vunpack.c.l.b16 %v5108
      %v5181 = vunpack.c.h.b16 %v5108
      %v5182 = vunpack.c.l.b16 %v5109
      %v5183 = vunpack.c.h.b16 %v5109
      %v5184 = vunpack.c.l.b16 %v5110
      %v5185 = vunpack.c.h.b16 %v5110
      %v5186 = vunpack.c.l.b16 %v5111
      %v5187 = vunpack.c.h.b16 %v5111
      %v5188 = vunpack.c.l.b16 %v5112
      %v5189 = vunpack.c.h.b16 %v5112
      %v5190 = vunpack.c.l.b16 %v5113
      %v5191 = vunpack.c.h.b16 %v5113
      %v5192 = vpack.c.b16 %v5144, %v5142
      %v5193 = vpack.c.b16 %v5145, %v5143
      %v5194 = vpack.c.b16 %v5148, %v5146
      %v5195 = vpack.c.b16 %v5149, %v5147
      %v5196 = vpack.c.b16 %v5152, %v5150
      %v5197 = vpack.c.b16 %v5153, %v5151
      %v5198 = vpack.c.b16 %v5156, %v5154
      %v5199 = vpack.c.b16 %v5157, %v5155
      %v5200 = vpack.c.b16 %v5160, %v5158
      %v5201 = vpack.c.b16 %v5161, %v5159
      %v5202 = vpack.c.b16 %v5164, %v5162
      %v5203 = vpack.c.b16 %v5165, %v5163
      %v5204 = vpack.c.b16 %v5168, %v5166
      %v5205 = vpack.c.b16 %v5169, %v5167
      %v5206 = vpack.c.b16 %v5172, %v5170
      %v5207 = vpack.c.b16 %v5173, %v5171
      %v5208 = vpack.c.b16 %v5176, %v5174
      %v5209 = vpack.c.b16 %v5177, %v5175
      %v5210 = vpack.c.b16 %v5180, %v5178
      %v5211 = vpack.c.b16 %v5181, %v5179
      %v5212 = vpack.c.b16 %v5184, %v5182
      %v5213 = vpack.c.b16 %v5185, %v5183
      %v5214 = vpack.c.b16 %v5188, %v5186
      %v5215 = vpack.c.b16 %v5189, %v5187
      %v5216 = vpack.c.b16 %v5190, %v5190
      %v5217 = vpack.c.b16 %v5191, %v5191
      %v5243 = vsel %vm487, %v5115, 0
      %v5246 = vsel %vm491, %v5216, 0
      %v5249 = vsel %vm491, %v5217, 0
      %5251 = vmatpush.bf16.msra.mxu0 %v5206
      %5252 = vmatpush.bf16.msra.mxu0 %v5204
      %5253 = vmatpush.bf16.msra.mxu0 %v5202
      %5254 = vmatpush.bf16.msra.mxu0 %v5200
      %5255 = vmatpush.bf16.msra.mxu0 %v5198
      %5256 = vmatpush.bf16.msra.mxu0 %v5196
      %5257 = vmatpush.bf16.msra.mxu0 %v5194
      %5258 = vmatpush.bf16.msra.mxu0 %v5192
      %5259 = vmatmul.bf16.gmra.mxu0 %v5114
      %v5260 = vpop.f32.mrf.mxu0
      %v5261 = vadd.f32 0.0, %v5260
      %v5262 = vpop.f32.mrf.mxu0
      %5263 = vdwg.mxu0
      %5264 = vmatpush.bf16.msra.mxu0 0
      %5265 = vmatpush.bf16.msra.mxu0 0
      %5266 = vmatpush.bf16.msra.mxu0 0
      %5267 = vmatpush.bf16.msra.mxu0 %v5246
      %5268 = vmatpush.bf16.msra.mxu0 %v5214
      %5269 = vmatpush.bf16.msra.mxu0 %v5212
      %5270 = vmatpush.bf16.msra.mxu0 %v5210
      %5271 = vmatpush.bf16.msra.mxu0 %v5208
      %5272 = vmatmul.bf16.gmra.mxu0 %v5243
      %v5273 = vpop.f32.mrf.mxu0
      %v5274 = vadd.f32 %v5261, %v5273
      %v5275 = vpop.f32.mrf.mxu0
      %5276 = vdwg.mxu0
      %5277 = vmatpush.bf16.msra.mxu0 %v5207
      %5278 = vmatpush.bf16.msra.mxu0 %v5205
      %5279 = vmatpush.bf16.msra.mxu0 %v5203
      %5280 = vmatpush.bf16.msra.mxu0 %v5201
      %5281 = vmatpush.bf16.msra.mxu0 %v5199
      %5282 = vmatpush.bf16.msra.mxu0 %v5197
      %5283 = vmatpush.bf16.msra.mxu0 %v5195
      %5284 = vmatpush.bf16.msra.mxu0 %v5193
      %5285 = vmatmul.bf16.gmra.mxu0 %v5114
      %v5286 = vpop.f32.mrf.mxu0
      %v5287 = vadd.f32 0.0, %v5286
      %v5288 = vpop.f32.mrf.mxu0
      %5289 = vdwg.mxu0
      %5290 = vmatpush.bf16.msra.mxu0 0
      %5291 = vmatpush.bf16.msra.mxu0 0
      %5292 = vmatpush.bf16.msra.mxu0 0
      %5293 = vmatpush.bf16.msra.mxu0 %v5249
      %5294 = vmatpush.bf16.msra.mxu0 %v5215
      %5295 = vmatpush.bf16.msra.mxu0 %v5213
      %5296 = vmatpush.bf16.msra.mxu0 %v5211
      %5297 = vmatpush.bf16.msra.mxu0 %v5209
      %5298 = vmatmul.bf16.gmra.mxu0 %v5243
      %v5299 = vpop.f32.mrf.mxu0
      %v5300 = vadd.f32 %v5287, %v5299
      %v5301 = vpop.f32.mrf.mxu0
      %5302 = vdwg.mxu0
      %v5303 = vadd.f32 %v5086, %v5274
      %v5304 = vadd.f32 %v5087, %v5300
      %s5305 = scalar_lea.vmem %s2, 4600
      %v5306 = vld [vmem:[%s5305] sm:$0xff]
      %v5307 = vld [vmem:[%s5305 + $0x8] sm:$0xff]
      %v5308 = vld [vmem:[%s5305 + $0x10] sm:$0xff]
      %v5309 = vld [vmem:[%s5305 + $0x18] sm:$0xff]
      %v5310 = vld [vmem:[%s5305 + $0x20] sm:$0xff]
      %v5311 = vld [vmem:[%s5305 + $0x28] sm:$0xff]
      %v5312 = vld [vmem:[%s5305 + $0x30] sm:$0xff]
      %v5313 = vld [vmem:[%s5305 + $0x38] sm:$0xff]
      %v5314 = vld [vmem:[%s5305 + $0x40] sm:$0xff]
      %v5315 = vld [vmem:[%s5305 + $0x48] sm:$0xff]
      %v5316 = vld [vmem:[%s5305 + $0x50] sm:$0xff]
      %v5317 = vld [vmem:[%s5305 + $0x58] sm:$0xff]
      %v5318 = vld [vmem:[%s5305 + $0x60] sm:$0xff]
      %v5319 = vld [vmem:[%s5305 + $0x68] sm:$0xff]
      %v5320 = vld [vmem:[%s5305 + $0x70] sm:$0xff]
      %v5321 = vld [vmem:[%s5305 + $0x78] sm:$0xff]
      %v5322 = vld [vmem:[%s5305 + $0x80] sm:$0xff]
      %v5323 = vld [vmem:[%s5305 + $0x88] sm:$0xff]
      %v5324 = vld [vmem:[%s5305 + $0x90] sm:$0xff]
      %v5325 = vld [vmem:[%s5305 + $0x98] sm:$0xff]
      %v5326 = vld [vmem:[%s5305 + $0xa0] sm:$0xff]
      %v5327 = vld [vmem:[%s5305 + $0xa8] sm:$0xff]
      %v5328 = vld [vmem:[%s5305 + $0xb0] sm:$0xff]
      %v5329 = vld [vmem:[%s5305 + $0xb8] sm:$0xff]
      %v5330 = vld [vmem:[%s5305 + $0xc0] sm:$0x33]
      %v5331 = vrot.slane %v4027, 3
      %v5332 = vrot.slane %v4029, 3
      %v5359 = vunpack.c.l.b16 %v5306
      %v5360 = vunpack.c.h.b16 %v5306
      %v5361 = vunpack.c.l.b16 %v5307
      %v5362 = vunpack.c.h.b16 %v5307
      %v5363 = vunpack.c.l.b16 %v5308
      %v5364 = vunpack.c.h.b16 %v5308
      %v5365 = vunpack.c.l.b16 %v5309
      %v5366 = vunpack.c.h.b16 %v5309
      %v5367 = vunpack.c.l.b16 %v5310
      %v5368 = vunpack.c.h.b16 %v5310
      %v5369 = vunpack.c.l.b16 %v5311
      %v5370 = vunpack.c.h.b16 %v5311
      %v5371 = vunpack.c.l.b16 %v5312
      %v5372 = vunpack.c.h.b16 %v5312
      %v5373 = vunpack.c.l.b16 %v5313
      %v5374 = vunpack.c.h.b16 %v5313
      %v5375 = vunpack.c.l.b16 %v5314
      %v5376 = vunpack.c.h.b16 %v5314
      %v5377 = vunpack.c.l.b16 %v5315
      %v5378 = vunpack.c.h.b16 %v5315
      %v5379 = vunpack.c.l.b16 %v5316
      %v5380 = vunpack.c.h.b16 %v5316
      %v5381 = vunpack.c.l.b16 %v5317
      %v5382 = vunpack.c.h.b16 %v5317
      %v5383 = vunpack.c.l.b16 %v5318
      %v5384 = vunpack.c.h.b16 %v5318
      %v5385 = vunpack.c.l.b16 %v5319
      %v5386 = vunpack.c.h.b16 %v5319
      %v5387 = vunpack.c.l.b16 %v5320
      %v5388 = vunpack.c.h.b16 %v5320
      %v5389 = vunpack.c.l.b16 %v5321
      %v5390 = vunpack.c.h.b16 %v5321
      %v5391 = vunpack.c.l.b16 %v5322
      %v5392 = vunpack.c.h.b16 %v5322
      %v5393 = vunpack.c.l.b16 %v5323
      %v5394 = vunpack.c.h.b16 %v5323
      %v5395 = vunpack.c.l.b16 %v5324
      %v5396 = vunpack.c.h.b16 %v5324
      %v5397 = vunpack.c.l.b16 %v5325
      %v5398 = vunpack.c.h.b16 %v5325
      %v5399 = vunpack.c.l.b16 %v5326
      %v5400 = vunpack.c.h.b16 %v5326
      %v5401 = vunpack.c.l.b16 %v5327
      %v5402 = vunpack.c.h.b16 %v5327
      %v5403 = vunpack.c.l.b16 %v5328
      %v5404 = vunpack.c.h.b16 %v5328
      %v5405 = vunpack.c.l.b16 %v5329
      %v5406 = vunpack.c.h.b16 %v5329
      %v5407 = vunpack.c.l.b16 %v5330
      %v5408 = vunpack.c.h.b16 %v5330
      %v5409 = vpack.c.b16 %v5361, %v5359
      %v5410 = vpack.c.b16 %v5362, %v5360
      %v5411 = vpack.c.b16 %v5365, %v5363
      %v5412 = vpack.c.b16 %v5366, %v5364
      %v5413 = vpack.c.b16 %v5369, %v5367
      %v5414 = vpack.c.b16 %v5370, %v5368
      %v5415 = vpack.c.b16 %v5373, %v5371
      %v5416 = vpack.c.b16 %v5374, %v5372
      %v5417 = vpack.c.b16 %v5377, %v5375
      %v5418 = vpack.c.b16 %v5378, %v5376
      %v5419 = vpack.c.b16 %v5381, %v5379
      %v5420 = vpack.c.b16 %v5382, %v5380
      %v5421 = vpack.c.b16 %v5385, %v5383
      %v5422 = vpack.c.b16 %v5386, %v5384
      %v5423 = vpack.c.b16 %v5389, %v5387
      %v5424 = vpack.c.b16 %v5390, %v5388
      %v5425 = vpack.c.b16 %v5393, %v5391
      %v5426 = vpack.c.b16 %v5394, %v5392
      %v5427 = vpack.c.b16 %v5397, %v5395
      %v5428 = vpack.c.b16 %v5398, %v5396
      %v5429 = vpack.c.b16 %v5401, %v5399
      %v5430 = vpack.c.b16 %v5402, %v5400
      %v5431 = vpack.c.b16 %v5405, %v5403
      %v5432 = vpack.c.b16 %v5406, %v5404
      %v5433 = vpack.c.b16 %v5407, %v5407
      %v5434 = vpack.c.b16 %v5408, %v5408
      %v5460 = vsel %vm487, %v5332, 0
      %v5463 = vsel %vm491, %v5433, 0
      %v5466 = vsel %vm491, %v5434, 0
      %5468 = vmatpush.bf16.msra.mxu0 %v5423
      %5469 = vmatpush.bf16.msra.mxu0 %v5421
      %5470 = vmatpush.bf16.msra.mxu0 %v5419
      %5471 = vmatpush.bf16.msra.mxu0 %v5417
      %5472 = vmatpush.bf16.msra.mxu0 %v5415
      %5473 = vmatpush.bf16.msra.mxu0 %v5413
      %5474 = vmatpush.bf16.msra.mxu0 %v5411
      %5475 = vmatpush.bf16.msra.mxu0 %v5409
      %5476 = vmatmul.bf16.gmra.mxu0 %v5331
      %v5477 = vpop.f32.mrf.mxu0
      %v5478 = vadd.f32 0.0, %v5477
      %v5479 = vpop.f32.mrf.mxu0
      %5480 = vdwg.mxu0
      %5481 = vmatpush.bf16.msra.mxu0 0
      %5482 = vmatpush.bf16.msra.mxu0 0
      %5483 = vmatpush.bf16.msra.mxu0 0
      %5484 = vmatpush.bf16.msra.mxu0 %v5463
      %5485 = vmatpush.bf16.msra.mxu0 %v5431
      %5486 = vmatpush.bf16.msra.mxu0 %v5429
      %5487 = vmatpush.bf16.msra.mxu0 %v5427
      %5488 = vmatpush.bf16.msra.mxu0 %v5425
      %5489 = vmatmul.bf16.gmra.mxu0 %v5460
      %v5490 = vpop.f32.mrf.mxu0
      %v5491 = vadd.f32 %v5478, %v5490
      %v5492 = vpop.f32.mrf.mxu0
      %5493 = vdwg.mxu0
      %5494 = vmatpush.bf16.msra.mxu0 %v5424
      %5495 = vmatpush.bf16.msra.mxu0 %v5422
      %5496 = vmatpush.bf16.msra.mxu0 %v5420
      %5497 = vmatpush.bf16.msra.mxu0 %v5418
      %5498 = vmatpush.bf16.msra.mxu0 %v5416
      %5499 = vmatpush.bf16.msra.mxu0 %v5414
      %5500 = vmatpush.bf16.msra.mxu0 %v5412
      %5501 = vmatpush.bf16.msra.mxu0 %v5410
      %5502 = vmatmul.bf16.gmra.mxu0 %v5331
      %v5503 = vpop.f32.mrf.mxu0
      %v5504 = vadd.f32 0.0, %v5503
      %v5505 = vpop.f32.mrf.mxu0
      %5506 = vdwg.mxu0
      %5507 = vmatpush.bf16.msra.mxu0 0
      %5508 = vmatpush.bf16.msra.mxu0 0
      %5509 = vmatpush.bf16.msra.mxu0 0
      %5510 = vmatpush.bf16.msra.mxu0 %v5466
      %5511 = vmatpush.bf16.msra.mxu0 %v5432
      %5512 = vmatpush.bf16.msra.mxu0 %v5430
      %5513 = vmatpush.bf16.msra.mxu0 %v5428
      %5514 = vmatpush.bf16.msra.mxu0 %v5426
      %5515 = vmatmul.bf16.gmra.mxu0 %v5460
      %v5516 = vpop.f32.mrf.mxu0
      %v5517 = vadd.f32 %v5504, %v5516
      %v5518 = vpop.f32.mrf.mxu0
      %5519 = vdwg.mxu0
      %v5520 = vadd.f32 %v5303, %v5491
      %v5521 = vadd.f32 %v5304, %v5517
      %s5522 = scalar_lea.vmem %s2, 4800
      %v5523 = vld [vmem:[%s5522] sm:$0xff]
      %v5524 = vld [vmem:[%s5522 + $0x8] sm:$0xff]
      %v5525 = vld [vmem:[%s5522 + $0x10] sm:$0xff]
      %v5526 = vld [vmem:[%s5522 + $0x18] sm:$0xff]
      %v5527 = vld [vmem:[%s5522 + $0x20] sm:$0xff]
      %v5528 = vld [vmem:[%s5522 + $0x28] sm:$0xff]
      %v5529 = vld [vmem:[%s5522 + $0x30] sm:$0xff]
      %v5530 = vld [vmem:[%s5522 + $0x38] sm:$0xff]
      %v5531 = vld [vmem:[%s5522 + $0x40] sm:$0xff]
      %v5532 = vld [vmem:[%s5522 + $0x48] sm:$0xff]
      %v5533 = vld [vmem:[%s5522 + $0x50] sm:$0xff]
      %v5534 = vld [vmem:[%s5522 + $0x58] sm:$0xff]
      %v5535 = vld [vmem:[%s5522 + $0x60] sm:$0xff]
      %v5536 = vld [vmem:[%s5522 + $0x68] sm:$0xff]
      %v5537 = vld [vmem:[%s5522 + $0x70] sm:$0xff]
      %v5538 = vld [vmem:[%s5522 + $0x78] sm:$0xff]
      %v5539 = vld [vmem:[%s5522 + $0x80] sm:$0xff]
      %v5540 = vld [vmem:[%s5522 + $0x88] sm:$0xff]
      %v5541 = vld [vmem:[%s5522 + $0x90] sm:$0xff]
      %v5542 = vld [vmem:[%s5522 + $0x98] sm:$0xff]
      %v5543 = vld [vmem:[%s5522 + $0xa0] sm:$0xff]
      %v5544 = vld [vmem:[%s5522 + $0xa8] sm:$0xff]
      %v5545 = vld [vmem:[%s5522 + $0xb0] sm:$0xff]
      %v5546 = vld [vmem:[%s5522 + $0xb8] sm:$0xff]
      %v5547 = vld [vmem:[%s5522 + $0xc0] sm:$0x33]
      %v5549 = vunpack.c.l.b16 %v298
      %v5550 = vunpack.c.h.b16 %v298
      %v5551 = vpack.c.b16 %v5549, %v5549
      %v5552 = vpack.c.b16 %v5550, %v5550
      %v5579 = vunpack.c.l.b16 %v5523
      %v5580 = vunpack.c.h.b16 %v5523
      %v5581 = vunpack.c.l.b16 %v5524
      %v5582 = vunpack.c.h.b16 %v5524
      %v5583 = vunpack.c.l.b16 %v5525
      %v5584 = vunpack.c.h.b16 %v5525
      %v5585 = vunpack.c.l.b16 %v5526
      %v5586 = vunpack.c.h.b16 %v5526
      %v5587 = vunpack.c.l.b16 %v5527
      %v5588 = vunpack.c.h.b16 %v5527
      %v5589 = vunpack.c.l.b16 %v5528
      %v5590 = vunpack.c.h.b16 %v5528
      %v5591 = vunpack.c.l.b16 %v5529
      %v5592 = vunpack.c.h.b16 %v5529
      %v5593 = vunpack.c.l.b16 %v5530
      %v5594 = vunpack.c.h.b16 %v5530
      %v5595 = vunpack.c.l.b16 %v5531
      %v5596 = vunpack.c.h.b16 %v5531
      %v5597 = vunpack.c.l.b16 %v5532
      %v5598 = vunpack.c.h.b16 %v5532
      %v5599 = vunpack.c.l.b16 %v5533
      %v5600 = vunpack.c.h.b16 %v5533
      %v5601 = vunpack.c.l.b16 %v5534
      %v5602 = vunpack.c.h.b16 %v5534
      %v5603 = vunpack.c.l.b16 %v5535
      %v5604 = vunpack.c.h.b16 %v5535
      %v5605 = vunpack.c.l.b16 %v5536
      %v5606 = vunpack.c.h.b16 %v5536
      %v5607 = vunpack.c.l.b16 %v5537
      %v5608 = vunpack.c.h.b16 %v5537
      %v5609 = vunpack.c.l.b16 %v5538
      %v5610 = vunpack.c.h.b16 %v5538
      %v5611 = vunpack.c.l.b16 %v5539
      %v5612 = vunpack.c.h.b16 %v5539
      %v5613 = vunpack.c.l.b16 %v5540
      %v5614 = vunpack.c.h.b16 %v5540
      %v5615 = vunpack.c.l.b16 %v5541
      %v5616 = vunpack.c.h.b16 %v5541
      %v5617 = vunpack.c.l.b16 %v5542
      %v5618 = vunpack.c.h.b16 %v5542
      %v5619 = vunpack.c.l.b16 %v5543
      %v5620 = vunpack.c.h.b16 %v5543
      %v5621 = vunpack.c.l.b16 %v5544
      %v5622 = vunpack.c.h.b16 %v5544
      %v5623 = vunpack.c.l.b16 %v5545
      %v5624 = vunpack.c.h.b16 %v5545
      %v5625 = vunpack.c.l.b16 %v5546
      %v5626 = vunpack.c.h.b16 %v5546
      %v5627 = vunpack.c.l.b16 %v5547
      %v5628 = vunpack.c.h.b16 %v5547
      %v5629 = vpack.c.b16 %v5581, %v5579
      %v5630 = vpack.c.b16 %v5582, %v5580
      %v5631 = vpack.c.b16 %v5585, %v5583
      %v5632 = vpack.c.b16 %v5586, %v5584
      %v5633 = vpack.c.b16 %v5589, %v5587
      %v5634 = vpack.c.b16 %v5590, %v5588
      %v5635 = vpack.c.b16 %v5593, %v5591
      %v5636 = vpack.c.b16 %v5594, %v5592
      %v5637 = vpack.c.b16 %v5597, %v5595
      %v5638 = vpack.c.b16 %v5598, %v5596
      %v5639 = vpack.c.b16 %v5601, %v5599
      %v5640 = vpack.c.b16 %v5602, %v5600
      %v5641 = vpack.c.b16 %v5605, %v5603
      %v5642 = vpack.c.b16 %v5606, %v5604
      %v5643 = vpack.c.b16 %v5609, %v5607
      %v5644 = vpack.c.b16 %v5610, %v5608
      %v5645 = vpack.c.b16 %v5613, %v5611
      %v5646 = vpack.c.b16 %v5614, %v5612
      %v5647 = vpack.c.b16 %v5617, %v5615
      %v5648 = vpack.c.b16 %v5618, %v5616
      %v5649 = vpack.c.b16 %v5621, %v5619
      %v5650 = vpack.c.b16 %v5622, %v5620
      %v5651 = vpack.c.b16 %v5625, %v5623
      %v5652 = vpack.c.b16 %v5626, %v5624
      %v5653 = vpack.c.b16 %v5627, %v5627
      %v5654 = vpack.c.b16 %v5628, %v5628
      %v5680 = vsel %vm487, %v5552, 0
      %v5683 = vsel %vm491, %v5653, 0
      %v5686 = vsel %vm491, %v5654, 0
      %5688 = vmatpush.bf16.msra.mxu0 %v5643
      %5689 = vmatpush.bf16.msra.mxu0 %v5641
      %5690 = vmatpush.bf16.msra.mxu0 %v5639
      %5691 = vmatpush.bf16.msra.mxu0 %v5637
      %5692 = vmatpush.bf16.msra.mxu0 %v5635
      %5693 = vmatpush.bf16.msra.mxu0 %v5633
      %5694 = vmatpush.bf16.msra.mxu0 %v5631
      %5695 = vmatpush.bf16.msra.mxu0 %v5629
      %5696 = vmatmul.bf16.gmra.mxu0 %v5551
      %v5697 = vpop.f32.mrf.mxu0
      %v5698 = vadd.f32 0.0, %v5697
      %v5699 = vpop.f32.mrf.mxu0
      %5700 = vdwg.mxu0
      %5701 = vmatpush.bf16.msra.mxu0 0
      %5702 = vmatpush.bf16.msra.mxu0 0
      %5703 = vmatpush.bf16.msra.mxu0 0
      %5704 = vmatpush.bf16.msra.mxu0 %v5683
      %5705 = vmatpush.bf16.msra.mxu0 %v5651
      %5706 = vmatpush.bf16.msra.mxu0 %v5649
      %5707 = vmatpush.bf16.msra.mxu0 %v5647
      %5708 = vmatpush.bf16.msra.mxu0 %v5645
      %5709 = vmatmul.bf16.gmra.mxu0 %v5680
      %v5710 = vpop.f32.mrf.mxu0
      %v5711 = vadd.f32 %v5698, %v5710
      %v5712 = vpop.f32.mrf.mxu0
      %5713 = vdwg.mxu0
      %5714 = vmatpush.bf16.msra.mxu0 %v5644
      %5715 = vmatpush.bf16.msra.mxu0 %v5642
      %5716 = vmatpush.bf16.msra.mxu0 %v5640
      %5717 = vmatpush.bf16.msra.mxu0 %v5638
      %5718 = vmatpush.bf16.msra.mxu0 %v5636
      %5719 = vmatpush.bf16.msra.mxu0 %v5634
      %5720 = vmatpush.bf16.msra.mxu0 %v5632
      %5721 = vmatpush.bf16.msra.mxu0 %v5630
      %5722 = vmatmul.bf16.gmra.mxu0 %v5551
      %v5723 = vpop.f32.mrf.mxu0
      %v5724 = vadd.f32 0.0, %v5723
      %v5725 = vpop.f32.mrf.mxu0
      %5726 = vdwg.mxu0
      %5727 = vmatpush.bf16.msra.mxu0 0
      %5728 = vmatpush.bf16.msra.mxu0 0
      %5729 = vmatpush.bf16.msra.mxu0 0
      %5730 = vmatpush.bf16.msra.mxu0 %v5686
      %5731 = vmatpush.bf16.msra.mxu0 %v5652
      %5732 = vmatpush.bf16.msra.mxu0 %v5650
      %5733 = vmatpush.bf16.msra.mxu0 %v5648
      %5734 = vmatpush.bf16.msra.mxu0 %v5646
      %5735 = vmatmul.bf16.gmra.mxu0 %v5680
      %v5736 = vpop.f32.mrf.mxu0
      %v5737 = vadd.f32 %v5724, %v5736
      %v5738 = vpop.f32.mrf.mxu0
      %5739 = vdwg.mxu0
      %v5740 = vadd.f32 %v5520, %v5711
      %v5741 = vadd.f32 %v5521, %v5737
      %s5742 = scalar_lea.vmem %s2, 5000
      %v5743 = vld [vmem:[%s5742] sm:$0xff]
      %v5744 = vld [vmem:[%s5742 + $0x8] sm:$0xff]
      %v5745 = vld [vmem:[%s5742 + $0x10] sm:$0xff]
      %v5746 = vld [vmem:[%s5742 + $0x18] sm:$0xff]
      %v5747 = vld [vmem:[%s5742 + $0x20] sm:$0xff]
      %v5748 = vld [vmem:[%s5742 + $0x28] sm:$0xff]
      %v5749 = vld [vmem:[%s5742 + $0x30] sm:$0xff]
      %v5750 = vld [vmem:[%s5742 + $0x38] sm:$0xff]
      %v5751 = vld [vmem:[%s5742 + $0x40] sm:$0xff]
      %v5752 = vld [vmem:[%s5742 + $0x48] sm:$0xff]
      %v5753 = vld [vmem:[%s5742 + $0x50] sm:$0xff]
      %v5754 = vld [vmem:[%s5742 + $0x58] sm:$0xff]
      %v5755 = vld [vmem:[%s5742 + $0x60] sm:$0xff]
      %v5756 = vld [vmem:[%s5742 + $0x68] sm:$0xff]
      %v5757 = vld [vmem:[%s5742 + $0x70] sm:$0xff]
      %v5758 = vld [vmem:[%s5742 + $0x78] sm:$0xff]
      %v5759 = vld [vmem:[%s5742 + $0x80] sm:$0xff]
      %v5760 = vld [vmem:[%s5742 + $0x88] sm:$0xff]
      %v5761 = vld [vmem:[%s5742 + $0x90] sm:$0xff]
      %v5762 = vld [vmem:[%s5742 + $0x98] sm:$0xff]
      %v5763 = vld [vmem:[%s5742 + $0xa0] sm:$0xff]
      %v5764 = vld [vmem:[%s5742 + $0xa8] sm:$0xff]
      %v5765 = vld [vmem:[%s5742 + $0xb0] sm:$0xff]
      %v5766 = vld [vmem:[%s5742 + $0xb8] sm:$0xff]
      %v5767 = vld [vmem:[%s5742 + $0xc0] sm:$0x33]
      %v5769 = vshrl.u32 %v5551, 16
      %v5771 = vshrl.u32 %v5552, 16
      %v5799 = vunpack.c.l.b16 %v5743
      %v5800 = vunpack.c.h.b16 %v5743
      %v5801 = vunpack.c.l.b16 %v5744
      %v5802 = vunpack.c.h.b16 %v5744
      %v5803 = vunpack.c.l.b16 %v5745
      %v5804 = vunpack.c.h.b16 %v5745
      %v5805 = vunpack.c.l.b16 %v5746
      %v5806 = vunpack.c.h.b16 %v5746
      %v5807 = vunpack.c.l.b16 %v5747
      %v5808 = vunpack.c.h.b16 %v5747
      %v5809 = vunpack.c.l.b16 %v5748
      %v5810 = vunpack.c.h.b16 %v5748
      %v5811 = vunpack.c.l.b16 %v5749
      %v5812 = vunpack.c.h.b16 %v5749
      %v5813 = vunpack.c.l.b16 %v5750
      %v5814 = vunpack.c.h.b16 %v5750
      %v5815 = vunpack.c.l.b16 %v5751
      %v5816 = vunpack.c.h.b16 %v5751
      %v5817 = vunpack.c.l.b16 %v5752
      %v5818 = vunpack.c.h.b16 %v5752
      %v5819 = vunpack.c.l.b16 %v5753
      %v5820 = vunpack.c.h.b16 %v5753
      %v5821 = vunpack.c.l.b16 %v5754
      %v5822 = vunpack.c.h.b16 %v5754
      %v5823 = vunpack.c.l.b16 %v5755
      %v5824 = vunpack.c.h.b16 %v5755
      %v5825 = vunpack.c.l.b16 %v5756
      %v5826 = vunpack.c.h.b16 %v5756
      %v5827 = vunpack.c.l.b16 %v5757
      %v5828 = vunpack.c.h.b16 %v5757
      %v5829 = vunpack.c.l.b16 %v5758
      %v5830 = vunpack.c.h.b16 %v5758
      %v5831 = vunpack.c.l.b16 %v5759
      %v5832 = vunpack.c.h.b16 %v5759
      %v5833 = vunpack.c.l.b16 %v5760
      %v5834 = vunpack.c.h.b16 %v5760
      %v5835 = vunpack.c.l.b16 %v5761
      %v5836 = vunpack.c.h.b16 %v5761
      %v5837 = vunpack.c.l.b16 %v5762
      %v5838 = vunpack.c.h.b16 %v5762
      %v5839 = vunpack.c.l.b16 %v5763
      %v5840 = vunpack.c.h.b16 %v5763
      %v5841 = vunpack.c.l.b16 %v5764
      %v5842 = vunpack.c.h.b16 %v5764
      %v5843 = vunpack.c.l.b16 %v5765
      %v5844 = vunpack.c.h.b16 %v5765
      %v5845 = vunpack.c.l.b16 %v5766
      %v5846 = vunpack.c.h.b16 %v5766
      %v5847 = vunpack.c.l.b16 %v5767
      %v5848 = vunpack.c.h.b16 %v5767
      %v5849 = vpack.c.b16 %v5801, %v5799
      %v5850 = vpack.c.b16 %v5802, %v5800
      %v5851 = vpack.c.b16 %v5805, %v5803
      %v5852 = vpack.c.b16 %v5806, %v5804
      %v5853 = vpack.c.b16 %v5809, %v5807
      %v5854 = vpack.c.b16 %v5810, %v5808
      %v5855 = vpack.c.b16 %v5813, %v5811
      %v5856 = vpack.c.b16 %v5814, %v5812
      %v5857 = vpack.c.b16 %v5817, %v5815
      %v5858 = vpack.c.b16 %v5818, %v5816
      %v5859 = vpack.c.b16 %v5821, %v5819
      %v5860 = vpack.c.b16 %v5822, %v5820
      %v5861 = vpack.c.b16 %v5825, %v5823
      %v5862 = vpack.c.b16 %v5826, %v5824
      %v5863 = vpack.c.b16 %v5829, %v5827
      %v5864 = vpack.c.b16 %v5830, %v5828
      %v5865 = vpack.c.b16 %v5833, %v5831
      %v5866 = vpack.c.b16 %v5834, %v5832
      %v5867 = vpack.c.b16 %v5837, %v5835
      %v5868 = vpack.c.b16 %v5838, %v5836
      %v5869 = vpack.c.b16 %v5841, %v5839
      %v5870 = vpack.c.b16 %v5842, %v5840
      %v5871 = vpack.c.b16 %v5845, %v5843
      %v5872 = vpack.c.b16 %v5846, %v5844
      %v5873 = vpack.c.b16 %v5847, %v5847
      %v5874 = vpack.c.b16 %v5848, %v5848
      %v5900 = vsel %vm487, %v5771, 0
      %v5903 = vsel %vm491, %v5873, 0
      %v5906 = vsel %vm491, %v5874, 0
      %5908 = vmatpush.bf16.msra.mxu0 %v5863
      %5909 = vmatpush.bf16.msra.mxu0 %v5861
      %5910 = vmatpush.bf16.msra.mxu0 %v5859
      %5911 = vmatpush.bf16.msra.mxu0 %v5857
      %5912 = vmatpush.bf16.msra.mxu0 %v5855
      %5913 = vmatpush.bf16.msra.mxu0 %v5853
      %5914 = vmatpush.bf16.msra.mxu0 %v5851
      %5915 = vmatpush.bf16.msra.mxu0 %v5849
      %5916 = vmatmul.bf16.gmra.mxu0 %v5769
      %v5917 = vpop.f32.mrf.mxu0
      %v5918 = vadd.f32 0.0, %v5917
      %v5919 = vpop.f32.mrf.mxu0
      %5920 = vdwg.mxu0
      %5921 = vmatpush.bf16.msra.mxu0 0
      %5922 = vmatpush.bf16.msra.mxu0 0
      %5923 = vmatpush.bf16.msra.mxu0 0
      %5924 = vmatpush.bf16.msra.mxu0 %v5903
      %5925 = vmatpush.bf16.msra.mxu0 %v5871
      %5926 = vmatpush.bf16.msra.mxu0 %v5869
      %5927 = vmatpush.bf16.msra.mxu0 %v5867
      %5928 = vmatpush.bf16.msra.mxu0 %v5865
      %5929 = vmatmul.bf16.gmra.mxu0 %v5900
      %v5930 = vpop.f32.mrf.mxu0
      %v5931 = vadd.f32 %v5918, %v5930
      %v5932 = vpop.f32.mrf.mxu0
      %5933 = vdwg.mxu0
      %5934 = vmatpush.bf16.msra.mxu0 %v5864
      %5935 = vmatpush.bf16.msra.mxu0 %v5862
      %5936 = vmatpush.bf16.msra.mxu0 %v5860
      %5937 = vmatpush.bf16.msra.mxu0 %v5858
      %5938 = vmatpush.bf16.msra.mxu0 %v5856
      %5939 = vmatpush.bf16.msra.mxu0 %v5854
      %5940 = vmatpush.bf16.msra.mxu0 %v5852
      %5941 = vmatpush.bf16.msra.mxu0 %v5850
      %5942 = vmatmul.bf16.gmra.mxu0 %v5769
      %v5943 = vpop.f32.mrf.mxu0
      %v5944 = vadd.f32 0.0, %v5943
      %v5945 = vpop.f32.mrf.mxu0
      %5946 = vdwg.mxu0
      %5947 = vmatpush.bf16.msra.mxu0 0
      %5948 = vmatpush.bf16.msra.mxu0 0
      %5949 = vmatpush.bf16.msra.mxu0 0
      %5950 = vmatpush.bf16.msra.mxu0 %v5906
      %5951 = vmatpush.bf16.msra.mxu0 %v5872
      %5952 = vmatpush.bf16.msra.mxu0 %v5870
      %5953 = vmatpush.bf16.msra.mxu0 %v5868
      %5954 = vmatpush.bf16.msra.mxu0 %v5866
      %5955 = vmatmul.bf16.gmra.mxu0 %v5900
      %v5956 = vpop.f32.mrf.mxu0
      %v5957 = vadd.f32 %v5944, %v5956
      %v5958 = vpop.f32.mrf.mxu0
      %5959 = vdwg.mxu0
      %v5960 = vadd.f32 %v5740, %v5931
      %v5961 = vadd.f32 %v5741, %v5957
      %s5962 = scalar_lea.vmem %s2, 5200
      %v5963 = vld [vmem:[%s5962] sm:$0xff]
      %v5964 = vld [vmem:[%s5962 + $0x8] sm:$0xff]
      %v5965 = vld [vmem:[%s5962 + $0x10] sm:$0xff]
      %v5966 = vld [vmem:[%s5962 + $0x18] sm:$0xff]
      %v5967 = vld [vmem:[%s5962 + $0x20] sm:$0xff]
      %v5968 = vld [vmem:[%s5962 + $0x28] sm:$0xff]
      %v5969 = vld [vmem:[%s5962 + $0x30] sm:$0xff]
      %v5970 = vld [vmem:[%s5962 + $0x38] sm:$0xff]
      %v5971 = vld [vmem:[%s5962 + $0x40] sm:$0xff]
      %v5972 = vld [vmem:[%s5962 + $0x48] sm:$0xff]
      %v5973 = vld [vmem:[%s5962 + $0x50] sm:$0xff]
      %v5974 = vld [vmem:[%s5962 + $0x58] sm:$0xff]
      %v5975 = vld [vmem:[%s5962 + $0x60] sm:$0xff]
      %v5976 = vld [vmem:[%s5962 + $0x68] sm:$0xff]
      %v5977 = vld [vmem:[%s5962 + $0x70] sm:$0xff]
      %v5978 = vld [vmem:[%s5962 + $0x78] sm:$0xff]
      %v5979 = vld [vmem:[%s5962 + $0x80] sm:$0xff]
      %v5980 = vld [vmem:[%s5962 + $0x88] sm:$0xff]
      %v5981 = vld [vmem:[%s5962 + $0x90] sm:$0xff]
      %v5982 = vld [vmem:[%s5962 + $0x98] sm:$0xff]
      %v5983 = vld [vmem:[%s5962 + $0xa0] sm:$0xff]
      %v5984 = vld [vmem:[%s5962 + $0xa8] sm:$0xff]
      %v5985 = vld [vmem:[%s5962 + $0xb0] sm:$0xff]
      %v5986 = vld [vmem:[%s5962 + $0xb8] sm:$0xff]
      %v5987 = vld [vmem:[%s5962 + $0xc0] sm:$0x33]
      %v5988 = vrot.slane %v5551, 1
      %v5989 = vrot.slane %v5552, 1
      %v6016 = vunpack.c.l.b16 %v5963
      %v6017 = vunpack.c.h.b16 %v5963
      %v6018 = vunpack.c.l.b16 %v5964
      %v6019 = vunpack.c.h.b16 %v5964
      %v6020 = vunpack.c.l.b16 %v5965
      %v6021 = vunpack.c.h.b16 %v5965
      %v6022 = vunpack.c.l.b16 %v5966
      %v6023 = vunpack.c.h.b16 %v5966
      %v6024 = vunpack.c.l.b16 %v5967
      %v6025 = vunpack.c.h.b16 %v5967
      %v6026 = vunpack.c.l.b16 %v5968
      %v6027 = vunpack.c.h.b16 %v5968
      %v6028 = vunpack.c.l.b16 %v5969
      %v6029 = vunpack.c.h.b16 %v5969
      %v6030 = vunpack.c.l.b16 %v5970
      %v6031 = vunpack.c.h.b16 %v5970
      %v6032 = vunpack.c.l.b16 %v5971
      %v6033 = vunpack.c.h.b16 %v5971
      %v6034 = vunpack.c.l.b16 %v5972
      %v6035 = vunpack.c.h.b16 %v5972
      %v6036 = vunpack.c.l.b16 %v5973
      %v6037 = vunpack.c.h.b16 %v5973
      %v6038 = vunpack.c.l.b16 %v5974
      %v6039 = vunpack.c.h.b16 %v5974
      %v6040 = vunpack.c.l.b16 %v5975
      %v6041 = vunpack.c.h.b16 %v5975
      %v6042 = vunpack.c.l.b16 %v5976
      %v6043 = vunpack.c.h.b16 %v5976
      %v6044 = vunpack.c.l.b16 %v5977
      %v6045 = vunpack.c.h.b16 %v5977
      %v6046 = vunpack.c.l.b16 %v5978
      %v6047 = vunpack.c.h.b16 %v5978
      %v6048 = vunpack.c.l.b16 %v5979
      %v6049 = vunpack.c.h.b16 %v5979
      %v6050 = vunpack.c.l.b16 %v5980
      %v6051 = vunpack.c.h.b16 %v5980
      %v6052 = vunpack.c.l.b16 %v5981
      %v6053 = vunpack.c.h.b16 %v5981
      %v6054 = vunpack.c.l.b16 %v5982
      %v6055 = vunpack.c.h.b16 %v5982
      %v6056 = vunpack.c.l.b16 %v5983
      %v6057 = vunpack.c.h.b16 %v5983
      %v6058 = vunpack.c.l.b16 %v5984
      %v6059 = vunpack.c.h.b16 %v5984
      %v6060 = vunpack.c.l.b16 %v5985
      %v6061 = vunpack.c.h.b16 %v5985
      %v6062 = vunpack.c.l.b16 %v5986
      %v6063 = vunpack.c.h.b16 %v5986
      %v6064 = vunpack.c.l.b16 %v5987
      %v6065 = vunpack.c.h.b16 %v5987
      %v6066 = vpack.c.b16 %v6018, %v6016
      %v6067 = vpack.c.b16 %v6019, %v6017
      %v6068 = vpack.c.b16 %v6022, %v6020
      %v6069 = vpack.c.b16 %v6023, %v6021
      %v6070 = vpack.c.b16 %v6026, %v6024
      %v6071 = vpack.c.b16 %v6027, %v6025
      %v6072 = vpack.c.b16 %v6030, %v6028
      %v6073 = vpack.c.b16 %v6031, %v6029
      %v6074 = vpack.c.b16 %v6034, %v6032
      %v6075 = vpack.c.b16 %v6035, %v6033
      %v6076 = vpack.c.b16 %v6038, %v6036
      %v6077 = vpack.c.b16 %v6039, %v6037
      %v6078 = vpack.c.b16 %v6042, %v6040
      %v6079 = vpack.c.b16 %v6043, %v6041
      %v6080 = vpack.c.b16 %v6046, %v6044
      %v6081 = vpack.c.b16 %v6047, %v6045
      %v6082 = vpack.c.b16 %v6050, %v6048
      %v6083 = vpack.c.b16 %v6051, %v6049
      %v6084 = vpack.c.b16 %v6054, %v6052
      %v6085 = vpack.c.b16 %v6055, %v6053
      %v6086 = vpack.c.b16 %v6058, %v6056
      %v6087 = vpack.c.b16 %v6059, %v6057
      %v6088 = vpack.c.b16 %v6062, %v6060
      %v6089 = vpack.c.b16 %v6063, %v6061
      %v6090 = vpack.c.b16 %v6064, %v6064
      %v6091 = vpack.c.b16 %v6065, %v6065
      %v6117 = vsel %vm487, %v5989, 0
      %v6120 = vsel %vm491, %v6090, 0
      %v6123 = vsel %vm491, %v6091, 0
      %6125 = vmatpush.bf16.msra.mxu0 %v6080
      %6126 = vmatpush.bf16.msra.mxu0 %v6078
      %6127 = vmatpush.bf16.msra.mxu0 %v6076
      %6128 = vmatpush.bf16.msra.mxu0 %v6074
      %6129 = vmatpush.bf16.msra.mxu0 %v6072
      %6130 = vmatpush.bf16.msra.mxu0 %v6070
      %6131 = vmatpush.bf16.msra.mxu0 %v6068
      %6132 = vmatpush.bf16.msra.mxu0 %v6066
      %6133 = vmatmul.bf16.gmra.mxu0 %v5988
      %v6134 = vpop.f32.mrf.mxu0
      %v6135 = vadd.f32 0.0, %v6134
      %v6136 = vpop.f32.mrf.mxu0
      %6137 = vdwg.mxu0
      %6138 = vmatpush.bf16.msra.mxu0 0
      %6139 = vmatpush.bf16.msra.mxu0 0
      %6140 = vmatpush.bf16.msra.mxu0 0
      %6141 = vmatpush.bf16.msra.mxu0 %v6120
      %6142 = vmatpush.bf16.msra.mxu0 %v6088
      %6143 = vmatpush.bf16.msra.mxu0 %v6086
      %6144 = vmatpush.bf16.msra.mxu0 %v6084
      %6145 = vmatpush.bf16.msra.mxu0 %v6082
      %6146 = vmatmul.bf16.gmra.mxu0 %v6117
      %v6147 = vpop.f32.mrf.mxu0
      %v6148 = vadd.f32 %v6135, %v6147
      %v6149 = vpop.f32.mrf.mxu0
      %6150 = vdwg.mxu0
      %6151 = vmatpush.bf16.msra.mxu0 %v6081
      %6152 = vmatpush.bf16.msra.mxu0 %v6079
      %6153 = vmatpush.bf16.msra.mxu0 %v6077
      %6154 = vmatpush.bf16.msra.mxu0 %v6075
      %6155 = vmatpush.bf16.msra.mxu0 %v6073
      %6156 = vmatpush.bf16.msra.mxu0 %v6071
      %6157 = vmatpush.bf16.msra.mxu0 %v6069
      %6158 = vmatpush.bf16.msra.mxu0 %v6067
      %6159 = vmatmul.bf16.gmra.mxu0 %v5988
      %v6160 = vpop.f32.mrf.mxu0
      %v6161 = vadd.f32 0.0, %v6160
      %v6162 = vpop.f32.mrf.mxu0
      %6163 = vdwg.mxu0
      %6164 = vmatpush.bf16.msra.mxu0 0
      %6165 = vmatpush.bf16.msra.mxu0 0
      %6166 = vmatpush.bf16.msra.mxu0 0
      %6167 = vmatpush.bf16.msra.mxu0 %v6123
      %6168 = vmatpush.bf16.msra.mxu0 %v6089
      %6169 = vmatpush.bf16.msra.mxu0 %v6087
      %6170 = vmatpush.bf16.msra.mxu0 %v6085
      %6171 = vmatpush.bf16.msra.mxu0 %v6083
      %6172 = vmatmul.bf16.gmra.mxu0 %v6117
      %v6173 = vpop.f32.mrf.mxu0
      %v6174 = vadd.f32 %v6161, %v6173
      %v6175 = vpop.f32.mrf.mxu0
      %6176 = vdwg.mxu0
      %v6177 = vadd.f32 %v5960, %v6148
      %v6178 = vadd.f32 %v5961, %v6174
      %s6179 = scalar_lea.vmem %s2, 5400
      %v6180 = vld [vmem:[%s6179] sm:$0xff]
      %v6181 = vld [vmem:[%s6179 + $0x8] sm:$0xff]
      %v6182 = vld [vmem:[%s6179 + $0x10] sm:$0xff]
      %v6183 = vld [vmem:[%s6179 + $0x18] sm:$0xff]
      %v6184 = vld [vmem:[%s6179 + $0x20] sm:$0xff]
      %v6185 = vld [vmem:[%s6179 + $0x28] sm:$0xff]
      %v6186 = vld [vmem:[%s6179 + $0x30] sm:$0xff]
      %v6187 = vld [vmem:[%s6179 + $0x38] sm:$0xff]
      %v6188 = vld [vmem:[%s6179 + $0x40] sm:$0xff]
      %v6189 = vld [vmem:[%s6179 + $0x48] sm:$0xff]
      %v6190 = vld [vmem:[%s6179 + $0x50] sm:$0xff]
      %v6191 = vld [vmem:[%s6179 + $0x58] sm:$0xff]
      %v6192 = vld [vmem:[%s6179 + $0x60] sm:$0xff]
      %v6193 = vld [vmem:[%s6179 + $0x68] sm:$0xff]
      %v6194 = vld [vmem:[%s6179 + $0x70] sm:$0xff]
      %v6195 = vld [vmem:[%s6179 + $0x78] sm:$0xff]
      %v6196 = vld [vmem:[%s6179 + $0x80] sm:$0xff]
      %v6197 = vld [vmem:[%s6179 + $0x88] sm:$0xff]
      %v6198 = vld [vmem:[%s6179 + $0x90] sm:$0xff]
      %v6199 = vld [vmem:[%s6179 + $0x98] sm:$0xff]
      %v6200 = vld [vmem:[%s6179 + $0xa0] sm:$0xff]
      %v6201 = vld [vmem:[%s6179 + $0xa8] sm:$0xff]
      %v6202 = vld [vmem:[%s6179 + $0xb0] sm:$0xff]
      %v6203 = vld [vmem:[%s6179 + $0xb8] sm:$0xff]
      %v6204 = vld [vmem:[%s6179 + $0xc0] sm:$0x33]
      %v6205 = vrot.slane %v5769, 1
      %v6206 = vrot.slane %v5771, 1
      %v6233 = vunpack.c.l.b16 %v6180
      %v6234 = vunpack.c.h.b16 %v6180
      %v6235 = vunpack.c.l.b16 %v6181
      %v6236 = vunpack.c.h.b16 %v6181
      %v6237 = vunpack.c.l.b16 %v6182
      %v6238 = vunpack.c.h.b16 %v6182
      %v6239 = vunpack.c.l.b16 %v6183
      %v6240 = vunpack.c.h.b16 %v6183
      %v6241 = vunpack.c.l.b16 %v6184
      %v6242 = vunpack.c.h.b16 %v6184
      %v6243 = vunpack.c.l.b16 %v6185
      %v6244 = vunpack.c.h.b16 %v6185
      %v6245 = vunpack.c.l.b16 %v6186
      %v6246 = vunpack.c.h.b16 %v6186
      %v6247 = vunpack.c.l.b16 %v6187
      %v6248 = vunpack.c.h.b16 %v6187
      %v6249 = vunpack.c.l.b16 %v6188
      %v6250 = vunpack.c.h.b16 %v6188
      %v6251 = vunpack.c.l.b16 %v6189
      %v6252 = vunpack.c.h.b16 %v6189
      %v6253 = vunpack.c.l.b16 %v6190
      %v6254 = vunpack.c.h.b16 %v6190
      %v6255 = vunpack.c.l.b16 %v6191
      %v6256 = vunpack.c.h.b16 %v6191
      %v6257 = vunpack.c.l.b16 %v6192
      %v6258 = vunpack.c.h.b16 %v6192
      %v6259 = vunpack.c.l.b16 %v6193
      %v6260 = vunpack.c.h.b16 %v6193
      %v6261 = vunpack.c.l.b16 %v6194
      %v6262 = vunpack.c.h.b16 %v6194
      %v6263 = vunpack.c.l.b16 %v6195
      %v6264 = vunpack.c.h.b16 %v6195
      %v6265 = vunpack.c.l.b16 %v6196
      %v6266 = vunpack.c.h.b16 %v6196
      %v6267 = vunpack.c.l.b16 %v6197
      %v6268 = vunpack.c.h.b16 %v6197
      %v6269 = vunpack.c.l.b16 %v6198
      %v6270 = vunpack.c.h.b16 %v6198
      %v6271 = vunpack.c.l.b16 %v6199
      %v6272 = vunpack.c.h.b16 %v6199
      %v6273 = vunpack.c.l.b16 %v6200
      %v6274 = vunpack.c.h.b16 %v6200
      %v6275 = vunpack.c.l.b16 %v6201
      %v6276 = vunpack.c.h.b16 %v6201
      %v6277 = vunpack.c.l.b16 %v6202
      %v6278 = vunpack.c.h.b16 %v6202
      %v6279 = vunpack.c.l.b16 %v6203
      %v6280 = vunpack.c.h.b16 %v6203
      %v6281 = vunpack.c.l.b16 %v6204
      %v6282 = vunpack.c.h.b16 %v6204
      %v6283 = vpack.c.b16 %v6235, %v6233
      %v6284 = vpack.c.b16 %v6236, %v6234
      %v6285 = vpack.c.b16 %v6239, %v6237
      %v6286 = vpack.c.b16 %v6240, %v6238
      %v6287 = vpack.c.b16 %v6243, %v6241
      %v6288 = vpack.c.b16 %v6244, %v6242
      %v6289 = vpack.c.b16 %v6247, %v6245
      %v6290 = vpack.c.b16 %v6248, %v6246
      %v6291 = vpack.c.b16 %v6251, %v6249
      %v6292 = vpack.c.b16 %v6252, %v6250
      %v6293 = vpack.c.b16 %v6255, %v6253
      %v6294 = vpack.c.b16 %v6256, %v6254
      %v6295 = vpack.c.b16 %v6259, %v6257
      %v6296 = vpack.c.b16 %v6260, %v6258
      %v6297 = vpack.c.b16 %v6263, %v6261
      %v6298 = vpack.c.b16 %v6264, %v6262
      %v6299 = vpack.c.b16 %v6267, %v6265
      %v6300 = vpack.c.b16 %v6268, %v6266
      %v6301 = vpack.c.b16 %v6271, %v6269
      %v6302 = vpack.c.b16 %v6272, %v6270
      %v6303 = vpack.c.b16 %v6275, %v6273
      %v6304 = vpack.c.b16 %v6276, %v6274
      %v6305 = vpack.c.b16 %v6279, %v6277
      %v6306 = vpack.c.b16 %v6280, %v6278
      %v6307 = vpack.c.b16 %v6281, %v6281
      %v6308 = vpack.c.b16 %v6282, %v6282
      %v6334 = vsel %vm487, %v6206, 0
      %v6337 = vsel %vm491, %v6307, 0
      %v6340 = vsel %vm491, %v6308, 0
      %6342 = vmatpush.bf16.msra.mxu0 %v6297
      %6343 = vmatpush.bf16.msra.mxu0 %v6295
      %6344 = vmatpush.bf16.msra.mxu0 %v6293
      %6345 = vmatpush.bf16.msra.mxu0 %v6291
      %6346 = vmatpush.bf16.msra.mxu0 %v6289
      %6347 = vmatpush.bf16.msra.mxu0 %v6287
      %6348 = vmatpush.bf16.msra.mxu0 %v6285
      %6349 = vmatpush.bf16.msra.mxu0 %v6283
      %6350 = vmatmul.bf16.gmra.mxu0 %v6205
      %v6351 = vpop.f32.mrf.mxu0
      %v6352 = vadd.f32 0.0, %v6351
      %v6353 = vpop.f32.mrf.mxu0
      %6354 = vdwg.mxu0
      %6355 = vmatpush.bf16.msra.mxu0 0
      %6356 = vmatpush.bf16.msra.mxu0 0
      %6357 = vmatpush.bf16.msra.mxu0 0
      %6358 = vmatpush.bf16.msra.mxu0 %v6337
      %6359 = vmatpush.bf16.msra.mxu0 %v6305
      %6360 = vmatpush.bf16.msra.mxu0 %v6303
      %6361 = vmatpush.bf16.msra.mxu0 %v6301
      %6362 = vmatpush.bf16.msra.mxu0 %v6299
      %6363 = vmatmul.bf16.gmra.mxu0 %v6334
      %v6364 = vpop.f32.mrf.mxu0
      %v6365 = vadd.f32 %v6352, %v6364
      %v6366 = vpop.f32.mrf.mxu0
      %6367 = vdwg.mxu0
      %6368 = vmatpush.bf16.msra.mxu0 %v6298
      %6369 = vmatpush.bf16.msra.mxu0 %v6296
      %6370 = vmatpush.bf16.msra.mxu0 %v6294
      %6371 = vmatpush.bf16.msra.mxu0 %v6292
      %6372 = vmatpush.bf16.msra.mxu0 %v6290
      %6373 = vmatpush.bf16.msra.mxu0 %v6288
      %6374 = vmatpush.bf16.msra.mxu0 %v6286
      %6375 = vmatpush.bf16.msra.mxu0 %v6284
      %6376 = vmatmul.bf16.gmra.mxu0 %v6205
      %v6377 = vpop.f32.mrf.mxu0
      %v6378 = vadd.f32 0.0, %v6377
      %v6379 = vpop.f32.mrf.mxu0
      %6380 = vdwg.mxu0
      %6381 = vmatpush.bf16.msra.mxu0 0
      %6382 = vmatpush.bf16.msra.mxu0 0
      %6383 = vmatpush.bf16.msra.mxu0 0
      %6384 = vmatpush.bf16.msra.mxu0 %v6340
      %6385 = vmatpush.bf16.msra.mxu0 %v6306
      %6386 = vmatpush.bf16.msra.mxu0 %v6304
      %6387 = vmatpush.bf16.msra.mxu0 %v6302
      %6388 = vmatpush.bf16.msra.mxu0 %v6300
      %6389 = vmatmul.bf16.gmra.mxu0 %v6334
      %v6390 = vpop.f32.mrf.mxu0
      %v6391 = vadd.f32 %v6378, %v6390
      %v6392 = vpop.f32.mrf.mxu0
      %6393 = vdwg.mxu0
      %v6394 = vadd.f32 %v6177, %v6365
      %v6395 = vadd.f32 %v6178, %v6391
      %s6396 = scalar_lea.vmem %s2, 5600
      %v6397 = vld [vmem:[%s6396] sm:$0xff]
      %v6398 = vld [vmem:[%s6396 + $0x8] sm:$0xff]
      %v6399 = vld [vmem:[%s6396 + $0x10] sm:$0xff]
      %v6400 = vld [vmem:[%s6396 + $0x18] sm:$0xff]
      %v6401 = vld [vmem:[%s6396 + $0x20] sm:$0xff]
      %v6402 = vld [vmem:[%s6396 + $0x28] sm:$0xff]
      %v6403 = vld [vmem:[%s6396 + $0x30] sm:$0xff]
      %v6404 = vld [vmem:[%s6396 + $0x38] sm:$0xff]
      %v6405 = vld [vmem:[%s6396 + $0x40] sm:$0xff]
      %v6406 = vld [vmem:[%s6396 + $0x48] sm:$0xff]
      %v6407 = vld [vmem:[%s6396 + $0x50] sm:$0xff]
      %v6408 = vld [vmem:[%s6396 + $0x58] sm:$0xff]
      %v6409 = vld [vmem:[%s6396 + $0x60] sm:$0xff]
      %v6410 = vld [vmem:[%s6396 + $0x68] sm:$0xff]
      %v6411 = vld [vmem:[%s6396 + $0x70] sm:$0xff]
      %v6412 = vld [vmem:[%s6396 + $0x78] sm:$0xff]
      %v6413 = vld [vmem:[%s6396 + $0x80] sm:$0xff]
      %v6414 = vld [vmem:[%s6396 + $0x88] sm:$0xff]
      %v6415 = vld [vmem:[%s6396 + $0x90] sm:$0xff]
      %v6416 = vld [vmem:[%s6396 + $0x98] sm:$0xff]
      %v6417 = vld [vmem:[%s6396 + $0xa0] sm:$0xff]
      %v6418 = vld [vmem:[%s6396 + $0xa8] sm:$0xff]
      %v6419 = vld [vmem:[%s6396 + $0xb0] sm:$0xff]
      %v6420 = vld [vmem:[%s6396 + $0xb8] sm:$0xff]
      %v6421 = vld [vmem:[%s6396 + $0xc0] sm:$0x33]
      %v6422 = vrot.slane %v5551, 2
      %v6423 = vrot.slane %v5552, 2
      %v6450 = vunpack.c.l.b16 %v6397
      %v6451 = vunpack.c.h.b16 %v6397
      %v6452 = vunpack.c.l.b16 %v6398
      %v6453 = vunpack.c.h.b16 %v6398
      %v6454 = vunpack.c.l.b16 %v6399
      %v6455 = vunpack.c.h.b16 %v6399
      %v6456 = vunpack.c.l.b16 %v6400
      %v6457 = vunpack.c.h.b16 %v6400
      %v6458 = vunpack.c.l.b16 %v6401
      %v6459 = vunpack.c.h.b16 %v6401
      %v6460 = vunpack.c.l.b16 %v6402
      %v6461 = vunpack.c.h.b16 %v6402
      %v6462 = vunpack.c.l.b16 %v6403
      %v6463 = vunpack.c.h.b16 %v6403
      %v6464 = vunpack.c.l.b16 %v6404
      %v6465 = vunpack.c.h.b16 %v6404
      %v6466 = vunpack.c.l.b16 %v6405
      %v6467 = vunpack.c.h.b16 %v6405
      %v6468 = vunpack.c.l.b16 %v6406
      %v6469 = vunpack.c.h.b16 %v6406
      %v6470 = vunpack.c.l.b16 %v6407
      %v6471 = vunpack.c.h.b16 %v6407
      %v6472 = vunpack.c.l.b16 %v6408
      %v6473 = vunpack.c.h.b16 %v6408
      %v6474 = vunpack.c.l.b16 %v6409
      %v6475 = vunpack.c.h.b16 %v6409
      %v6476 = vunpack.c.l.b16 %v6410
      %v6477 = vunpack.c.h.b16 %v6410
      %v6478 = vunpack.c.l.b16 %v6411
      %v6479 = vunpack.c.h.b16 %v6411
      %v6480 = vunpack.c.l.b16 %v6412
      %v6481 = vunpack.c.h.b16 %v6412
      %v6482 = vunpack.c.l.b16 %v6413
      %v6483 = vunpack.c.h.b16 %v6413
      %v6484 = vunpack.c.l.b16 %v6414
      %v6485 = vunpack.c.h.b16 %v6414
      %v6486 = vunpack.c.l.b16 %v6415
      %v6487 = vunpack.c.h.b16 %v6415
      %v6488 = vunpack.c.l.b16 %v6416
      %v6489 = vunpack.c.h.b16 %v6416
      %v6490 = vunpack.c.l.b16 %v6417
      %v6491 = vunpack.c.h.b16 %v6417
      %v6492 = vunpack.c.l.b16 %v6418
      %v6493 = vunpack.c.h.b16 %v6418
      %v6494 = vunpack.c.l.b16 %v6419
      %v6495 = vunpack.c.h.b16 %v6419
      %v6496 = vunpack.c.l.b16 %v6420
      %v6497 = vunpack.c.h.b16 %v6420
      %v6498 = vunpack.c.l.b16 %v6421
      %v6499 = vunpack.c.h.b16 %v6421
      %v6500 = vpack.c.b16 %v6452, %v6450
      %v6501 = vpack.c.b16 %v6453, %v6451
      %v6502 = vpack.c.b16 %v6456, %v6454
      %v6503 = vpack.c.b16 %v6457, %v6455
      %v6504 = vpack.c.b16 %v6460, %v6458
      %v6505 = vpack.c.b16 %v6461, %v6459
      %v6506 = vpack.c.b16 %v6464, %v6462
      %v6507 = vpack.c.b16 %v6465, %v6463
      %v6508 = vpack.c.b16 %v6468, %v6466
      %v6509 = vpack.c.b16 %v6469, %v6467
      %v6510 = vpack.c.b16 %v6472, %v6470
      %v6511 = vpack.c.b16 %v6473, %v6471
      %v6512 = vpack.c.b16 %v6476, %v6474
      %v6513 = vpack.c.b16 %v6477, %v6475
      %v6514 = vpack.c.b16 %v6480, %v6478
      %v6515 = vpack.c.b16 %v6481, %v6479
      %v6516 = vpack.c.b16 %v6484, %v6482
      %v6517 = vpack.c.b16 %v6485, %v6483
      %v6518 = vpack.c.b16 %v6488, %v6486
      %v6519 = vpack.c.b16 %v6489, %v6487
      %v6520 = vpack.c.b16 %v6492, %v6490
      %v6521 = vpack.c.b16 %v6493, %v6491
      %v6522 = vpack.c.b16 %v6496, %v6494
      %v6523 = vpack.c.b16 %v6497, %v6495
      %v6524 = vpack.c.b16 %v6498, %v6498
      %v6525 = vpack.c.b16 %v6499, %v6499
      %v6551 = vsel %vm487, %v6423, 0
      %v6554 = vsel %vm491, %v6524, 0
      %v6557 = vsel %vm491, %v6525, 0
      %6559 = vmatpush.bf16.msra.mxu0 %v6514
      %6560 = vmatpush.bf16.msra.mxu0 %v6512
      %6561 = vmatpush.bf16.msra.mxu0 %v6510
      %6562 = vmatpush.bf16.msra.mxu0 %v6508
      %6563 = vmatpush.bf16.msra.mxu0 %v6506
      %6564 = vmatpush.bf16.msra.mxu0 %v6504
      %6565 = vmatpush.bf16.msra.mxu0 %v6502
      %6566 = vmatpush.bf16.msra.mxu0 %v6500
      %6567 = vmatmul.bf16.gmra.mxu0 %v6422
      %v6568 = vpop.f32.mrf.mxu0
      %v6569 = vadd.f32 0.0, %v6568
      %v6570 = vpop.f32.mrf.mxu0
      %6571 = vdwg.mxu0
      %6572 = vmatpush.bf16.msra.mxu0 0
      %6573 = vmatpush.bf16.msra.mxu0 0
      %6574 = vmatpush.bf16.msra.mxu0 0
      %6575 = vmatpush.bf16.msra.mxu0 %v6554
      %6576 = vmatpush.bf16.msra.mxu0 %v6522
      %6577 = vmatpush.bf16.msra.mxu0 %v6520
      %6578 = vmatpush.bf16.msra.mxu0 %v6518
      %6579 = vmatpush.bf16.msra.mxu0 %v6516
      %6580 = vmatmul.bf16.gmra.mxu0 %v6551
      %v6581 = vpop.f32.mrf.mxu0
      %v6582 = vadd.f32 %v6569, %v6581
      %v6583 = vpop.f32.mrf.mxu0
      %6584 = vdwg.mxu0
      %6585 = vmatpush.bf16.msra.mxu0 %v6515
      %6586 = vmatpush.bf16.msra.mxu0 %v6513
      %6587 = vmatpush.bf16.msra.mxu0 %v6511
      %6588 = vmatpush.bf16.msra.mxu0 %v6509
      %6589 = vmatpush.bf16.msra.mxu0 %v6507
      %6590 = vmatpush.bf16.msra.mxu0 %v6505
      %6591 = vmatpush.bf16.msra.mxu0 %v6503
      %6592 = vmatpush.bf16.msra.mxu0 %v6501
      %6593 = vmatmul.bf16.gmra.mxu0 %v6422
      %v6594 = vpop.f32.mrf.mxu0
      %v6595 = vadd.f32 0.0, %v6594
      %v6596 = vpop.f32.mrf.mxu0
      %6597 = vdwg.mxu0
      %6598 = vmatpush.bf16.msra.mxu0 0
      %6599 = vmatpush.bf16.msra.mxu0 0
      %6600 = vmatpush.bf16.msra.mxu0 0
      %6601 = vmatpush.bf16.msra.mxu0 %v6557
      %6602 = vmatpush.bf16.msra.mxu0 %v6523
      %6603 = vmatpush.bf16.msra.mxu0 %v6521
      %6604 = vmatpush.bf16.msra.mxu0 %v6519
      %6605 = vmatpush.bf16.msra.mxu0 %v6517
      %6606 = vmatmul.bf16.gmra.mxu0 %v6551
      %v6607 = vpop.f32.mrf.mxu0
      %v6608 = vadd.f32 %v6595, %v6607
      %v6609 = vpop.f32.mrf.mxu0
      %6610 = vdwg.mxu0
      %v6611 = vadd.f32 %v6394, %v6582
      %v6612 = vadd.f32 %v6395, %v6608
      %s6613 = scalar_lea.vmem %s2, 5800
      %v6614 = vld [vmem:[%s6613] sm:$0xff]
      %v6615 = vld [vmem:[%s6613 + $0x8] sm:$0xff]
      %v6616 = vld [vmem:[%s6613 + $0x10] sm:$0xff]
      %v6617 = vld [vmem:[%s6613 + $0x18] sm:$0xff]
      %v6618 = vld [vmem:[%s6613 + $0x20] sm:$0xff]
      %v6619 = vld [vmem:[%s6613 + $0x28] sm:$0xff]
      %v6620 = vld [vmem:[%s6613 + $0x30] sm:$0xff]
      %v6621 = vld [vmem:[%s6613 + $0x38] sm:$0xff]
      %v6622 = vld [vmem:[%s6613 + $0x40] sm:$0xff]
      %v6623 = vld [vmem:[%s6613 + $0x48] sm:$0xff]
      %v6624 = vld [vmem:[%s6613 + $0x50] sm:$0xff]
      %v6625 = vld [vmem:[%s6613 + $0x58] sm:$0xff]
      %v6626 = vld [vmem:[%s6613 + $0x60] sm:$0xff]
      %v6627 = vld [vmem:[%s6613 + $0x68] sm:$0xff]
      %v6628 = vld [vmem:[%s6613 + $0x70] sm:$0xff]
      %v6629 = vld [vmem:[%s6613 + $0x78] sm:$0xff]
      %v6630 = vld [vmem:[%s6613 + $0x80] sm:$0xff]
      %v6631 = vld [vmem:[%s6613 + $0x88] sm:$0xff]
      %v6632 = vld [vmem:[%s6613 + $0x90] sm:$0xff]
      %v6633 = vld [vmem:[%s6613 + $0x98] sm:$0xff]
      %v6634 = vld [vmem:[%s6613 + $0xa0] sm:$0xff]
      %v6635 = vld [vmem:[%s6613 + $0xa8] sm:$0xff]
      %v6636 = vld [vmem:[%s6613 + $0xb0] sm:$0xff]
      %v6637 = vld [vmem:[%s6613 + $0xb8] sm:$0xff]
      %v6638 = vld [vmem:[%s6613 + $0xc0] sm:$0x33]
      %v6639 = vrot.slane %v5769, 2
      %v6640 = vrot.slane %v5771, 2
      %v6667 = vunpack.c.l.b16 %v6614
      %v6668 = vunpack.c.h.b16 %v6614
      %v6669 = vunpack.c.l.b16 %v6615
      %v6670 = vunpack.c.h.b16 %v6615
      %v6671 = vunpack.c.l.b16 %v6616
      %v6672 = vunpack.c.h.b16 %v6616
      %v6673 = vunpack.c.l.b16 %v6617
      %v6674 = vunpack.c.h.b16 %v6617
      %v6675 = vunpack.c.l.b16 %v6618
      %v6676 = vunpack.c.h.b16 %v6618
      %v6677 = vunpack.c.l.b16 %v6619
      %v6678 = vunpack.c.h.b16 %v6619
      %v6679 = vunpack.c.l.b16 %v6620
      %v6680 = vunpack.c.h.b16 %v6620
      %v6681 = vunpack.c.l.b16 %v6621
      %v6682 = vunpack.c.h.b16 %v6621
      %v6683 = vunpack.c.l.b16 %v6622
      %v6684 = vunpack.c.h.b16 %v6622
      %v6685 = vunpack.c.l.b16 %v6623
      %v6686 = vunpack.c.h.b16 %v6623
      %v6687 = vunpack.c.l.b16 %v6624
      %v6688 = vunpack.c.h.b16 %v6624
      %v6689 = vunpack.c.l.b16 %v6625
      %v6690 = vunpack.c.h.b16 %v6625
      %v6691 = vunpack.c.l.b16 %v6626
      %v6692 = vunpack.c.h.b16 %v6626
      %v6693 = vunpack.c.l.b16 %v6627
      %v6694 = vunpack.c.h.b16 %v6627
      %v6695 = vunpack.c.l.b16 %v6628
      %v6696 = vunpack.c.h.b16 %v6628
      %v6697 = vunpack.c.l.b16 %v6629
      %v6698 = vunpack.c.h.b16 %v6629
      %v6699 = vunpack.c.l.b16 %v6630
      %v6700 = vunpack.c.h.b16 %v6630
      %v6701 = vunpack.c.l.b16 %v6631
      %v6702 = vunpack.c.h.b16 %v6631
      %v6703 = vunpack.c.l.b16 %v6632
      %v6704 = vunpack.c.h.b16 %v6632
      %v6705 = vunpack.c.l.b16 %v6633
      %v6706 = vunpack.c.h.b16 %v6633
      %v6707 = vunpack.c.l.b16 %v6634
      %v6708 = vunpack.c.h.b16 %v6634
      %v6709 = vunpack.c.l.b16 %v6635
      %v6710 = vunpack.c.h.b16 %v6635
      %v6711 = vunpack.c.l.b16 %v6636
      %v6712 = vunpack.c.h.b16 %v6636
      %v6713 = vunpack.c.l.b16 %v6637
      %v6714 = vunpack.c.h.b16 %v6637
      %v6715 = vunpack.c.l.b16 %v6638
      %v6716 = vunpack.c.h.b16 %v6638
      %v6717 = vpack.c.b16 %v6669, %v6667
      %v6718 = vpack.c.b16 %v6670, %v6668
      %v6719 = vpack.c.b16 %v6673, %v6671
      %v6720 = vpack.c.b16 %v6674, %v6672
      %v6721 = vpack.c.b16 %v6677, %v6675
      %v6722 = vpack.c.b16 %v6678, %v6676
      %v6723 = vpack.c.b16 %v6681, %v6679
      %v6724 = vpack.c.b16 %v6682, %v6680
      %v6725 = vpack.c.b16 %v6685, %v6683
      %v6726 = vpack.c.b16 %v6686, %v6684
      %v6727 = vpack.c.b16 %v6689, %v6687
      %v6728 = vpack.c.b16 %v6690, %v6688
      %v6729 = vpack.c.b16 %v6693, %v6691
      %v6730 = vpack.c.b16 %v6694, %v6692
      %v6731 = vpack.c.b16 %v6697, %v6695
      %v6732 = vpack.c.b16 %v6698, %v6696
      %v6733 = vpack.c.b16 %v6701, %v6699
      %v6734 = vpack.c.b16 %v6702, %v6700
      %v6735 = vpack.c.b16 %v6705, %v6703
      %v6736 = vpack.c.b16 %v6706, %v6704
      %v6737 = vpack.c.b16 %v6709, %v6707
      %v6738 = vpack.c.b16 %v6710, %v6708
      %v6739 = vpack.c.b16 %v6713, %v6711
      %v6740 = vpack.c.b16 %v6714, %v6712
      %v6741 = vpack.c.b16 %v6715, %v6715
      %v6742 = vpack.c.b16 %v6716, %v6716
      %v6768 = vsel %vm487, %v6640, 0
      %v6771 = vsel %vm491, %v6741, 0
      %v6774 = vsel %vm491, %v6742, 0
      %6776 = vmatpush.bf16.msra.mxu0 %v6731
      %6777 = vmatpush.bf16.msra.mxu0 %v6729
      %6778 = vmatpush.bf16.msra.mxu0 %v6727
      %6779 = vmatpush.bf16.msra.mxu0 %v6725
      %6780 = vmatpush.bf16.msra.mxu0 %v6723
      %6781 = vmatpush.bf16.msra.mxu0 %v6721
      %6782 = vmatpush.bf16.msra.mxu0 %v6719
      %6783 = vmatpush.bf16.msra.mxu0 %v6717
      %6784 = vmatmul.bf16.gmra.mxu0 %v6639
      %v6785 = vpop.f32.mrf.mxu0
      %v6786 = vadd.f32 0.0, %v6785
      %v6787 = vpop.f32.mrf.mxu0
      %6788 = vdwg.mxu0
      %6789 = vmatpush.bf16.msra.mxu0 0
      %6790 = vmatpush.bf16.msra.mxu0 0
      %6791 = vmatpush.bf16.msra.mxu0 0
      %6792 = vmatpush.bf16.msra.mxu0 %v6771
      %6793 = vmatpush.bf16.msra.mxu0 %v6739
      %6794 = vmatpush.bf16.msra.mxu0 %v6737
      %6795 = vmatpush.bf16.msra.mxu0 %v6735
      %6796 = vmatpush.bf16.msra.mxu0 %v6733
      %6797 = vmatmul.bf16.gmra.mxu0 %v6768
      %v6798 = vpop.f32.mrf.mxu0
      %v6799 = vadd.f32 %v6786, %v6798
      %v6800 = vpop.f32.mrf.mxu0
      %6801 = vdwg.mxu0
      %6802 = vmatpush.bf16.msra.mxu0 %v6732
      %6803 = vmatpush.bf16.msra.mxu0 %v6730
      %6804 = vmatpush.bf16.msra.mxu0 %v6728
      %6805 = vmatpush.bf16.msra.mxu0 %v6726
      %6806 = vmatpush.bf16.msra.mxu0 %v6724
      %6807 = vmatpush.bf16.msra.mxu0 %v6722
      %6808 = vmatpush.bf16.msra.mxu0 %v6720
      %6809 = vmatpush.bf16.msra.mxu0 %v6718
      %6810 = vmatmul.bf16.gmra.mxu0 %v6639
      %v6811 = vpop.f32.mrf.mxu0
      %v6812 = vadd.f32 0.0, %v6811
      %v6813 = vpop.f32.mrf.mxu0
      %6814 = vdwg.mxu0
      %6815 = vmatpush.bf16.msra.mxu0 0
      %6816 = vmatpush.bf16.msra.mxu0 0
      %6817 = vmatpush.bf16.msra.mxu0 0
      %6818 = vmatpush.bf16.msra.mxu0 %v6774
      %6819 = vmatpush.bf16.msra.mxu0 %v6740
      %6820 = vmatpush.bf16.msra.mxu0 %v6738
      %6821 = vmatpush.bf16.msra.mxu0 %v6736
      %6822 = vmatpush.bf16.msra.mxu0 %v6734
      %6823 = vmatmul.bf16.gmra.mxu0 %v6768
      %v6824 = vpop.f32.mrf.mxu0
      %v6825 = vadd.f32 %v6812, %v6824
      %v6826 = vpop.f32.mrf.mxu0
      %6827 = vdwg.mxu0
      %v6828 = vadd.f32 %v6611, %v6799
      %v6829 = vadd.f32 %v6612, %v6825
      %s6830 = scalar_lea.vmem %s2, 6000
      %v6831 = vld [vmem:[%s6830] sm:$0xff]
      %v6832 = vld [vmem:[%s6830 + $0x8] sm:$0xff]
      %v6833 = vld [vmem:[%s6830 + $0x10] sm:$0xff]
      %v6834 = vld [vmem:[%s6830 + $0x18] sm:$0xff]
      %v6835 = vld [vmem:[%s6830 + $0x20] sm:$0xff]
      %v6836 = vld [vmem:[%s6830 + $0x28] sm:$0xff]
      %v6837 = vld [vmem:[%s6830 + $0x30] sm:$0xff]
      %v6838 = vld [vmem:[%s6830 + $0x38] sm:$0xff]
      %v6839 = vld [vmem:[%s6830 + $0x40] sm:$0xff]
      %v6840 = vld [vmem:[%s6830 + $0x48] sm:$0xff]
      %v6841 = vld [vmem:[%s6830 + $0x50] sm:$0xff]
      %v6842 = vld [vmem:[%s6830 + $0x58] sm:$0xff]
      %v6843 = vld [vmem:[%s6830 + $0x60] sm:$0xff]
      %v6844 = vld [vmem:[%s6830 + $0x68] sm:$0xff]
      %v6845 = vld [vmem:[%s6830 + $0x70] sm:$0xff]
      %v6846 = vld [vmem:[%s6830 + $0x78] sm:$0xff]
      %v6847 = vld [vmem:[%s6830 + $0x80] sm:$0xff]
      %v6848 = vld [vmem:[%s6830 + $0x88] sm:$0xff]
      %v6849 = vld [vmem:[%s6830 + $0x90] sm:$0xff]
      %v6850 = vld [vmem:[%s6830 + $0x98] sm:$0xff]
      %v6851 = vld [vmem:[%s6830 + $0xa0] sm:$0xff]
      %v6852 = vld [vmem:[%s6830 + $0xa8] sm:$0xff]
      %v6853 = vld [vmem:[%s6830 + $0xb0] sm:$0xff]
      %v6854 = vld [vmem:[%s6830 + $0xb8] sm:$0xff]
      %v6855 = vld [vmem:[%s6830 + $0xc0] sm:$0x33]
      %v6856 = vrot.slane %v5551, 3
      %v6857 = vrot.slane %v5552, 3
      %v6884 = vunpack.c.l.b16 %v6831
      %v6885 = vunpack.c.h.b16 %v6831
      %v6886 = vunpack.c.l.b16 %v6832
      %v6887 = vunpack.c.h.b16 %v6832
      %v6888 = vunpack.c.l.b16 %v6833
      %v6889 = vunpack.c.h.b16 %v6833
      %v6890 = vunpack.c.l.b16 %v6834
      %v6891 = vunpack.c.h.b16 %v6834
      %v6892 = vunpack.c.l.b16 %v6835
      %v6893 = vunpack.c.h.b16 %v6835
      %v6894 = vunpack.c.l.b16 %v6836
      %v6895 = vunpack.c.h.b16 %v6836
      %v6896 = vunpack.c.l.b16 %v6837
      %v6897 = vunpack.c.h.b16 %v6837
      %v6898 = vunpack.c.l.b16 %v6838
      %v6899 = vunpack.c.h.b16 %v6838
      %v6900 = vunpack.c.l.b16 %v6839
      %v6901 = vunpack.c.h.b16 %v6839
      %v6902 = vunpack.c.l.b16 %v6840
      %v6903 = vunpack.c.h.b16 %v6840
      %v6904 = vunpack.c.l.b16 %v6841
      %v6905 = vunpack.c.h.b16 %v6841
      %v6906 = vunpack.c.l.b16 %v6842
      %v6907 = vunpack.c.h.b16 %v6842
      %v6908 = vunpack.c.l.b16 %v6843
      %v6909 = vunpack.c.h.b16 %v6843
      %v6910 = vunpack.c.l.b16 %v6844
      %v6911 = vunpack.c.h.b16 %v6844
      %v6912 = vunpack.c.l.b16 %v6845
      %v6913 = vunpack.c.h.b16 %v6845
      %v6914 = vunpack.c.l.b16 %v6846
      %v6915 = vunpack.c.h.b16 %v6846
      %v6916 = vunpack.c.l.b16 %v6847
      %v6917 = vunpack.c.h.b16 %v6847
      %v6918 = vunpack.c.l.b16 %v6848
      %v6919 = vunpack.c.h.b16 %v6848
      %v6920 = vunpack.c.l.b16 %v6849
      %v6921 = vunpack.c.h.b16 %v6849
      %v6922 = vunpack.c.l.b16 %v6850
      %v6923 = vunpack.c.h.b16 %v6850
      %v6924 = vunpack.c.l.b16 %v6851
      %v6925 = vunpack.c.h.b16 %v6851
      %v6926 = vunpack.c.l.b16 %v6852
      %v6927 = vunpack.c.h.b16 %v6852
      %v6928 = vunpack.c.l.b16 %v6853
      %v6929 = vunpack.c.h.b16 %v6853
      %v6930 = vunpack.c.l.b16 %v6854
      %v6931 = vunpack.c.h.b16 %v6854
      %v6932 = vunpack.c.l.b16 %v6855
      %v6933 = vunpack.c.h.b16 %v6855
      %v6934 = vpack.c.b16 %v6886, %v6884
      %v6935 = vpack.c.b16 %v6887, %v6885
      %v6936 = vpack.c.b16 %v6890, %v6888
      %v6937 = vpack.c.b16 %v6891, %v6889
      %v6938 = vpack.c.b16 %v6894, %v6892
      %v6939 = vpack.c.b16 %v6895, %v6893
      %v6940 = vpack.c.b16 %v6898, %v6896
      %v6941 = vpack.c.b16 %v6899, %v6897
      %v6942 = vpack.c.b16 %v6902, %v6900
      %v6943 = vpack.c.b16 %v6903, %v6901
      %v6944 = vpack.c.b16 %v6906, %v6904
      %v6945 = vpack.c.b16 %v6907, %v6905
      %v6946 = vpack.c.b16 %v6910, %v6908
      %v6947 = vpack.c.b16 %v6911, %v6909
      %v6948 = vpack.c.b16 %v6914, %v6912
      %v6949 = vpack.c.b16 %v6915, %v6913
      %v6950 = vpack.c.b16 %v6918, %v6916
      %v6951 = vpack.c.b16 %v6919, %v6917
      %v6952 = vpack.c.b16 %v6922, %v6920
      %v6953 = vpack.c.b16 %v6923, %v6921
      %v6954 = vpack.c.b16 %v6926, %v6924
      %v6955 = vpack.c.b16 %v6927, %v6925
      %v6956 = vpack.c.b16 %v6930, %v6928
      %v6957 = vpack.c.b16 %v6931, %v6929
      %v6958 = vpack.c.b16 %v6932, %v6932
      %v6959 = vpack.c.b16 %v6933, %v6933
      %v6985 = vsel %vm487, %v6857, 0
      %v6988 = vsel %vm491, %v6958, 0
      %v6991 = vsel %vm491, %v6959, 0
      %6993 = vmatpush.bf16.msra.mxu0 %v6948
      %6994 = vmatpush.bf16.msra.mxu0 %v6946
      %6995 = vmatpush.bf16.msra.mxu0 %v6944
      %6996 = vmatpush.bf16.msra.mxu0 %v6942
      %6997 = vmatpush.bf16.msra.mxu0 %v6940
      %6998 = vmatpush.bf16.msra.mxu0 %v6938
      %6999 = vmatpush.bf16.msra.mxu0 %v6936
      %7000 = vmatpush.bf16.msra.mxu0 %v6934
      %7001 = vmatmul.bf16.gmra.mxu0 %v6856
      %v7002 = vpop.f32.mrf.mxu0
      %v7003 = vadd.f32 0.0, %v7002
      %v7004 = vpop.f32.mrf.mxu0
      %7005 = vdwg.mxu0
      %7006 = vmatpush.bf16.msra.mxu0 0
      %7007 = vmatpush.bf16.msra.mxu0 0
      %7008 = vmatpush.bf16.msra.mxu0 0
      %7009 = vmatpush.bf16.msra.mxu0 %v6988
      %7010 = vmatpush.bf16.msra.mxu0 %v6956
      %7011 = vmatpush.bf16.msra.mxu0 %v6954
      %7012 = vmatpush.bf16.msra.mxu0 %v6952
      %7013 = vmatpush.bf16.msra.mxu0 %v6950
      %7014 = vmatmul.bf16.gmra.mxu0 %v6985
      %v7015 = vpop.f32.mrf.mxu0
      %v7016 = vadd.f32 %v7003, %v7015
      %v7017 = vpop.f32.mrf.mxu0
      %7018 = vdwg.mxu0
      %7019 = vmatpush.bf16.msra.mxu0 %v6949
      %7020 = vmatpush.bf16.msra.mxu0 %v6947
      %7021 = vmatpush.bf16.msra.mxu0 %v6945
      %7022 = vmatpush.bf16.msra.mxu0 %v6943
      %7023 = vmatpush.bf16.msra.mxu0 %v6941
      %7024 = vmatpush.bf16.msra.mxu0 %v6939
      %7025 = vmatpush.bf16.msra.mxu0 %v6937
      %7026 = vmatpush.bf16.msra.mxu0 %v6935
      %7027 = vmatmul.bf16.gmra.mxu0 %v6856
      %v7028 = vpop.f32.mrf.mxu0
      %v7029 = vadd.f32 0.0, %v7028
      %v7030 = vpop.f32.mrf.mxu0
      %7031 = vdwg.mxu0
      %7032 = vmatpush.bf16.msra.mxu0 0
      %7033 = vmatpush.bf16.msra.mxu0 0
      %7034 = vmatpush.bf16.msra.mxu0 0
      %7035 = vmatpush.bf16.msra.mxu0 %v6991
      %7036 = vmatpush.bf16.msra.mxu0 %v6957
      %7037 = vmatpush.bf16.msra.mxu0 %v6955
      %7038 = vmatpush.bf16.msra.mxu0 %v6953
      %7039 = vmatpush.bf16.msra.mxu0 %v6951
      %7040 = vmatmul.bf16.gmra.mxu0 %v6985
      %v7041 = vpop.f32.mrf.mxu0
      %v7042 = vadd.f32 %v7029, %v7041
      %v7043 = vpop.f32.mrf.mxu0
      %7044 = vdwg.mxu0
      %v7045 = vadd.f32 %v6828, %v7016
      %v7046 = vadd.f32 %v6829, %v7042
      %s7047 = scalar_lea.vmem %s2, 6200
      %v7048 = vld [vmem:[%s7047] sm:$0xff]
      %v7049 = vld [vmem:[%s7047 + $0x8] sm:$0xff]
      %v7050 = vld [vmem:[%s7047 + $0x10] sm:$0xff]
      %v7051 = vld [vmem:[%s7047 + $0x18] sm:$0xff]
      %v7052 = vld [vmem:[%s7047 + $0x20] sm:$0xff]
      %v7053 = vld [vmem:[%s7047 + $0x28] sm:$0xff]
      %v7054 = vld [vmem:[%s7047 + $0x30] sm:$0xff]
      %v7055 = vld [vmem:[%s7047 + $0x38] sm:$0xff]
      %v7056 = vld [vmem:[%s7047 + $0x40] sm:$0xff]
      %v7057 = vld [vmem:[%s7047 + $0x48] sm:$0xff]
      %v7058 = vld [vmem:[%s7047 + $0x50] sm:$0xff]
      %v7059 = vld [vmem:[%s7047 + $0x58] sm:$0xff]
      %v7060 = vld [vmem:[%s7047 + $0x60] sm:$0xff]
      %v7061 = vld [vmem:[%s7047 + $0x68] sm:$0xff]
      %v7062 = vld [vmem:[%s7047 + $0x70] sm:$0xff]
      %v7063 = vld [vmem:[%s7047 + $0x78] sm:$0xff]
      %v7064 = vld [vmem:[%s7047 + $0x80] sm:$0xff]
      %v7065 = vld [vmem:[%s7047 + $0x88] sm:$0xff]
      %v7066 = vld [vmem:[%s7047 + $0x90] sm:$0xff]
      %v7067 = vld [vmem:[%s7047 + $0x98] sm:$0xff]
      %v7068 = vld [vmem:[%s7047 + $0xa0] sm:$0xff]
      %v7069 = vld [vmem:[%s7047 + $0xa8] sm:$0xff]
      %v7070 = vld [vmem:[%s7047 + $0xb0] sm:$0xff]
      %v7071 = vld [vmem:[%s7047 + $0xb8] sm:$0xff]
      %v7072 = vld [vmem:[%s7047 + $0xc0] sm:$0x33]
      %v7073 = vrot.slane %v5769, 3
      %v7074 = vrot.slane %v5771, 3
      %v7101 = vunpack.c.l.b16 %v7048
      %v7102 = vunpack.c.h.b16 %v7048
      %v7103 = vunpack.c.l.b16 %v7049
      %v7104 = vunpack.c.h.b16 %v7049
      %v7105 = vunpack.c.l.b16 %v7050
      %v7106 = vunpack.c.h.b16 %v7050
      %v7107 = vunpack.c.l.b16 %v7051
      %v7108 = vunpack.c.h.b16 %v7051
      %v7109 = vunpack.c.l.b16 %v7052
      %v7110 = vunpack.c.h.b16 %v7052
      %v7111 = vunpack.c.l.b16 %v7053
      %v7112 = vunpack.c.h.b16 %v7053
      %v7113 = vunpack.c.l.b16 %v7054
      %v7114 = vunpack.c.h.b16 %v7054
      %v7115 = vunpack.c.l.b16 %v7055
      %v7116 = vunpack.c.h.b16 %v7055
      %v7117 = vunpack.c.l.b16 %v7056
      %v7118 = vunpack.c.h.b16 %v7056
      %v7119 = vunpack.c.l.b16 %v7057
      %v7120 = vunpack.c.h.b16 %v7057
      %v7121 = vunpack.c.l.b16 %v7058
      %v7122 = vunpack.c.h.b16 %v7058
      %v7123 = vunpack.c.l.b16 %v7059
      %v7124 = vunpack.c.h.b16 %v7059
      %v7125 = vunpack.c.l.b16 %v7060
      %v7126 = vunpack.c.h.b16 %v7060
      %v7127 = vunpack.c.l.b16 %v7061
      %v7128 = vunpack.c.h.b16 %v7061
      %v7129 = vunpack.c.l.b16 %v7062
      %v7130 = vunpack.c.h.b16 %v7062
      %v7131 = vunpack.c.l.b16 %v7063
      %v7132 = vunpack.c.h.b16 %v7063
      %v7133 = vunpack.c.l.b16 %v7064
      %v7134 = vunpack.c.h.b16 %v7064
      %v7135 = vunpack.c.l.b16 %v7065
      %v7136 = vunpack.c.h.b16 %v7065
      %v7137 = vunpack.c.l.b16 %v7066
      %v7138 = vunpack.c.h.b16 %v7066
      %v7139 = vunpack.c.l.b16 %v7067
      %v7140 = vunpack.c.h.b16 %v7067
      %v7141 = vunpack.c.l.b16 %v7068
      %v7142 = vunpack.c.h.b16 %v7068
      %v7143 = vunpack.c.l.b16 %v7069
      %v7144 = vunpack.c.h.b16 %v7069
      %v7145 = vunpack.c.l.b16 %v7070
      %v7146 = vunpack.c.h.b16 %v7070
      %v7147 = vunpack.c.l.b16 %v7071
      %v7148 = vunpack.c.h.b16 %v7071
      %v7149 = vunpack.c.l.b16 %v7072
      %v7150 = vunpack.c.h.b16 %v7072
      %v7151 = vpack.c.b16 %v7103, %v7101
      %v7152 = vpack.c.b16 %v7104, %v7102
      %v7153 = vpack.c.b16 %v7107, %v7105
      %v7154 = vpack.c.b16 %v7108, %v7106
      %v7155 = vpack.c.b16 %v7111, %v7109
      %v7156 = vpack.c.b16 %v7112, %v7110
      %v7157 = vpack.c.b16 %v7115, %v7113
      %v7158 = vpack.c.b16 %v7116, %v7114
      %v7159 = vpack.c.b16 %v7119, %v7117
      %v7160 = vpack.c.b16 %v7120, %v7118
      %v7161 = vpack.c.b16 %v7123, %v7121
      %v7162 = vpack.c.b16 %v7124, %v7122
      %v7163 = vpack.c.b16 %v7127, %v7125
      %v7164 = vpack.c.b16 %v7128, %v7126
      %v7165 = vpack.c.b16 %v7131, %v7129
      %v7166 = vpack.c.b16 %v7132, %v7130
      %v7167 = vpack.c.b16 %v7135, %v7133
      %v7168 = vpack.c.b16 %v7136, %v7134
      %v7169 = vpack.c.b16 %v7139, %v7137
      %v7170 = vpack.c.b16 %v7140, %v7138
      %v7171 = vpack.c.b16 %v7143, %v7141
      %v7172 = vpack.c.b16 %v7144, %v7142
      %v7173 = vpack.c.b16 %v7147, %v7145
      %v7174 = vpack.c.b16 %v7148, %v7146
      %v7175 = vpack.c.b16 %v7149, %v7149
      %v7176 = vpack.c.b16 %v7150, %v7150
      %v7202 = vsel %vm487, %v7074, 0
      %v7205 = vsel %vm491, %v7175, 0
      %v7208 = vsel %vm491, %v7176, 0
      %7210 = vmatpush.bf16.msra.mxu0 %v7165
      %7211 = vmatpush.bf16.msra.mxu0 %v7163
      %7212 = vmatpush.bf16.msra.mxu0 %v7161
      %7213 = vmatpush.bf16.msra.mxu0 %v7159
      %7214 = vmatpush.bf16.msra.mxu0 %v7157
      %7215 = vmatpush.bf16.msra.mxu0 %v7155
      %7216 = vmatpush.bf16.msra.mxu0 %v7153
      %7217 = vmatpush.bf16.msra.mxu0 %v7151
      %7218 = vmatmul.bf16.gmra.mxu0 %v7073
      %v7219 = vpop.f32.mrf.mxu0
      %v7220 = vadd.f32 0.0, %v7219
      %v7221 = vpop.f32.mrf.mxu0
      %7222 = vdwg.mxu0
      %7223 = vmatpush.bf16.msra.mxu0 0
      %7224 = vmatpush.bf16.msra.mxu0 0
      %7225 = vmatpush.bf16.msra.mxu0 0
      %7226 = vmatpush.bf16.msra.mxu0 %v7205
      %7227 = vmatpush.bf16.msra.mxu0 %v7173
      %7228 = vmatpush.bf16.msra.mxu0 %v7171
      %7229 = vmatpush.bf16.msra.mxu0 %v7169
      %7230 = vmatpush.bf16.msra.mxu0 %v7167
      %7231 = vmatmul.bf16.gmra.mxu0 %v7202
      %v7232 = vpop.f32.mrf.mxu0
      %v7233 = vadd.f32 %v7220, %v7232
      %v7234 = vpop.f32.mrf.mxu0
      %7235 = vdwg.mxu0
      %7236 = vmatpush.bf16.msra.mxu0 %v7166
      %7237 = vmatpush.bf16.msra.mxu0 %v7164
      %7238 = vmatpush.bf16.msra.mxu0 %v7162
      %7239 = vmatpush.bf16.msra.mxu0 %v7160
      %7240 = vmatpush.bf16.msra.mxu0 %v7158
      %7241 = vmatpush.bf16.msra.mxu0 %v7156
      %7242 = vmatpush.bf16.msra.mxu0 %v7154
      %7243 = vmatpush.bf16.msra.mxu0 %v7152
      %7244 = vmatmul.bf16.gmra.mxu0 %v7073
      %v7245 = vpop.f32.mrf.mxu0
      %v7246 = vadd.f32 0.0, %v7245
      %v7247 = vpop.f32.mrf.mxu0
      %7248 = vdwg.mxu0
      %7249 = vmatpush.bf16.msra.mxu0 0
      %7250 = vmatpush.bf16.msra.mxu0 0
      %7251 = vmatpush.bf16.msra.mxu0 0
      %7252 = vmatpush.bf16.msra.mxu0 %v7208
      %7253 = vmatpush.bf16.msra.mxu0 %v7174
      %7254 = vmatpush.bf16.msra.mxu0 %v7172
      %7255 = vmatpush.bf16.msra.mxu0 %v7170
      %7256 = vmatpush.bf16.msra.mxu0 %v7168
      %7257 = vmatmul.bf16.gmra.mxu0 %v7202
      %v7258 = vpop.f32.mrf.mxu0
      %v7259 = vadd.f32 %v7246, %v7258
      %v7260 = vpop.f32.mrf.mxu0
      %7261 = vdwg.mxu0
      %v7262 = vadd.f32 %v7045, %v7233
      %v7263 = vadd.f32 %v7046, %v7259
      %v7264 = vmax.f32 %v7262, 0.0
      %v7265 = vmax.f32 %v7263, 0.0
      %v7266 = vld [vmem:[%s3] sm:$0x3]
      %v7268 = vperm.slane %v7266, 0
      %v7269 = vperm.slane %v7266, 1
      %v7272 = vmul.f32 %v7264, %v7268
      %v7273 = vmul.f32 %v7265, %v7269
      %vm7274 = vcmask 1040384
      %v7275 = vsel %vm7274, %v7272, 0.0
      %v7276 = vsel %vm7274, %v7273, 0.0
      %v7277 = vadd.f32 %v7275, %v7276
      %7278 = vadd.xlane.f32.xlu0 %v7277
      %v7279 = vpop.xlane.xlu0 %7278
      %v7280 = vtanh.pop %v7279
      %vm7281 = vcmask 0
      %7282 = vst.msk [vmem:[%s193] sm:$0x1] %vm7281, %v7280
      %p7283 = scmp.lt.s32.totalorder %s15, 1
      %s7284 = scalar_select %p7283, %s15, 1
      %s7285 = scalar_lea.vmem %s4, %s7284
      // Predicated region
      $region37: #{dense_value_head.1} parent=35 // pred_check
        %p7286 = pneg %p122
      $region38: #{dense_value_head.1} parent=35 // pred_check_branch
        %7288 = sbr.rel (%p7286) target = $region40
      $region39: #{dense_value_head.1} parent=35 // pred_region
        _
      $region40: #{dense_value_head.1} parent=35 // pred_fallthru
        _
    $region36: #{dense_value_head.1} parent=5 // pred_fallthru
      _
    %p7289 = scmp.le.s32.totalorder 2, %s10
    // Predicated region
    $region41: #{dense_value_head.1} parent=5 // pred_check
      %p7290 = pneg %p7289
    $region42: #{dense_value_head.1} parent=5 // pred_check_branch
      %7292 = sbr.rel (%p7290) target = $region44
    $region43: #{dense_value_head.1} parent=5 // pred_region
      %s7293 = ssub.s32 %s10, 2
      // Predicated region
      $region45: #{dense_value_head.1} parent=43 // pred_check
        %p7294 = pneg %p128
      $region46: #{dense_value_head.1} parent=43 // pred_check_branch
        %7296 = sbr.rel (%p7294) target = $region48
      $region47: #{dense_value_head.1} parent=43 // pred_region
        %p7297 = scmp.lt.s32.totalorder %s16, 1
        %s7298 = scalar_select %p7297, %s16, 1
        %s7299 = scalar_lea.vmem %s4, %s7298
      $region48: #{dense_value_head.1} parent=43 // pred_fallthru
        _
    $region44: #{dense_value_head.1} parent=5 // pred_fallthru
      _
  $region6: #{dense_value_head.1} parent=0 // loop_footer
    %s14 = sadd.s32 1, %s10
  $region7: #{dense_value_head.1} parent=0 // loop_footer_branch
    %9 = sbr.rel target = $region3
  $region8: #{dense_value_head.1} parent=0 // loop_exit
    _

</llo_original>
